<compile_context>
chip_gen: v7x
topology: tpu7x:2x2x1
jax: 0.10.0
libtpu: 0.0.40
codegen_flags: <defaults>
</compile_context>

<pallas_src>
import jax
import jax.numpy as jnp
from jax.experimental import pallas as pl
from jax.experimental.pallas import tpu as pltpu


# bias-slab row layout (one zero-padded (1, W) row per bias-like vector)
_B_LSTM1, _B_LSTM2, _B_ATT1, _W_ATT2 = 0, 1, 2, 3
_B_N1, _B_N2, _B_N3, _B_N4 = 4, 5, 6, 7
_B_F1, _B_F2, _B_F3 = 8, 9, 10
_B_BR1, _B_BR2, _B_OUT = 11, 12, 13


# ----------------------------------------------------------------------------
# The fused kernel
# ----------------------------------------------------------------------------

def _multitoxic_kernel(x_ref, mask_ref, num_ref,
                       wih1_ref, wl_ref, w1a_ref,
                       nw1_ref, nw2_ref, nw3_ref, nw4_ref,
                       fw1_ref, fw2_ref, fw3_ref,
                       bw1_ref, bw2_ref, wout_ref, bias_ref,
                       o_ref,
                       xp_sc, l1_sc, l2_sc):
    f32, bf16 = jnp.float32, jnp.bfloat16
    TBP = x_ref.shape[0]
    H8 = wih1_ref.shape[1]          # 8 * hidden
    H4 = H8 // 2
    H = H4 // 4
    H2 = 2 * H
    BP = num_ref.shape[0]
    T = TBP // BP

    def dotf(a, b):                 # f32 matmul (recurrent path)
        return jnp.dot(a, b, preferred_element_type=f32)

    def dotb(a, w_ref):             # bf16 MXU operands, f32 accumulation
        return jnp.dot(a.astype(bf16), w_ref[...], preferred_element_type=f32)

    def brow(i, w):                 # one (1, w) bias row from the shared slab
        return bias_ref[i:i + 1, 0:w]

    # ---------------- fused 2-layer bidirectional LSTM --------------------------
    # xp_sc row r = t*BP+b holds the hoisted input-gate preactivations of both
    # directions at time t (cols [0:4H] fwd, [4H:8H] bwd; gate order i,f,o,g; bias in).
    def run_layer(whh, dst):
        h_f = jnp.zeros((BP, H), f32)
        h_b = jnp.zeros((BP, H), f32)
        c_f = jnp.zeros((BP, H), f32)
        c_b = jnp.zeros((BP, H), f32)
        # static unroll: T is small here; switch to lax.fori_loop(..., unroll) if T > ~32
        for t in range(T):
            rf = t * BP                       # fwd direction consumes time t
            rb = (T - 1 - t) * BP             # bwd direction consumes time T-1-t
            # both directions in ONE MXU push via the block-diagonal W_hh
            g = dotf(jnp.concatenate([h_f, h_b], axis=1), whh)          # (BP, 8H)
            g_f = g[:, 0:H4] + xp_sc[rf:rf + BP, 0:H4]
            g_b = g[:, H4:H8] + xp_sc[rb:rb + BP, H4:H8]
            # (i,f,o,g) ordering: one sigmoid over 3H + one tanh over H per direction
            s_f = jax.nn.sigmoid(g_f[:, 0:3 * H])
            s_b = jax.nn.sigmoid(g_b[:, 0:3 * H])
            c_f = s_f[:, H:H2] * c_f + s_f[:, 0:H] * jnp.tanh(g_f[:, 3 * H:H4])
            c_b = s_b[:, H:H2] * c_b + s_b[:, 0:H] * jnp.tanh(g_b[:, 3 * H:H4])
            h_f = s_f[:, H2:3 * H] * jnp.tanh(c_f)
            h_b = s_b[:, H2:3 * H] * jnp.tanh(c_b)
            dst[rf:rf + BP, 0:H] = h_f
            dst[rb:rb + BP, H:H2] = h_b

    # layer 1: hoisted input projection (one (T*BP,E)@(E,8H) matmul, bias folded in)
    xp_sc[...] = dotf(x_ref[...], wih1_ref[...]) + brow(_B_LSTM1, H8)
    run_layer(wl_ref[0], l1_sc)

    # layer 2: input = layer-1 sequence (fwd|bwd lanes); unsplit (2H,8H) W_ih
    xp_sc[...] = dotf(l1_sc[...], wl_ref[1]) + brow(_B_LSTM2, H8)
    run_layer(wl_ref[2], l2_sc)

    # ---------------- three attention heads, whole padded batch in one shot -----
    KP3 = w1a_ref.shape[1]
    KP = KP3 // 3
    lm = l2_sc[...] * mask_ref[...]                          # masked LSTM output (as in ref)
    ha = jnp.tanh(dotb(lm, w1a_ref) + brow(_B_ATT1, KP3))    # all 3 heads' L1, one push
    sw = ha * brow(_W_ATT2, KP3)                             # L2 weights as a lane row
    # per-head raw scores; each head's L2 bias is constant over T -> cancels in softmax
    s = jnp.concatenate(
        [jnp.sum(sw[:, k * KP:(k + 1) * KP], axis=-1, keepdims=True) for k in range(3)],
        axis=-1)                                             # (T*BP, 3)
    s3 = s.reshape(T, BP, 3)
    s3 = s3 - jnp.max(s3, axis=0, keepdims=True)
    e = jnp.exp(s3)
    a = e / jnp.sum(e, axis=0, keepdims=True)                # softmax over the T axis
    lm3 = lm.reshape(T, BP, H2)
    att = jnp.concatenate(
        [jnp.sum(lm3 * a[:, :, k:k + 1], axis=0) for k in range(3)], axis=-1)  # (BP, 6H)

    # ---------------- numeric MLP + fusion MLP + branches + output heads --------
    relu = lambda v: jnp.maximum(v, 0.0)

    n = num_ref[...]
    n = relu(dotb(n, nw1_ref) + brow(_B_N1, nw1_ref.shape[1]))
    n = relu(dotb(n, nw2_ref) + brow(_B_N2, nw2_ref.shape[1]))
    n = relu(dotb(n, nw3_ref) + brow(_B_N3, nw3_ref.shape[1]))
    n = relu(dotb(n, nw4_ref) + brow(_B_N4, nw4_ref.shape[1]))             # (BP, 48)

    f = jnp.concatenate([att, n], axis=-1)                   # (BP, 6H+48) unsplit fusion in
    f = relu(dotb(f, fw1_ref) + brow(_B_F1, fw1_ref.shape[1]))
    f = relu(dotb(f, fw2_ref) + brow(_B_F2, fw2_ref.shape[1]))
    f = relu(dotb(f, fw3_ref) + brow(_B_F3, fw3_ref.shape[1]))             # (BP, 128)

    h1 = relu(dotb(f, bw1_ref) + brow(_B_BR1, bw1_ref.shape[1]))           # 4 branch L1s fused
    h2 = relu(dotb(h1, bw2_ref) + brow(_B_BR2, bw2_ref.shape[1]))          # block-diag L2s
    # output heads pre-scattered into the final 12-way column permutation
    o_ref[...] = dotb(h2, wout_ref) + brow(_B_OUT, wout_ref.shape[1])


# ----------------------------------------------------------------------------
# Weight preparation (gate permutation, block-diagonals, BN folding, bias slab)
# ----------------------------------------------------------------------------

def _prep_weights(params):
    f32, bf16 = jnp.float32, jnp.bfloat16
    (l1f, l1b), (l2f, l2b) = params["lstm"]
    H = l1f["w_hh"].shape[0]
    H4 = 4 * H

    def pgate_w(w):  # (din, 4H), gate cols (i,f,g,o) -> (i,f,o,g)
        return jnp.concatenate(
            [w[:, 0:H], w[:, H:2 * H], w[:, 3 * H:4 * H], w[:, 2 * H:3 * H]], axis=1)

    def pgate_b(b):
        return jnp.concatenate([b[0:H], b[H:2 * H], b[3 * H:4 * H], b[2 * H:3 * H]])

    def bdiag_hh(wf, wb):
        z = jnp.zeros((H, H4), f32)
        return jnp.concatenate(
            [jnp.concatenate([pgate_w(wf), z], axis=1),
             jnp.concatenate([z, pgate_w(wb)], axis=1)], axis=0)      # (2H, 8H)

    wih1 = jnp.concatenate([pgate_w(l1f["w_ih"]), pgate_w(l1b["w_ih"])], axis=1)  # (E, 8H)
    wih2 = jnp.concatenate([pgate_w(l2f["w_ih"]), pgate_w(l2b["w_ih"])], axis=1)  # (2H, 8H)
    wl = jnp.stack([bdiag_hh(l1f["w_hh"], l1b["w_hh"]),
                    wih2,
                    bdiag_hh(l2f["w_hh"], l2b["w_hh"])])                          # (3, 2H, 8H)
    b_l1 = jnp.concatenate([pgate_b(l1f["b"]), pgate_b(l1b["b"])])
    b_l2 = jnp.concatenate([pgate_b(l2f["b"]), pgate_b(l2b["b"])])

    # attention: pad each head's hidden width to KP, lane-concat L1 weights; L2 biases
    # are dropped (constant per head over T -> cancel in softmax(dim=1)).
    A = 2 * H
    KP = A // 2
    w1s, b1s, w2s = [], [], []
    for name in ("att_general", "att_identity", "att_behavior"):
        hd = params[name]
        K = hd["l1"]["w"].shape[1]
        w1s.append(jnp.zeros((A, KP), f32).at[:, :K].set(hd["l1"]["w"]))
        b1s.append(jnp.zeros((KP,), f32).at[:K].set(hd["l1"]["b"]))
        w2s.append(jnp.zeros((KP,), f32).at[:K].set(hd["l2"]["w"].reshape(-1)))
    w1a = jnp.concatenate(w1s, axis=1)                        # (2H, 3*KP)
    b1a = jnp.concatenate(b1s)
    w2a = jnp.concatenate(w2s)

    def fold_bn(bn, lin):  # ReLU -> BN(eval) -> Linear  ==  ReLU -> Linear'
        return bn["scale"][:, None] * lin["w"], lin["b"] + bn["shift"] @ lin["w"]

    num_p, bn_n = params["numeric"], params["bn_numeric"]
    nw1, nb1 = num_p[0]["w"], num_p[0]["b"]
    nw2, nb2 = fold_bn(bn_n[0], num_p[1])
    nw3, nb3 = fold_bn(bn_n[1], num_p[2])
    nw4, nb4 = fold_bn(bn_n[2], num_p[3])

    fus, bn_f = params["fusion"], params["bn_fusion"]
    fw1, fb1 = fus[0]["w"], fus[0]["b"]
    fw2, fb2 = fold_bn(bn_f[0], fus[1])
    fw3, fb3 = fold_bn(bn_f[1], fus[2])

    # 4 branches fused: lane-concat L1s, block-diagonal L2s, output heads scattered
    # straight into the final 12-way logits permutation.
    branch_order = ("general", "content", "behavior", "identity")
    out_cols = {"general": (0,), "content": (1, 5),
                "behavior": (2, 4, 3, 11), "identity": (6, 7, 8, 9, 10)}
    d1 = params["general_branch"][0]["w"].shape[1]            # 64
    d2 = params["general_branch"][1]["w"].shape[1]            # 32
    n_out = 12
    bw1 = jnp.concatenate([params[n + "_branch"][0]["w"] for n in branch_order], axis=1)
    bb1 = jnp.concatenate([params[n + "_branch"][0]["b"] for n in branch_order])
    bw2 = jnp.concatenate(
        [jnp.zeros((d1, 4 * d2), f32).at[:, k * d2:(k + 1) * d2]
             .set(params[n + "_branch"][1]["w"])
         for k, n in enumerate(branch_order)], axis=0)         # (4*d1, 4*d2) block-diag
    bb2 = jnp.concatenate([params[n + "_branch"][1]["b"] for n in branch_order])
    wout = jnp.concatenate(
        [jnp.zeros((d2, n_out), f32).at[:, jnp.asarray(out_cols[n], jnp.int32)]
             .set(params[n + "_output"]["w"])
         for n in branch_order], axis=0)                       # (4*d2, 12)
    bout = jnp.zeros((n_out,), f32)
    for n in branch_order:
        bout = bout.at[jnp.asarray(out_cols[n], jnp.int32)].add(params[n + "_output"]["b"])

    # every bias-like vector in one lane-dense slab (one DMA instead of ~14)
    rows = [b_l1, b_l2, b1a, w2a, nb1, nb2, nb3, nb4, fb1, fb2, fb3, bb1, bb2, bout]
    wmax = ((max(r.shape[0] for r in rows) + 127) // 128) * 128
    nrows = ((len(rows) + 7) // 8) * 8
    bias = jnp.zeros((nrows, wmax), f32)
    for i, r in enumerate(rows):
        bias = bias.at[i, :r.shape[0]].set(r)

    cast = lambda w: w.astype(bf16)   # bf16 MXU operands for the non-recurrent matmuls
    return (wih1, wl, cast(w1a),
            cast(nw1), cast(nw2), cast(nw3), cast(nw4),
            cast(fw1), cast(fw2), cast(fw3),
            cast(bw1), cast(bw2), cast(wout), bias)


# ----------------------------------------------------------------------------
# Parameters (PyTorch-convention layouts; gate order i,f,g,o)
# ----------------------------------------------------------------------------

def init_params(key, cfg):
    E, H, F = cfg["embedding_dim"], cfg["hidden_dim"], cfg["num_numeric_features"]
    A = 2 * H
    keys = iter(jax.random.split(key, 128))

    def lin(din, dout, s=0.08):
        return {"w": jax.random.normal(next(keys), (din, dout), jnp.float32) * s,
                "b": jax.random.normal(next(keys), (dout,), jnp.float32) * s}

    p = {}
    emb = jax.random.normal(next(keys), (cfg["vocab_size"], E), jnp.float32) * 0.1
    p["embedding"] = emb.at[0].set(0.0)          # padding_idx=0

    lstm = []
    for layer in range(2):
        din = E if layer == 0 else 2 * H
        dirs = []
        for _ in range(2):                        # forward, backward
            dirs.append({
                "w_ih": jax.random.normal(next(keys), (din, 4 * H), jnp.float32) * 0.08,
                "w_hh": jax.random.normal(next(keys), (H, 4 * H), jnp.float32) * 0.08,
                "b": jax.random.normal(next(keys), (4 * H,), jnp.float32) * 0.08,
            })
        lstm.append(tuple(dirs))
    p["lstm"] = tuple(lstm)

    p["att_general"] = {"l1": lin(A, A // 2), "l2": lin(A // 2, 1)}
    p["att_identity"] = {"l1": lin(A, A // 3), "l2": lin(A // 3, 1)}
    p["att_behavior"] = {"l1": lin(A, A // 3), "l2": lin(A // 3, 1)}

    p["numeric"] = [lin(F, 128), lin(128, 96), lin(96, 64), lin(64, 48)]
    p["fusion"] = [lin(A * 3 + 48, 384), lin(384, 256), lin(256, 128)]
    for name in ("identity", "behavior", "content", "general"):
        p[name + "_branch"] = [lin(128, 64), lin(64, 32)]
    p["identity_output"] = lin(32, 5)
    p["behavior_output"] = lin(32, 4)
    p["content_output"] = lin(32, 2)
    p["general_output"] = lin(32, 1)

    # BatchNorm1d (eval mode, default buffers: mean=0, var=1, gamma=1, beta=0)
    eps = 1e-5

    def bn(d):
        return {"scale": jnp.ones((d,), jnp.float32) / jnp.sqrt(1.0 + eps),
                "shift": jnp.zeros((d,), jnp.float32)}

    p["bn_numeric"] = [bn(128), bn(96), bn(64)]
    p["bn_fusion"] = [bn(384), bn(256)]
    return p


# ----------------------------------------------------------------------------
# Forward pass
# ----------------------------------------------------------------------------

def multitoxic_forward(params, text_input, numeric_input, attention_mask=None):
    B, T = text_input.shape
    E = params["embedding"].shape[1]
    H = params["lstm"][0][0]["w_hh"].shape[0]
    BP = max(8, ((B + 7) // 8) * 8)              # pad batch to the f32 sublane tile
    pad = BP - B

    text_p = jnp.pad(text_input, ((0, pad), (0, 0)))
    numeric_p = jnp.pad(numeric_input.astype(jnp.float32), ((0, pad), (0, 0)))
    if attention_mask is None:
        mask_p = jnp.ones((BP, T), jnp.float32)
    else:
        mask_p = jnp.pad(attention_mask.astype(jnp.float32), ((0, pad), (0, 0)))

    # Embedding lookup stays in XLA (gather); dropout layers are identity in eval mode.
    embedded = params["embedding"][text_p]                              # (BP, T, E)
    x_tm = jnp.transpose(embedded, (1, 0, 2)).reshape(T * BP, E)        # time-major
    mask_tm = jnp.transpose(mask_p, (1, 0)).reshape(T * BP, 1)

    weights = _prep_weights(params)

    # Whole network (<~1 MiB weights + ~100 KiB scratch) fits VMEM on every generation,
    # so a single un-gridded kernel is used.  If T*BP*H grows by orders of magnitude,
    # tile the time axis of the hoisted-projection / sequence scratches.
    logits = pl.pallas_call(
        _multitoxic_kernel,
        out_shape=jax.ShapeDtypeStruct((BP, 12), jnp.float32),
        scratch_shapes=[
            pltpu.VMEM((T * BP, 8 * H), jnp.float32),   # hoisted gate preactivations
            pltpu.VMEM((T * BP, 2 * H), jnp.float32),   # layer-1 output sequence
            pltpu.VMEM((T * BP, 2 * H), jnp.float32),   # layer-2 output sequence
        ],
    )(x_tm, mask_tm, numeric_p, *weights)
    return logits[:B]


# ----------------------------------------------------------------------------
# Main
# ----------------------------------------------------------------------------

if __name__ == "__main__":
    cfg = dict(vocab_size=100, embedding_dim=32, hidden_dim=32, num_classes=12,
               num_numeric_features=16, dropout_rate=0.4)
    B, T = 2, 8

    key = jax.random.PRNGKey(0)
    kp, kt, kn = jax.random.split(key, 3)
    params = init_params(kp, cfg)

    text_input = jax.random.randint(kt, (B, T), 0, cfg["vocab_size"], dtype=jnp.int32)
    numeric_input = jax.random.normal(kn, (B, cfg["num_numeric_features"]), jnp.float32)
    attention_mask = jnp.ones((B, T), jnp.float32)

    logits = jax.jit(multitoxic_forward)(params, text_input, numeric_input, attention_mask)
    logits = jax.block_until_ready(logits)

    assert logits.shape == (B, cfg["num_classes"]), logits.shape
    assert bool(jnp.all(jnp.isfinite(logits)))
    print("KERNEL_OK")
</pallas_src>

<mosaic_0001>
module attributes {stable_mosaic.version = 11 : i64} {
  func.func @_multitoxic_kernel(%arg0: memref<64x32xf32, #tpu.memory_space<vmem>>, %arg1: memref<64x1xf32, #tpu.memory_space<vmem>>, %arg2: memref<8x16xf32, #tpu.memory_space<vmem>>, %arg3: memref<32x256xf32, #tpu.memory_space<vmem>>, %arg4: memref<3x64x256xf32, #tpu.memory_space<vmem>>, %arg5: memref<64x96xbf16, #tpu.memory_space<vmem>>, %arg6: memref<16x128xbf16, #tpu.memory_space<vmem>>, %arg7: memref<128x96xbf16, #tpu.memory_space<vmem>>, %arg8: memref<96x64xbf16, #tpu.memory_space<vmem>>, %arg9: memref<64x48xbf16, #tpu.memory_space<vmem>>, %arg10: memref<240x384xbf16, #tpu.memory_space<vmem>>, %arg11: memref<384x256xbf16, #tpu.memory_space<vmem>>, %arg12: memref<256x128xbf16, #tpu.memory_space<vmem>>, %arg13: memref<128x256xbf16, #tpu.memory_space<vmem>>, %arg14: memref<256x128xbf16, #tpu.memory_space<vmem>>, %arg15: memref<128x12xbf16, #tpu.memory_space<vmem>>, %arg16: memref<16x384xf32, #tpu.memory_space<vmem>>, %arg17: memref<8x12xf32, #tpu.memory_space<vmem>>, %arg18: memref<64x256xf32, #tpu.memory_space<vmem>>, %arg19: memref<64x64xf32, #tpu.memory_space<vmem>>, %arg20: memref<64x64xf32, #tpu.memory_space<vmem>>) attributes {dimension_semantics = [], scalar_prefetch = 0 : i64, scratch_operands = 3 : i64, tpu.core_type = #tpu.core_type<tc>} {
    %c0 = arith.constant 0 : index
    %c0_0 = arith.constant 0 : index
    %0 = vector.load %arg0[%c0, %c0_0] : memref<64x32xf32, #tpu.memory_space<vmem>>, vector<64x32xf32>
    %c0_1 = arith.constant 0 : index
    %c0_2 = arith.constant 0 : index
    %1 = vector.load %arg3[%c0_1, %c0_2] : memref<32x256xf32, #tpu.memory_space<vmem>>, vector<32x256xf32>
    %cst = arith.constant dense<0.000000e+00> : vector<64x256xf32>
    %2 = tpu.matmul %0, %1, %cst {dimension_numbers = #tpu.dot_dimension_numbers<[1], [0], [0], [1], [0, 0, 1, 1], [], []>} : vector<64x32xf32>, vector<32x256xf32>, vector<64x256xf32> -> vector<64x256xf32>
    %c0_3 = arith.constant 0 : index
    %c0_4 = arith.constant 0 : index
    %3 = vector.load %arg16[%c0_3, %c0_4] : memref<16x384xf32, #tpu.memory_space<vmem>>, vector<1x256xf32>
    %4 = vector.broadcast %3 : vector<1x256xf32> to vector<64x256xf32>
    %5 = arith.addf %2, %4 : vector<64x256xf32>
    %c0_5 = arith.constant 0 : index
    %c0_6 = arith.constant 0 : index
    %6 = vector.load %arg18[%c0_5, %c0_6] : memref<64x256xf32, #tpu.memory_space<vmem>>, vector<64x256xf32>
    tpu.vector_store %arg18[%c0_5, %c0_6], %5 {strides = array<i32>} : memref<64x256xf32, #tpu.memory_space<vmem>>, vector<64x256xf32>,
    %c0_7 = arith.constant 0 : index
    %c0_8 = arith.constant 0 : index
    %c0_9 = arith.constant 0 : index
    %7 = vector.load %arg4[%c0_7, %c0_8, %c0_9] : memref<3x64x256xf32, #tpu.memory_space<vmem>>, vector<1x64x256xf32>
    %8 = vector.shape_cast %7 : vector<1x64x256xf32> to vector<64x256xf32>
    %cst_10 = arith.constant 0.000000e+00 : f32
    %9 = vector.broadcast %cst_10 : f32 to vector<8x32xf32>
    %cst_11 = arith.constant 0.000000e+00 : f32
    %10 = vector.broadcast %cst_11 : f32 to vector<8x32xf32>
    %cst_12 = arith.constant 0.000000e+00 : f32
    %11 = vector.broadcast %cst_12 : f32 to vector<8x32xf32>
    %cst_13 = arith.constant 0.000000e+00 : f32
    %12 = vector.broadcast %cst_13 : f32 to vector<8x32xf32>
    %13 = tpu.concatenate %9, %10 in 1 : vector<8x32xf32>, vector<8x32xf32> -> vector<8x64xf32>
    %cst_14 = arith.constant dense<0.000000e+00> : vector<8x256xf32>
    %14 = tpu.matmul %13, %8, %cst_14 {dimension_numbers = #tpu.dot_dimension_numbers<[1], [0], [0], [1], [0, 0, 1, 1], [], []>} : vector<8x64xf32>, vector<64x256xf32>, vector<8x256xf32> -> vector<8x256xf32>
    %15 = vector.extract_strided_slice %14 {offsets = [0, 0], sizes = [8, 128], strides = [1, 1]} : vector<8x256xf32> to vector<8x128xf32>
    %c0_15 = arith.constant 0 : index
    %c0_16 = arith.constant 0 : index
    %16 = vector.load %arg18[%c0_15, %c0_16] : memref<64x256xf32, #tpu.memory_space<vmem>>, vector<8x128xf32>
    %17 = arith.addf %15, %16 : vector<8x128xf32>
    %18 = vector.extract_strided_slice %14 {offsets = [0, 128], sizes = [8, 128], strides = [1, 1]} : vector<8x256xf32> to vector<8x128xf32>
    %c56 = arith.constant 56 : index
    %c128 = arith.constant 128 : index
    %19 = vector.load %arg18[%c56, %c128] : memref<64x256xf32, #tpu.memory_space<vmem>>, vector<8x128xf32>
    %20 = arith.addf %18, %19 : vector<8x128xf32>
    %21 = vector.extract_strided_slice %17 {offsets = [0, 0], sizes = [8, 96], strides = [1, 1]} : vector<8x128xf32> to vector<8x96xf32>
    %22 = arith.negf %21 : vector<8x96xf32>
    %23 = math.exp %22 : vector<8x96xf32>
    %cst_17 = arith.constant 1.000000e+00 : f32
    %24 = vector.broadcast %cst_17 : f32 to vector<8x96xf32>
    %25 = arith.addf %24, %23 : vector<8x96xf32>
    %26 = arith.divf %24, %25 : vector<8x96xf32>
    %27 = vector.extract_strided_slice %20 {offsets = [0, 0], sizes = [8, 96], strides = [1, 1]} : vector<8x128xf32> to vector<8x96xf32>
    %28 = arith.negf %27 : vector<8x96xf32>
    %29 = math.exp %28 : vector<8x96xf32>
    %cst_18 = arith.constant 1.000000e+00 : f32
    %30 = vector.broadcast %cst_18 : f32 to vector<8x96xf32>
    %31 = arith.addf %30, %29 : vector<8x96xf32>
    %32 = arith.divf %30, %31 : vector<8x96xf32>
    %33 = vector.extract_strided_slice %26 {offsets = [0, 32], sizes = [8, 32], strides = [1, 1]} : vector<8x96xf32> to vector<8x32xf32>
    %34 = arith.mulf %33, %11 : vector<8x32xf32>
    %35 = vector.extract_strided_slice %26 {offsets = [0, 0], sizes = [8, 32], strides = [1, 1]} : vector<8x96xf32> to vector<8x32xf32>
    %36 = vector.extract_strided_slice %17 {offsets = [0, 96], sizes = [8, 32], strides = [1, 1]} : vector<8x128xf32> to vector<8x32xf32>
    %37 = math.tanh %36 : vector<8x32xf32>
    %38 = arith.mulf %35, %37 : vector<8x32xf32>
    %39 = arith.addf %34, %38 : vector<8x32xf32>
    %40 = vector.extract_strided_slice %32 {offsets = [0, 32], sizes = [8, 32], strides = [1, 1]} : vector<8x96xf32> to vector<8x32xf32>
    %41 = arith.mulf %40, %12 : vector<8x32xf32>
    %42 = vector.extract_strided_slice %32 {offsets = [0, 0], sizes = [8, 32], strides = [1, 1]} : vector<8x96xf32> to vector<8x32xf32>
    %43 = vector.extract_strided_slice %20 {offsets = [0, 96], sizes = [8, 32], strides = [1, 1]} : vector<8x128xf32> to vector<8x32xf32>
    %44 = math.tanh %43 : vector<8x32xf32>
    %45 = arith.mulf %42, %44 : vector<8x32xf32>
    %46 = arith.addf %41, %45 : vector<8x32xf32>
    %47 = vector.extract_strided_slice %26 {offsets = [0, 64], sizes = [8, 32], strides = [1, 1]} : vector<8x96xf32> to vector<8x32xf32>
    %48 = math.tanh %39 : vector<8x32xf32>
    %49 = arith.mulf %47, %48 : vector<8x32xf32>
    %50 = vector.extract_strided_slice %32 {offsets = [0, 64], sizes = [8, 32], strides = [1, 1]} : vector<8x96xf32> to vector<8x32xf32>
    %51 = math.tanh %46 : vector<8x32xf32>
    %52 = arith.mulf %50, %51 : vector<8x32xf32>
    %c0_19 = arith.constant 0 : index
    %c0_20 = arith.constant 0 : index
    %53 = vector.load %arg19[%c0_19, %c0_20] : memref<64x64xf32, #tpu.memory_space<vmem>>, vector<8x32xf32>
    tpu.vector_store %arg19[%c0_19, %c0_20], %49 {strides = array<i32>} : memref<64x64xf32, #tpu.memory_space<vmem>>, vector<8x32xf32>,
    %c56_21 = arith.constant 56 : index
    %c32 = arith.constant 32 : index
    %54 = vector.load %arg19[%c56_21, %c32] : memref<64x64xf32, #tpu.memory_space<vmem>>, vector<8x32xf32>
    tpu.vector_store %arg19[%c56_21, %c32], %52 {strides = array<i32>} : memref<64x64xf32, #tpu.memory_space<vmem>>, vector<8x32xf32>,
    %55 = tpu.concatenate %49, %52 in 1 : vector<8x32xf32>, vector<8x32xf32> -> vector<8x64xf32>
    %cst_22 = arith.constant dense<0.000000e+00> : vector<8x256xf32>
    %56 = tpu.matmul %55, %8, %cst_22 {dimension_numbers = #tpu.dot_dimension_numbers<[1], [0], [0], [1], [0, 0, 1, 1], [], []>} : vector<8x64xf32>, vector<64x256xf32>, vector<8x256xf32> -> vector<8x256xf32>
    %57 = vector.extract_strided_slice %56 {offsets = [0, 0], sizes = [8, 128], strides = [1, 1]} : vector<8x256xf32> to vector<8x128xf32>
    %c8 = arith.constant 8 : index
    %c0_23 = arith.constant 0 : index
    %58 = vector.load %arg18[%c8, %c0_23] : memref<64x256xf32, #tpu.memory_space<vmem>>, vector<8x128xf32>
    %59 = arith.addf %57, %58 : vector<8x128xf32>
    %60 = vector.extract_strided_slice %56 {offsets = [0, 128], sizes = [8, 128], strides = [1, 1]} : vector<8x256xf32> to vector<8x128xf32>
    %c48 = arith.constant 48 : index
    %c128_24 = arith.constant 128 : index
    %61 = vector.load %arg18[%c48, %c128_24] : memref<64x256xf32, #tpu.memory_space<vmem>>, vector<8x128xf32>
    %62 = arith.addf %60, %61 : vector<8x128xf32>
    %63 = vector.extract_strided_slice %59 {offsets = [0, 0], sizes = [8, 96], strides = [1, 1]} : vector<8x128xf32> to vector<8x96xf32>
    %64 = arith.negf %63 : vector<8x96xf32>
    %65 = math.exp %64 : vector<8x96xf32>
    %cst_25 = arith.constant 1.000000e+00 : f32
    %66 = vector.broadcast %cst_25 : f32 to vector<8x96xf32>
    %67 = arith.addf %66, %65 : vector<8x96xf32>
    %68 = arith.divf %66, %67 : vector<8x96xf32>
    %69 = vector.extract_strided_slice %62 {offsets = [0, 0], sizes = [8, 96], strides = [1, 1]} : vector<8x128xf32> to vector<8x96xf32>
    %70 = arith.negf %69 : vector<8x96xf32>
    %71 = math.exp %70 : vector<8x96xf32>
    %cst_26 = arith.constant 1.000000e+00 : f32
    %72 = vector.broadcast %cst_26 : f32 to vector<8x96xf32>
    %73 = arith.addf %72, %71 : vector<8x96xf32>
    %74 = arith.divf %72, %73 : vector<8x96xf32>
    %75 = vector.extract_strided_slice %68 {offsets = [0, 32], sizes = [8, 32], strides = [1, 1]} : vector<8x96xf32> to vector<8x32xf32>
    %76 = arith.mulf %75, %39 : vector<8x32xf32>
    %77 = vector.extract_strided_slice %68 {offsets = [0, 0], sizes = [8, 32], strides = [1, 1]} : vector<8x96xf32> to vector<8x32xf32>
    %78 = vector.extract_strided_slice %59 {offsets = [0, 96], sizes = [8, 32], strides = [1, 1]} : vector<8x128xf32> to vector<8x32xf32>
    %79 = math.tanh %78 : vector<8x32xf32>
    %80 = arith.mulf %77, %79 : vector<8x32xf32>
    %81 = arith.addf %76, %80 : vector<8x32xf32>
    %82 = vector.extract_strided_slice %74 {offsets = [0, 32], sizes = [8, 32], strides = [1, 1]} : vector<8x96xf32> to vector<8x32xf32>
    %83 = arith.mulf %82, %46 : vector<8x32xf32>
    %84 = vector.extract_strided_slice %74 {offsets = [0, 0], sizes = [8, 32], strides = [1, 1]} : vector<8x96xf32> to vector<8x32xf32>
    %85 = vector.extract_strided_slice %62 {offsets = [0, 96], sizes = [8, 32], strides = [1, 1]} : vector<8x128xf32> to vector<8x32xf32>
    %86 = math.tanh %85 : vector<8x32xf32>
    %87 = arith.mulf %84, %86 : vector<8x32xf32>
    %88 = arith.addf %83, %87 : vector<8x32xf32>
    %89 = vector.extract_strided_slice %68 {offsets = [0, 64], sizes = [8, 32], strides = [1, 1]} : vector<8x96xf32> to vector<8x32xf32>
    %90 = math.tanh %81 : vector<8x32xf32>
    %91 = arith.mulf %89, %90 : vector<8x32xf32>
    %92 = vector.extract_strided_slice %74 {offsets = [0, 64], sizes = [8, 32], strides = [1, 1]} : vector<8x96xf32> to vector<8x32xf32>
    %93 = math.tanh %88 : vector<8x32xf32>
    %94 = arith.mulf %92, %93 : vector<8x32xf32>
    %c8_27 = arith.constant 8 : index
    %c0_28 = arith.constant 0 : index
    %95 = vector.load %arg19[%c8_27, %c0_28] : memref<64x64xf32, #tpu.memory_space<vmem>>, vector<8x32xf32>
    tpu.vector_store %arg19[%c8_27, %c0_28], %91 {strides = array<i32>} : memref<64x64xf32, #tpu.memory_space<vmem>>, vector<8x32xf32>,
    %c48_29 = arith.constant 48 : index
    %c32_30 = arith.constant 32 : index
    %96 = vector.load %arg19[%c48_29, %c32_30] : memref<64x64xf32, #tpu.memory_space<vmem>>, vector<8x32xf32>
    tpu.vector_store %arg19[%c48_29, %c32_30], %94 {strides = array<i32>} : memref<64x64xf32, #tpu.memory_space<vmem>>, vector<8x32xf32>,
    %97 = tpu.concatenate %91, %94 in 1 : vector<8x32xf32>, vector<8x32xf32> -> vector<8x64xf32>
    %cst_31 = arith.constant dense<0.000000e+00> : vector<8x256xf32>
    %98 = tpu.matmul %97, %8, %cst_31 {dimension_numbers = #tpu.dot_dimension_numbers<[1], [0], [0], [1], [0, 0, 1, 1], [], []>} : vector<8x64xf32>, vector<64x256xf32>, vector<8x256xf32> -> vector<8x256xf32>
    %99 = vector.extract_strided_slice %98 {offsets = [0, 0], sizes = [8, 128], strides = [1, 1]} : vector<8x256xf32> to vector<8x128xf32>
    %c16 = arith.constant 16 : index
    %c0_32 = arith.constant 0 : index
    %100 = vector.load %arg18[%c16, %c0_32] : memref<64x256xf32, #tpu.memory_space<vmem>>, vector<8x128xf32>
    %101 = arith.addf %99, %100 : vector<8x128xf32>
    %102 = vector.extract_strided_slice %98 {offsets = [0, 128], sizes = [8, 128], strides = [1, 1]} : vector<8x256xf32> to vector<8x128xf32>
    %c40 = arith.constant 40 : index
    %c128_33 = arith.constant 128 : index
    %103 = vector.load %arg18[%c40, %c128_33] : memref<64x256xf32, #tpu.memory_space<vmem>>, vector<8x128xf32>
    %104 = arith.addf %102, %103 : vector<8x128xf32>
    %105 = vector.extract_strided_slice %101 {offsets = [0, 0], sizes = [8, 96], strides = [1, 1]} : vector<8x128xf32> to vector<8x96xf32>
    %106 = arith.negf %105 : vector<8x96xf32>
    %107 = math.exp %106 : vector<8x96xf32>
    %cst_34 = arith.constant 1.000000e+00 : f32
    %108 = vector.broadcast %cst_34 : f32 to vector<8x96xf32>
    %109 = arith.addf %108, %107 : vector<8x96xf32>
    %110 = arith.divf %108, %109 : vector<8x96xf32>
    %111 = vector.extract_strided_slice %104 {offsets = [0, 0], sizes = [8, 96], strides = [1, 1]} : vector<8x128xf32> to vector<8x96xf32>
    %112 = arith.negf %111 : vector<8x96xf32>
    %113 = math.exp %112 : vector<8x96xf32>
    %cst_35 = arith.constant 1.000000e+00 : f32
    %114 = vector.broadcast %cst_35 : f32 to vector<8x96xf32>
    %115 = arith.addf %114, %113 : vector<8x96xf32>
    %116 = arith.divf %114, %115 : vector<8x96xf32>
    %117 = vector.extract_strided_slice %110 {offsets = [0, 32], sizes = [8, 32], strides = [1, 1]} : vector<8x96xf32> to vector<8x32xf32>
    %118 = arith.mulf %117, %81 : vector<8x32xf32>
    %119 = vector.extract_strided_slice %110 {offsets = [0, 0], sizes = [8, 32], strides = [1, 1]} : vector<8x96xf32> to vector<8x32xf32>
    %120 = vector.extract_strided_slice %101 {offsets = [0, 96], sizes = [8, 32], strides = [1, 1]} : vector<8x128xf32> to vector<8x32xf32>
    %121 = math.tanh %120 : vector<8x32xf32>
    %122 = arith.mulf %119, %121 : vector<8x32xf32>
    %123 = arith.addf %118, %122 : vector<8x32xf32>
    %124 = vector.extract_strided_slice %116 {offsets = [0, 32], sizes = [8, 32], strides = [1, 1]} : vector<8x96xf32> to vector<8x32xf32>
    %125 = arith.mulf %124, %88 : vector<8x32xf32>
    %126 = vector.extract_strided_slice %116 {offsets = [0, 0], sizes = [8, 32], strides = [1, 1]} : vector<8x96xf32> to vector<8x32xf32>
    %127 = vector.extract_strided_slice %104 {offsets = [0, 96], sizes = [8, 32], strides = [1, 1]} : vector<8x128xf32> to vector<8x32xf32>
    %128 = math.tanh %127 : vector<8x32xf32>
    %129 = arith.mulf %126, %128 : vector<8x32xf32>
    %130 = arith.addf %125, %129 : vector<8x32xf32>
    %131 = vector.extract_strided_slice %110 {offsets = [0, 64], sizes = [8, 32], strides = [1, 1]} : vector<8x96xf32> to vector<8x32xf32>
    %132 = math.tanh %123 : vector<8x32xf32>
    %133 = arith.mulf %131, %132 : vector<8x32xf32>
    %134 = vector.extract_strided_slice %116 {offsets = [0, 64], sizes = [8, 32], strides = [1, 1]} : vector<8x96xf32> to vector<8x32xf32>
    %135 = math.tanh %130 : vector<8x32xf32>
    %136 = arith.mulf %134, %135 : vector<8x32xf32>
    %c16_36 = arith.constant 16 : index
    %c0_37 = arith.constant 0 : index
    %137 = vector.load %arg19[%c16_36, %c0_37] : memref<64x64xf32, #tpu.memory_space<vmem>>, vector<8x32xf32>
    tpu.vector_store %arg19[%c16_36, %c0_37], %133 {strides = array<i32>} : memref<64x64xf32, #tpu.memory_space<vmem>>, vector<8x32xf32>,
    %c40_38 = arith.constant 40 : index
    %c32_39 = arith.constant 32 : index
    %138 = vector.load %arg19[%c40_38, %c32_39] : memref<64x64xf32, #tpu.memory_space<vmem>>, vector<8x32xf32>
    tpu.vector_store %arg19[%c40_38, %c32_39], %136 {strides = array<i32>} : memref<64x64xf32, #tpu.memory_space<vmem>>, vector<8x32xf32>,
    %139 = tpu.concatenate %133, %136 in 1 : vector<8x32xf32>, vector<8x32xf32> -> vector<8x64xf32>
    %cst_40 = arith.constant dense<0.000000e+00> : vector<8x256xf32>
    %140 = tpu.matmul %139, %8, %cst_40 {dimension_numbers = #tpu.dot_dimension_numbers<[1], [0], [0], [1], [0, 0, 1, 1], [], []>} : vector<8x64xf32>, vector<64x256xf32>, vector<8x256xf32> -> vector<8x256xf32>
    %141 = vector.extract_strided_slice %140 {offsets = [0, 0], sizes = [8, 128], strides = [1, 1]} : vector<8x256xf32> to vector<8x128xf32>
    %c24 = arith.constant 24 : index
    %c0_41 = arith.constant 0 : index
    %142 = vector.load %arg18[%c24, %c0_41] : memref<64x256xf32, #tpu.memory_space<vmem>>, vector<8x128xf32>
    %143 = arith.addf %141, %142 : vector<8x128xf32>
    %144 = vector.extract_strided_slice %140 {offsets = [0, 128], sizes = [8, 128], strides = [1, 1]} : vector<8x256xf32> to vector<8x128xf32>
    %c32_42 = arith.constant 32 : index
    %c128_43 = arith.constant 128 : index
    %145 = vector.load %arg18[%c32_42, %c128_43] : memref<64x256xf32, #tpu.memory_space<vmem>>, vector<8x128xf32>
    %146 = arith.addf %144, %145 : vector<8x128xf32>
    %147 = vector.extract_strided_slice %143 {offsets = [0, 0], sizes = [8, 96], strides = [1, 1]} : vector<8x128xf32> to vector<8x96xf32>
    %148 = arith.negf %147 : vector<8x96xf32>
    %149 = math.exp %148 : vector<8x96xf32>
    %cst_44 = arith.constant 1.000000e+00 : f32
    %150 = vector.broadcast %cst_44 : f32 to vector<8x96xf32>
    %151 = arith.addf %150, %149 : vector<8x96xf32>
    %152 = arith.divf %150, %151 : vector<8x96xf32>
    %153 = vector.extract_strided_slice %146 {offsets = [0, 0], sizes = [8, 96], strides = [1, 1]} : vector<8x128xf32> to vector<8x96xf32>
    %154 = arith.negf %153 : vector<8x96xf32>
    %155 = math.exp %154 : vector<8x96xf32>
    %cst_45 = arith.constant 1.000000e+00 : f32
    %156 = vector.broadcast %cst_45 : f32 to vector<8x96xf32>
    %157 = arith.addf %156, %155 : vector<8x96xf32>
    %158 = arith.divf %156, %157 : vector<8x96xf32>
    %159 = vector.extract_strided_slice %152 {offsets = [0, 32], sizes = [8, 32], strides = [1, 1]} : vector<8x96xf32> to vector<8x32xf32>
    %160 = arith.mulf %159, %123 : vector<8x32xf32>
    %161 = vector.extract_strided_slice %152 {offsets = [0, 0], sizes = [8, 32], strides = [1, 1]} : vector<8x96xf32> to vector<8x32xf32>
    %162 = vector.extract_strided_slice %143 {offsets = [0, 96], sizes = [8, 32], strides = [1, 1]} : vector<8x128xf32> to vector<8x32xf32>
    %163 = math.tanh %162 : vector<8x32xf32>
    %164 = arith.mulf %161, %163 : vector<8x32xf32>
    %165 = arith.addf %160, %164 : vector<8x32xf32>
    %166 = vector.extract_strided_slice %158 {offsets = [0, 32], sizes = [8, 32], strides = [1, 1]} : vector<8x96xf32> to vector<8x32xf32>
    %167 = arith.mulf %166, %130 : vector<8x32xf32>
    %168 = vector.extract_strided_slice %158 {offsets = [0, 0], sizes = [8, 32], strides = [1, 1]} : vector<8x96xf32> to vector<8x32xf32>
    %169 = vector.extract_strided_slice %146 {offsets = [0, 96], sizes = [8, 32], strides = [1, 1]} : vector<8x128xf32> to vector<8x32xf32>
    %170 = math.tanh %169 : vector<8x32xf32>
    %171 = arith.mulf %168, %170 : vector<8x32xf32>
    %172 = arith.addf %167, %171 : vector<8x32xf32>
    %173 = vector.extract_strided_slice %152 {offsets = [0, 64], sizes = [8, 32], strides = [1, 1]} : vector<8x96xf32> to vector<8x32xf32>
    %174 = math.tanh %165 : vector<8x32xf32>
    %175 = arith.mulf %173, %174 : vector<8x32xf32>
    %176 = vector.extract_strided_slice %158 {offsets = [0, 64], sizes = [8, 32], strides = [1, 1]} : vector<8x96xf32> to vector<8x32xf32>
    %177 = math.tanh %172 : vector<8x32xf32>
    %178 = arith.mulf %176, %177 : vector<8x32xf32>
    %c24_46 = arith.constant 24 : index
    %c0_47 = arith.constant 0 : index
    %179 = vector.load %arg19[%c24_46, %c0_47] : memref<64x64xf32, #tpu.memory_space<vmem>>, vector<8x32xf32>
    tpu.vector_store %arg19[%c24_46, %c0_47], %175 {strides = array<i32>} : memref<64x64xf32, #tpu.memory_space<vmem>>, vector<8x32xf32>,
    %c32_48 = arith.constant 32 : index
    %c32_49 = arith.constant 32 : index
    %180 = vector.load %arg19[%c32_48, %c32_49] : memref<64x64xf32, #tpu.memory_space<vmem>>, vector<8x32xf32>
    tpu.vector_store %arg19[%c32_48, %c32_49], %178 {strides = array<i32>} : memref<64x64xf32, #tpu.memory_space<vmem>>, vector<8x32xf32>,
    %181 = tpu.concatenate %175, %178 in 1 : vector<8x32xf32>, vector<8x32xf32> -> vector<8x64xf32>
    %cst_50 = arith.constant dense<0.000000e+00> : vector<8x256xf32>
    %182 = tpu.matmul %181, %8, %cst_50 {dimension_numbers = #tpu.dot_dimension_numbers<[1], [0], [0], [1], [0, 0, 1, 1], [], []>} : vector<8x64xf32>, vector<64x256xf32>, vector<8x256xf32> -> vector<8x256xf32>
    %183 = vector.extract_strided_slice %182 {offsets = [0, 0], sizes = [8, 128], strides = [1, 1]} : vector<8x256xf32> to vector<8x128xf32>
    %c32_51 = arith.constant 32 : index
    %c0_52 = arith.constant 0 : index
    %184 = vector.load %arg18[%c32_51, %c0_52] : memref<64x256xf32, #tpu.memory_space<vmem>>, vector<8x128xf32>
    %185 = arith.addf %183, %184 : vector<8x128xf32>
    %186 = vector.extract_strided_slice %182 {offsets = [0, 128], sizes = [8, 128], strides = [1, 1]} : vector<8x256xf32> to vector<8x128xf32>
    %c24_53 = arith.constant 24 : index
    %c128_54 = arith.constant 128 : index
    %187 = vector.load %arg18[%c24_53, %c128_54] : memref<64x256xf32, #tpu.memory_space<vmem>>, vector<8x128xf32>
    %188 = arith.addf %186, %187 : vector<8x128xf32>
    %189 = vector.extract_strided_slice %185 {offsets = [0, 0], sizes = [8, 96], strides = [1, 1]} : vector<8x128xf32> to vector<8x96xf32>
    %190 = arith.negf %189 : vector<8x96xf32>
    %191 = math.exp %190 : vector<8x96xf32>
    %cst_55 = arith.constant 1.000000e+00 : f32
    %192 = vector.broadcast %cst_55 : f32 to vector<8x96xf32>
    %193 = arith.addf %192, %191 : vector<8x96xf32>
    %194 = arith.divf %192, %193 : vector<8x96xf32>
    %195 = vector.extract_strided_slice %188 {offsets = [0, 0], sizes = [8, 96], strides = [1, 1]} : vector<8x128xf32> to vector<8x96xf32>
    %196 = arith.negf %195 : vector<8x96xf32>
    %197 = math.exp %196 : vector<8x96xf32>
    %cst_56 = arith.constant 1.000000e+00 : f32
    %198 = vector.broadcast %cst_56 : f32 to vector<8x96xf32>
    %199 = arith.addf %198, %197 : vector<8x96xf32>
    %200 = arith.divf %198, %199 : vector<8x96xf32>
    %201 = vector.extract_strided_slice %194 {offsets = [0, 32], sizes = [8, 32], strides = [1, 1]} : vector<8x96xf32> to vector<8x32xf32>
    %202 = arith.mulf %201, %165 : vector<8x32xf32>
    %203 = vector.extract_strided_slice %194 {offsets = [0, 0], sizes = [8, 32], strides = [1, 1]} : vector<8x96xf32> to vector<8x32xf32>
    %204 = vector.extract_strided_slice %185 {offsets = [0, 96], sizes = [8, 32], strides = [1, 1]} : vector<8x128xf32> to vector<8x32xf32>
    %205 = math.tanh %204 : vector<8x32xf32>
    %206 = arith.mulf %203, %205 : vector<8x32xf32>
    %207 = arith.addf %202, %206 : vector<8x32xf32>
    %208 = vector.extract_strided_slice %200 {offsets = [0, 32], sizes = [8, 32], strides = [1, 1]} : vector<8x96xf32> to vector<8x32xf32>
    %209 = arith.mulf %208, %172 : vector<8x32xf32>
    %210 = vector.extract_strided_slice %200 {offsets = [0, 0], sizes = [8, 32], strides = [1, 1]} : vector<8x96xf32> to vector<8x32xf32>
    %211 = vector.extract_strided_slice %188 {offsets = [0, 96], sizes = [8, 32], strides = [1, 1]} : vector<8x128xf32> to vector<8x32xf32>
    %212 = math.tanh %211 : vector<8x32xf32>
    %213 = arith.mulf %210, %212 : vector<8x32xf32>
    %214 = arith.addf %209, %213 : vector<8x32xf32>
    %215 = vector.extract_strided_slice %194 {offsets = [0, 64], sizes = [8, 32], strides = [1, 1]} : vector<8x96xf32> to vector<8x32xf32>
    %216 = math.tanh %207 : vector<8x32xf32>
    %217 = arith.mulf %215, %216 : vector<8x32xf32>
    %218 = vector.extract_strided_slice %200 {offsets = [0, 64], sizes = [8, 32], strides = [1, 1]} : vector<8x96xf32> to vector<8x32xf32>
    %219 = math.tanh %214 : vector<8x32xf32>
    %220 = arith.mulf %218, %219 : vector<8x32xf32>
    %c32_57 = arith.constant 32 : index
    %c0_58 = arith.constant 0 : index
    %221 = vector.load %arg19[%c32_57, %c0_58] : memref<64x64xf32, #tpu.memory_space<vmem>>, vector<8x32xf32>
    tpu.vector_store %arg19[%c32_57, %c0_58], %217 {strides = array<i32>} : memref<64x64xf32, #tpu.memory_space<vmem>>, vector<8x32xf32>,
    %c24_59 = arith.constant 24 : index
    %c32_60 = arith.constant 32 : index
    %222 = vector.load %arg19[%c24_59, %c32_60] : memref<64x64xf32, #tpu.memory_space<vmem>>, vector<8x32xf32>
    tpu.vector_store %arg19[%c24_59, %c32_60], %220 {strides = array<i32>} : memref<64x64xf32, #tpu.memory_space<vmem>>, vector<8x32xf32>,
    %223 = tpu.concatenate %217, %220 in 1 : vector<8x32xf32>, vector<8x32xf32> -> vector<8x64xf32>
    %cst_61 = arith.constant dense<0.000000e+00> : vector<8x256xf32>
    %224 = tpu.matmul %223, %8, %cst_61 {dimension_numbers = #tpu.dot_dimension_numbers<[1], [0], [0], [1], [0, 0, 1, 1], [], []>} : vector<8x64xf32>, vector<64x256xf32>, vector<8x256xf32> -> vector<8x256xf32>
    %225 = vector.extract_strided_slice %224 {offsets = [0, 0], sizes = [8, 128], strides = [1, 1]} : vector<8x256xf32> to vector<8x128xf32>
    %c40_62 = arith.constant 40 : index
    %c0_63 = arith.constant 0 : index
    %226 = vector.load %arg18[%c40_62, %c0_63] : memref<64x256xf32, #tpu.memory_space<vmem>>, vector<8x128xf32>
    %227 = arith.addf %225, %226 : vector<8x128xf32>
    %228 = vector.extract_strided_slice %224 {offsets = [0, 128], sizes = [8, 128], strides = [1, 1]} : vector<8x256xf32> to vector<8x128xf32>
    %c16_64 = arith.constant 16 : index
    %c128_65 = arith.constant 128 : index
    %229 = vector.load %arg18[%c16_64, %c128_65] : memref<64x256xf32, #tpu.memory_space<vmem>>, vector<8x128xf32>
    %230 = arith.addf %228, %229 : vector<8x128xf32>
    %231 = vector.extract_strided_slice %227 {offsets = [0, 0], sizes = [8, 96], strides = [1, 1]} : vector<8x128xf32> to vector<8x96xf32>
    %232 = arith.negf %231 : vector<8x96xf32>
    %233 = math.exp %232 : vector<8x96xf32>
    %cst_66 = arith.constant 1.000000e+00 : f32
    %234 = vector.broadcast %cst_66 : f32 to vector<8x96xf32>
    %235 = arith.addf %234, %233 : vector<8x96xf32>
    %236 = arith.divf %234, %235 : vector<8x96xf32>
    %237 = vector.extract_strided_slice %230 {offsets = [0, 0], sizes = [8, 96], strides = [1, 1]} : vector<8x128xf32> to vector<8x96xf32>
    %238 = arith.negf %237 : vector<8x96xf32>
    %239 = math.exp %238 : vector<8x96xf32>
    %cst_67 = arith.constant 1.000000e+00 : f32
    %240 = vector.broadcast %cst_67 : f32 to vector<8x96xf32>
    %241 = arith.addf %240, %239 : vector<8x96xf32>
    %242 = arith.divf %240, %241 : vector<8x96xf32>
    %243 = vector.extract_strided_slice %236 {offsets = [0, 32], sizes = [8, 32], strides = [1, 1]} : vector<8x96xf32> to vector<8x32xf32>
    %244 = arith.mulf %243, %207 : vector<8x32xf32>
    %245 = vector.extract_strided_slice %236 {offsets = [0, 0], sizes = [8, 32], strides = [1, 1]} : vector<8x96xf32> to vector<8x32xf32>
    %246 = vector.extract_strided_slice %227 {offsets = [0, 96], sizes = [8, 32], strides = [1, 1]} : vector<8x128xf32> to vector<8x32xf32>
    %247 = math.tanh %246 : vector<8x32xf32>
    %248 = arith.mulf %245, %247 : vector<8x32xf32>
    %249 = arith.addf %244, %248 : vector<8x32xf32>
    %250 = vector.extract_strided_slice %242 {offsets = [0, 32], sizes = [8, 32], strides = [1, 1]} : vector<8x96xf32> to vector<8x32xf32>
    %251 = arith.mulf %250, %214 : vector<8x32xf32>
    %252 = vector.extract_strided_slice %242 {offsets = [0, 0], sizes = [8, 32], strides = [1, 1]} : vector<8x96xf32> to vector<8x32xf32>
    %253 = vector.extract_strided_slice %230 {offsets = [0, 96], sizes = [8, 32], strides = [1, 1]} : vector<8x128xf32> to vector<8x32xf32>
    %254 = math.tanh %253 : vector<8x32xf32>
    %255 = arith.mulf %252, %254 : vector<8x32xf32>
    %256 = arith.addf %251, %255 : vector<8x32xf32>
    %257 = vector.extract_strided_slice %236 {offsets = [0, 64], sizes = [8, 32], strides = [1, 1]} : vector<8x96xf32> to vector<8x32xf32>
    %258 = math.tanh %249 : vector<8x32xf32>
    %259 = arith.mulf %257, %258 : vector<8x32xf32>
    %260 = vector.extract_strided_slice %242 {offsets = [0, 64], sizes = [8, 32], strides = [1, 1]} : vector<8x96xf32> to vector<8x32xf32>
    %261 = math.tanh %256 : vector<8x32xf32>
    %262 = arith.mulf %260, %261 : vector<8x32xf32>
    %c40_68 = arith.constant 40 : index
    %c0_69 = arith.constant 0 : index
    %263 = vector.load %arg19[%c40_68, %c0_69] : memref<64x64xf32, #tpu.memory_space<vmem>>, vector<8x32xf32>
    tpu.vector_store %arg19[%c40_68, %c0_69], %259 {strides = array<i32>} : memref<64x64xf32, #tpu.memory_space<vmem>>, vector<8x32xf32>,
    %c16_70 = arith.constant 16 : index
    %c32_71 = arith.constant 32 : index
    %264 = vector.load %arg19[%c16_70, %c32_71] : memref<64x64xf32, #tpu.memory_space<vmem>>, vector<8x32xf32>
    tpu.vector_store %arg19[%c16_70, %c32_71], %262 {strides = array<i32>} : memref<64x64xf32, #tpu.memory_space<vmem>>, vector<8x32xf32>,
    %265 = tpu.concatenate %259, %262 in 1 : vector<8x32xf32>, vector<8x32xf32> -> vector<8x64xf32>
    %cst_72 = arith.constant dense<0.000000e+00> : vector<8x256xf32>
    %266 = tpu.matmul %265, %8, %cst_72 {dimension_numbers = #tpu.dot_dimension_numbers<[1], [0], [0], [1], [0, 0, 1, 1], [], []>} : vector<8x64xf32>, vector<64x256xf32>, vector<8x256xf32> -> vector<8x256xf32>
    %267 = vector.extract_strided_slice %266 {offsets = [0, 0], sizes = [8, 128], strides = [1, 1]} : vector<8x256xf32> to vector<8x128xf32>
    %c48_73 = arith.constant 48 : index
    %c0_74 = arith.constant 0 : index
    %268 = vector.load %arg18[%c48_73, %c0_74] : memref<64x256xf32, #tpu.memory_space<vmem>>, vector<8x128xf32>
    %269 = arith.addf %267, %268 : vector<8x128xf32>
    %270 = vector.extract_strided_slice %266 {offsets = [0, 128], sizes = [8, 128], strides = [1, 1]} : vector<8x256xf32> to vector<8x128xf32>
    %c8_75 = arith.constant 8 : index
    %c128_76 = arith.constant 128 : index
    %271 = vector.load %arg18[%c8_75, %c128_76] : memref<64x256xf32, #tpu.memory_space<vmem>>, vector<8x128xf32>
    %272 = arith.addf %270, %271 : vector<8x128xf32>
    %273 = vector.extract_strided_slice %269 {offsets = [0, 0], sizes = [8, 96], strides = [1, 1]} : vector<8x128xf32> to vector<8x96xf32>
    %274 = arith.negf %273 : vector<8x96xf32>
    %275 = math.exp %274 : vector<8x96xf32>
    %cst_77 = arith.constant 1.000000e+00 : f32
    %276 = vector.broadcast %cst_77 : f32 to vector<8x96xf32>
    %277 = arith.addf %276, %275 : vector<8x96xf32>
    %278 = arith.divf %276, %277 : vector<8x96xf32>
    %279 = vector.extract_strided_slice %272 {offsets = [0, 0], sizes = [8, 96], strides = [1, 1]} : vector<8x128xf32> to vector<8x96xf32>
    %280 = arith.negf %279 : vector<8x96xf32>
    %281 = math.exp %280 : vector<8x96xf32>
    %cst_78 = arith.constant 1.000000e+00 : f32
    %282 = vector.broadcast %cst_78 : f32 to vector<8x96xf32>
    %283 = arith.addf %282, %281 : vector<8x96xf32>
    %284 = arith.divf %282, %283 : vector<8x96xf32>
    %285 = vector.extract_strided_slice %278 {offsets = [0, 32], sizes = [8, 32], strides = [1, 1]} : vector<8x96xf32> to vector<8x32xf32>
    %286 = arith.mulf %285, %249 : vector<8x32xf32>
    %287 = vector.extract_strided_slice %278 {offsets = [0, 0], sizes = [8, 32], strides = [1, 1]} : vector<8x96xf32> to vector<8x32xf32>
    %288 = vector.extract_strided_slice %269 {offsets = [0, 96], sizes = [8, 32], strides = [1, 1]} : vector<8x128xf32> to vector<8x32xf32>
    %289 = math.tanh %288 : vector<8x32xf32>
    %290 = arith.mulf %287, %289 : vector<8x32xf32>
    %291 = arith.addf %286, %290 : vector<8x32xf32>
    %292 = vector.extract_strided_slice %284 {offsets = [0, 32], sizes = [8, 32], strides = [1, 1]} : vector<8x96xf32> to vector<8x32xf32>
    %293 = arith.mulf %292, %256 : vector<8x32xf32>
    %294 = vector.extract_strided_slice %284 {offsets = [0, 0], sizes = [8, 32], strides = [1, 1]} : vector<8x96xf32> to vector<8x32xf32>
    %295 = vector.extract_strided_slice %272 {offsets = [0, 96], sizes = [8, 32], strides = [1, 1]} : vector<8x128xf32> to vector<8x32xf32>
    %296 = math.tanh %295 : vector<8x32xf32>
    %297 = arith.mulf %294, %296 : vector<8x32xf32>
    %298 = arith.addf %293, %297 : vector<8x32xf32>
    %299 = vector.extract_strided_slice %278 {offsets = [0, 64], sizes = [8, 32], strides = [1, 1]} : vector<8x96xf32> to vector<8x32xf32>
    %300 = math.tanh %291 : vector<8x32xf32>
    %301 = arith.mulf %299, %300 : vector<8x32xf32>
    %302 = vector.extract_strided_slice %284 {offsets = [0, 64], sizes = [8, 32], strides = [1, 1]} : vector<8x96xf32> to vector<8x32xf32>
    %303 = math.tanh %298 : vector<8x32xf32>
    %304 = arith.mulf %302, %303 : vector<8x32xf32>
    %c48_79 = arith.constant 48 : index
    %c0_80 = arith.constant 0 : index
    %305 = vector.load %arg19[%c48_79, %c0_80] : memref<64x64xf32, #tpu.memory_space<vmem>>, vector<8x32xf32>
    tpu.vector_store %arg19[%c48_79, %c0_80], %301 {strides = array<i32>} : memref<64x64xf32, #tpu.memory_space<vmem>>, vector<8x32xf32>,
    %c8_81 = arith.constant 8 : index
    %c32_82 = arith.constant 32 : index
    %306 = vector.load %arg19[%c8_81, %c32_82] : memref<64x64xf32, #tpu.memory_space<vmem>>, vector<8x32xf32>
    tpu.vector_store %arg19[%c8_81, %c32_82], %304 {strides = array<i32>} : memref<64x64xf32, #tpu.memory_space<vmem>>, vector<8x32xf32>,
    %307 = tpu.concatenate %301, %304 in 1 : vector<8x32xf32>, vector<8x32xf32> -> vector<8x64xf32>
    %cst_83 = arith.constant dense<0.000000e+00> : vector<8x256xf32>
    %308 = tpu.matmul %307, %8, %cst_83 {dimension_numbers = #tpu.dot_dimension_numbers<[1], [0], [0], [1], [0, 0, 1, 1], [], []>} : vector<8x64xf32>, vector<64x256xf32>, vector<8x256xf32> -> vector<8x256xf32>
    %309 = vector.extract_strided_slice %308 {offsets = [0, 0], sizes = [8, 128], strides = [1, 1]} : vector<8x256xf32> to vector<8x128xf32>
    %c56_84 = arith.constant 56 : index
    %c0_85 = arith.constant 0 : index
    %310 = vector.load %arg18[%c56_84, %c0_85] : memref<64x256xf32, #tpu.memory_space<vmem>>, vector<8x128xf32>
    %311 = arith.addf %309, %310 : vector<8x128xf32>
    %312 = vector.extract_strided_slice %308 {offsets = [0, 128], sizes = [8, 128], strides = [1, 1]} : vector<8x256xf32> to vector<8x128xf32>
    %c0_86 = arith.constant 0 : index
    %c128_87 = arith.constant 128 : index
    %313 = vector.load %arg18[%c0_86, %c128_87] : memref<64x256xf32, #tpu.memory_space<vmem>>, vector<8x128xf32>
    %314 = arith.addf %312, %313 : vector<8x128xf32>
    %315 = vector.extract_strided_slice %311 {offsets = [0, 0], sizes = [8, 96], strides = [1, 1]} : vector<8x128xf32> to vector<8x96xf32>
    %316 = arith.negf %315 : vector<8x96xf32>
    %317 = math.exp %316 : vector<8x96xf32>
    %cst_88 = arith.constant 1.000000e+00 : f32
    %318 = vector.broadcast %cst_88 : f32 to vector<8x96xf32>
    %319 = arith.addf %318, %317 : vector<8x96xf32>
    %320 = arith.divf %318, %319 : vector<8x96xf32>
    %321 = vector.extract_strided_slice %314 {offsets = [0, 0], sizes = [8, 96], strides = [1, 1]} : vector<8x128xf32> to vector<8x96xf32>
    %322 = arith.negf %321 : vector<8x96xf32>
    %323 = math.exp %322 : vector<8x96xf32>
    %cst_89 = arith.constant 1.000000e+00 : f32
    %324 = vector.broadcast %cst_89 : f32 to vector<8x96xf32>
    %325 = arith.addf %324, %323 : vector<8x96xf32>
    %326 = arith.divf %324, %325 : vector<8x96xf32>
    %327 = vector.extract_strided_slice %320 {offsets = [0, 32], sizes = [8, 32], strides = [1, 1]} : vector<8x96xf32> to vector<8x32xf32>
    %328 = arith.mulf %327, %291 : vector<8x32xf32>
    %329 = vector.extract_strided_slice %320 {offsets = [0, 0], sizes = [8, 32], strides = [1, 1]} : vector<8x96xf32> to vector<8x32xf32>
    %330 = vector.extract_strided_slice %311 {offsets = [0, 96], sizes = [8, 32], strides = [1, 1]} : vector<8x128xf32> to vector<8x32xf32>
    %331 = math.tanh %330 : vector<8x32xf32>
    %332 = arith.mulf %329, %331 : vector<8x32xf32>
    %333 = arith.addf %328, %332 : vector<8x32xf32>
    %334 = vector.extract_strided_slice %326 {offsets = [0, 32], sizes = [8, 32], strides = [1, 1]} : vector<8x96xf32> to vector<8x32xf32>
    %335 = arith.mulf %334, %298 : vector<8x32xf32>
    %336 = vector.extract_strided_slice %326 {offsets = [0, 0], sizes = [8, 32], strides = [1, 1]} : vector<8x96xf32> to vector<8x32xf32>
    %337 = vector.extract_strided_slice %314 {offsets = [0, 96], sizes = [8, 32], strides = [1, 1]} : vector<8x128xf32> to vector<8x32xf32>
    %338 = math.tanh %337 : vector<8x32xf32>
    %339 = arith.mulf %336, %338 : vector<8x32xf32>
    %340 = arith.addf %335, %339 : vector<8x32xf32>
    %341 = vector.extract_strided_slice %320 {offsets = [0, 64], sizes = [8, 32], strides = [1, 1]} : vector<8x96xf32> to vector<8x32xf32>
    %342 = math.tanh %333 : vector<8x32xf32>
    %343 = arith.mulf %341, %342 : vector<8x32xf32>
    %344 = vector.extract_strided_slice %326 {offsets = [0, 64], sizes = [8, 32], strides = [1, 1]} : vector<8x96xf32> to vector<8x32xf32>
    %345 = math.tanh %340 : vector<8x32xf32>
    %346 = arith.mulf %344, %345 : vector<8x32xf32>
    %c56_90 = arith.constant 56 : index
    %c0_91 = arith.constant 0 : index
    %347 = vector.load %arg19[%c56_90, %c0_91] : memref<64x64xf32, #tpu.memory_space<vmem>>, vector<8x32xf32>
    tpu.vector_store %arg19[%c56_90, %c0_91], %343 {strides = array<i32>} : memref<64x64xf32, #tpu.memory_space<vmem>>, vector<8x32xf32>,
    %c0_92 = arith.constant 0 : index
    %c32_93 = arith.constant 32 : index
    %348 = vector.load %arg19[%c0_92, %c32_93] : memref<64x64xf32, #tpu.memory_space<vmem>>, vector<8x32xf32>
    tpu.vector_store %arg19[%c0_92, %c32_93], %346 {strides = array<i32>} : memref<64x64xf32, #tpu.memory_space<vmem>>, vector<8x32xf32>,
    %c0_94 = arith.constant 0 : index
    %c0_95 = arith.constant 0 : index
    %349 = vector.load %arg19[%c0_94, %c0_95] : memref<64x64xf32, #tpu.memory_space<vmem>>, vector<64x64xf32>
    %c1 = arith.constant 1 : index
    %c0_96 = arith.constant 0 : index
    %c0_97 = arith.constant 0 : index
    %350 = vector.load %arg4[%c1, %c0_96, %c0_97] : memref<3x64x256xf32, #tpu.memory_space<vmem>>, vector<1x64x256xf32>
    %351 = vector.shape_cast %350 : vector<1x64x256xf32> to vector<64x256xf32>
    %cst_98 = arith.constant dense<0.000000e+00> : vector<64x256xf32>
    %352 = tpu.matmul %349, %351, %cst_98 {dimension_numbers = #tpu.dot_dimension_numbers<[1], [0], [0], [1], [0, 0, 1, 1], [], []>} : vector<64x64xf32>, vector<64x256xf32>, vector<64x256xf32> -> vector<64x256xf32>
    %c1_99 = arith.constant 1 : index
    %c0_100 = arith.constant 0 : index
    %353 = vector.load %arg16[%c1_99, %c0_100] : memref<16x384xf32, #tpu.memory_space<vmem>>, vector<1x256xf32>
    %354 = vector.broadcast %353 : vector<1x256xf32> to vector<64x256xf32>
    %355 = arith.addf %352, %354 : vector<64x256xf32>
    %c0_101 = arith.constant 0 : index
    %c0_102 = arith.constant 0 : index
    %356 = vector.load %arg18[%c0_101, %c0_102] : memref<64x256xf32, #tpu.memory_space<vmem>>, vector<64x256xf32>
    tpu.vector_store %arg18[%c0_101, %c0_102], %355 {strides = array<i32>} : memref<64x256xf32, #tpu.memory_space<vmem>>, vector<64x256xf32>,
    %c2 = arith.constant 2 : index
    %c0_103 = arith.constant 0 : index
    %c0_104 = arith.constant 0 : index
    %357 = vector.load %arg4[%c2, %c0_103, %c0_104] : memref<3x64x256xf32, #tpu.memory_space<vmem>>, vector<1x64x256xf32>
    %358 = vector.shape_cast %357 : vector<1x64x256xf32> to vector<64x256xf32>
    %cst_105 = arith.constant 0.000000e+00 : f32
    %359 = vector.broadcast %cst_105 : f32 to vector<8x32xf32>
    %cst_106 = arith.constant 0.000000e+00 : f32
    %360 = vector.broadcast %cst_106 : f32 to vector<8x32xf32>
    %cst_107 = arith.constant 0.000000e+00 : f32
    %361 = vector.broadcast %cst_107 : f32 to vector<8x32xf32>
    %cst_108 = arith.constant 0.000000e+00 : f32
    %362 = vector.broadcast %cst_108 : f32 to vector<8x32xf32>
    %363 = tpu.concatenate %359, %360 in 1 : vector<8x32xf32>, vector<8x32xf32> -> vector<8x64xf32>
    %cst_109 = arith.constant dense<0.000000e+00> : vector<8x256xf32>
    %364 = tpu.matmul %363, %358, %cst_109 {dimension_numbers = #tpu.dot_dimension_numbers<[1], [0], [0], [1], [0, 0, 1, 1], [], []>} : vector<8x64xf32>, vector<64x256xf32>, vector<8x256xf32> -> vector<8x256xf32>
    %365 = vector.extract_strided_slice %364 {offsets = [0, 0], sizes = [8, 128], strides = [1, 1]} : vector<8x256xf32> to vector<8x128xf32>
    %c0_110 = arith.constant 0 : index
    %c0_111 = arith.constant 0 : index
    %366 = vector.load %arg18[%c0_110, %c0_111] : memref<64x256xf32, #tpu.memory_space<vmem>>, vector<8x128xf32>
    %367 = arith.addf %365, %366 : vector<8x128xf32>
    %368 = vector.extract_strided_slice %364 {offsets = [0, 128], sizes = [8, 128], strides = [1, 1]} : vector<8x256xf32> to vector<8x128xf32>
    %c56_112 = arith.constant 56 : index
    %c128_113 = arith.constant 128 : index
    %369 = vector.load %arg18[%c56_112, %c128_113] : memref<64x256xf32, #tpu.memory_space<vmem>>, vector<8x128xf32>
    %370 = arith.addf %368, %369 : vector<8x128xf32>
    %371 = vector.extract_strided_slice %367 {offsets = [0, 0], sizes = [8, 96], strides = [1, 1]} : vector<8x128xf32> to vector<8x96xf32>
    %372 = arith.negf %371 : vector<8x96xf32>
    %373 = math.exp %372 : vector<8x96xf32>
    %cst_114 = arith.constant 1.000000e+00 : f32
    %374 = vector.broadcast %cst_114 : f32 to vector<8x96xf32>
    %375 = arith.addf %374, %373 : vector<8x96xf32>
    %376 = arith.divf %374, %375 : vector<8x96xf32>
    %377 = vector.extract_strided_slice %370 {offsets = [0, 0], sizes = [8, 96], strides = [1, 1]} : vector<8x128xf32> to vector<8x96xf32>
    %378 = arith.negf %377 : vector<8x96xf32>
    %379 = math.exp %378 : vector<8x96xf32>
    %cst_115 = arith.constant 1.000000e+00 : f32
    %380 = vector.broadcast %cst_115 : f32 to vector<8x96xf32>
    %381 = arith.addf %380, %379 : vector<8x96xf32>
    %382 = arith.divf %380, %381 : vector<8x96xf32>
    %383 = vector.extract_strided_slice %376 {offsets = [0, 32], sizes = [8, 32], strides = [1, 1]} : vector<8x96xf32> to vector<8x32xf32>
    %384 = arith.mulf %383, %361 : vector<8x32xf32>
    %385 = vector.extract_strided_slice %376 {offsets = [0, 0], sizes = [8, 32], strides = [1, 1]} : vector<8x96xf32> to vector<8x32xf32>
    %386 = vector.extract_strided_slice %367 {offsets = [0, 96], sizes = [8, 32], strides = [1, 1]} : vector<8x128xf32> to vector<8x32xf32>
    %387 = math.tanh %386 : vector<8x32xf32>
    %388 = arith.mulf %385, %387 : vector<8x32xf32>
    %389 = arith.addf %384, %388 : vector<8x32xf32>
    %390 = vector.extract_strided_slice %382 {offsets = [0, 32], sizes = [8, 32], strides = [1, 1]} : vector<8x96xf32> to vector<8x32xf32>
    %391 = arith.mulf %390, %362 : vector<8x32xf32>
    %392 = vector.extract_strided_slice %382 {offsets = [0, 0], sizes = [8, 32], strides = [1, 1]} : vector<8x96xf32> to vector<8x32xf32>
    %393 = vector.extract_strided_slice %370 {offsets = [0, 96], sizes = [8, 32], strides = [1, 1]} : vector<8x128xf32> to vector<8x32xf32>
    %394 = math.tanh %393 : vector<8x32xf32>
    %395 = arith.mulf %392, %394 : vector<8x32xf32>
    %396 = arith.addf %391, %395 : vector<8x32xf32>
    %397 = vector.extract_strided_slice %376 {offsets = [0, 64], sizes = [8, 32], strides = [1, 1]} : vector<8x96xf32> to vector<8x32xf32>
    %398 = math.tanh %389 : vector<8x32xf32>
    %399 = arith.mulf %397, %398 : vector<8x32xf32>
    %400 = vector.extract_strided_slice %382 {offsets = [0, 64], sizes = [8, 32], strides = [1, 1]} : vector<8x96xf32> to vector<8x32xf32>
    %401 = math.tanh %396 : vector<8x32xf32>
    %402 = arith.mulf %400, %401 : vector<8x32xf32>
    %c0_116 = arith.constant 0 : index
    %c0_117 = arith.constant 0 : index
    %403 = vector.load %arg20[%c0_116, %c0_117] : memref<64x64xf32, #tpu.memory_space<vmem>>, vector<8x32xf32>
    tpu.vector_store %arg20[%c0_116, %c0_117], %399 {strides = array<i32>} : memref<64x64xf32, #tpu.memory_space<vmem>>, vector<8x32xf32>,
    %c56_118 = arith.constant 56 : index
    %c32_119 = arith.constant 32 : index
    %404 = vector.load %arg20[%c56_118, %c32_119] : memref<64x64xf32, #tpu.memory_space<vmem>>, vector<8x32xf32>
    tpu.vector_store %arg20[%c56_118, %c32_119], %402 {strides = array<i32>} : memref<64x64xf32, #tpu.memory_space<vmem>>, vector<8x32xf32>,
    %405 = tpu.concatenate %399, %402 in 1 : vector<8x32xf32>, vector<8x32xf32> -> vector<8x64xf32>
    %cst_120 = arith.constant dense<0.000000e+00> : vector<8x256xf32>
    %406 = tpu.matmul %405, %358, %cst_120 {dimension_numbers = #tpu.dot_dimension_numbers<[1], [0], [0], [1], [0, 0, 1, 1], [], []>} : vector<8x64xf32>, vector<64x256xf32>, vector<8x256xf32> -> vector<8x256xf32>
    %407 = vector.extract_strided_slice %406 {offsets = [0, 0], sizes = [8, 128], strides = [1, 1]} : vector<8x256xf32> to vector<8x128xf32>
    %c8_121 = arith.constant 8 : index
    %c0_122 = arith.constant 0 : index
    %408 = vector.load %arg18[%c8_121, %c0_122] : memref<64x256xf32, #tpu.memory_space<vmem>>, vector<8x128xf32>
    %409 = arith.addf %407, %408 : vector<8x128xf32>
    %410 = vector.extract_strided_slice %406 {offsets = [0, 128], sizes = [8, 128], strides = [1, 1]} : vector<8x256xf32> to vector<8x128xf32>
    %c48_123 = arith.constant 48 : index
    %c128_124 = arith.constant 128 : index
    %411 = vector.load %arg18[%c48_123, %c128_124] : memref<64x256xf32, #tpu.memory_space<vmem>>, vector<8x128xf32>
    %412 = arith.addf %410, %411 : vector<8x128xf32>
    %413 = vector.extract_strided_slice %409 {offsets = [0, 0], sizes = [8, 96], strides = [1, 1]} : vector<8x128xf32> to vector<8x96xf32>
    %414 = arith.negf %413 : vector<8x96xf32>
    %415 = math.exp %414 : vector<8x96xf32>
    %cst_125 = arith.constant 1.000000e+00 : f32
    %416 = vector.broadcast %cst_125 : f32 to vector<8x96xf32>
    %417 = arith.addf %416, %415 : vector<8x96xf32>
    %418 = arith.divf %416, %417 : vector<8x96xf32>
    %419 = vector.extract_strided_slice %412 {offsets = [0, 0], sizes = [8, 96], strides = [1, 1]} : vector<8x128xf32> to vector<8x96xf32>
    %420 = arith.negf %419 : vector<8x96xf32>
    %421 = math.exp %420 : vector<8x96xf32>
    %cst_126 = arith.constant 1.000000e+00 : f32
    %422 = vector.broadcast %cst_126 : f32 to vector<8x96xf32>
    %423 = arith.addf %422, %421 : vector<8x96xf32>
    %424 = arith.divf %422, %423 : vector<8x96xf32>
    %425 = vector.extract_strided_slice %418 {offsets = [0, 32], sizes = [8, 32], strides = [1, 1]} : vector<8x96xf32> to vector<8x32xf32>
    %426 = arith.mulf %425, %389 : vector<8x32xf32>
    %427 = vector.extract_strided_slice %418 {offsets = [0, 0], sizes = [8, 32], strides = [1, 1]} : vector<8x96xf32> to vector<8x32xf32>
    %428 = vector.extract_strided_slice %409 {offsets = [0, 96], sizes = [8, 32], strides = [1, 1]} : vector<8x128xf32> to vector<8x32xf32>
    %429 = math.tanh %428 : vector<8x32xf32>
    %430 = arith.mulf %427, %429 : vector<8x32xf32>
    %431 = arith.addf %426, %430 : vector<8x32xf32>
    %432 = vector.extract_strided_slice %424 {offsets = [0, 32], sizes = [8, 32], strides = [1, 1]} : vector<8x96xf32> to vector<8x32xf32>
    %433 = arith.mulf %432, %396 : vector<8x32xf32>
    %434 = vector.extract_strided_slice %424 {offsets = [0, 0], sizes = [8, 32], strides = [1, 1]} : vector<8x96xf32> to vector<8x32xf32>
    %435 = vector.extract_strided_slice %412 {offsets = [0, 96], sizes = [8, 32], strides = [1, 1]} : vector<8x128xf32> to vector<8x32xf32>
    %436 = math.tanh %435 : vector<8x32xf32>
    %437 = arith.mulf %434, %436 : vector<8x32xf32>
    %438 = arith.addf %433, %437 : vector<8x32xf32>
    %439 = vector.extract_strided_slice %418 {offsets = [0, 64], sizes = [8, 32], strides = [1, 1]} : vector<8x96xf32> to vector<8x32xf32>
    %440 = math.tanh %431 : vector<8x32xf32>
    %441 = arith.mulf %439, %440 : vector<8x32xf32>
    %442 = vector.extract_strided_slice %424 {offsets = [0, 64], sizes = [8, 32], strides = [1, 1]} : vector<8x96xf32> to vector<8x32xf32>
    %443 = math.tanh %438 : vector<8x32xf32>
    %444 = arith.mulf %442, %443 : vector<8x32xf32>
    %c8_127 = arith.constant 8 : index
    %c0_128 = arith.constant 0 : index
    %445 = vector.load %arg20[%c8_127, %c0_128] : memref<64x64xf32, #tpu.memory_space<vmem>>, vector<8x32xf32>
    tpu.vector_store %arg20[%c8_127, %c0_128], %441 {strides = array<i32>} : memref<64x64xf32, #tpu.memory_space<vmem>>, vector<8x32xf32>,
    %c48_129 = arith.constant 48 : index
    %c32_130 = arith.constant 32 : index
    %446 = vector.load %arg20[%c48_129, %c32_130] : memref<64x64xf32, #tpu.memory_space<vmem>>, vector<8x32xf32>
    tpu.vector_store %arg20[%c48_129, %c32_130], %444 {strides = array<i32>} : memref<64x64xf32, #tpu.memory_space<vmem>>, vector<8x32xf32>,
    %447 = tpu.concatenate %441, %444 in 1 : vector<8x32xf32>, vector<8x32xf32> -> vector<8x64xf32>
    %cst_131 = arith.constant dense<0.000000e+00> : vector<8x256xf32>
    %448 = tpu.matmul %447, %358, %cst_131 {dimension_numbers = #tpu.dot_dimension_numbers<[1], [0], [0], [1], [0, 0, 1, 1], [], []>} : vector<8x64xf32>, vector<64x256xf32>, vector<8x256xf32> -> vector<8x256xf32>
    %449 = vector.extract_strided_slice %448 {offsets = [0, 0], sizes = [8, 128], strides = [1, 1]} : vector<8x256xf32> to vector<8x128xf32>
    %c16_132 = arith.constant 16 : index
    %c0_133 = arith.constant 0 : index
    %450 = vector.load %arg18[%c16_132, %c0_133] : memref<64x256xf32, #tpu.memory_space<vmem>>, vector<8x128xf32>
    %451 = arith.addf %449, %450 : vector<8x128xf32>
    %452 = vector.extract_strided_slice %448 {offsets = [0, 128], sizes = [8, 128], strides = [1, 1]} : vector<8x256xf32> to vector<8x128xf32>
    %c40_134 = arith.constant 40 : index
    %c128_135 = arith.constant 128 : index
    %453 = vector.load %arg18[%c40_134, %c128_135] : memref<64x256xf32, #tpu.memory_space<vmem>>, vector<8x128xf32>
    %454 = arith.addf %452, %453 : vector<8x128xf32>
    %455 = vector.extract_strided_slice %451 {offsets = [0, 0], sizes = [8, 96], strides = [1, 1]} : vector<8x128xf32> to vector<8x96xf32>
    %456 = arith.negf %455 : vector<8x96xf32>
    %457 = math.exp %456 : vector<8x96xf32>
    %cst_136 = arith.constant 1.000000e+00 : f32
    %458 = vector.broadcast %cst_136 : f32 to vector<8x96xf32>
    %459 = arith.addf %458, %457 : vector<8x96xf32>
    %460 = arith.divf %458, %459 : vector<8x96xf32>
    %461 = vector.extract_strided_slice %454 {offsets = [0, 0], sizes = [8, 96], strides = [1, 1]} : vector<8x128xf32> to vector<8x96xf32>
    %462 = arith.negf %461 : vector<8x96xf32>
    %463 = math.exp %462 : vector<8x96xf32>
    %cst_137 = arith.constant 1.000000e+00 : f32
    %464 = vector.broadcast %cst_137 : f32 to vector<8x96xf32>
    %465 = arith.addf %464, %463 : vector<8x96xf32>
    %466 = arith.divf %464, %465 : vector<8x96xf32>
    %467 = vector.extract_strided_slice %460 {offsets = [0, 32], sizes = [8, 32], strides = [1, 1]} : vector<8x96xf32> to vector<8x32xf32>
    %468 = arith.mulf %467, %431 : vector<8x32xf32>
    %469 = vector.extract_strided_slice %460 {offsets = [0, 0], sizes = [8, 32], strides = [1, 1]} : vector<8x96xf32> to vector<8x32xf32>
    %470 = vector.extract_strided_slice %451 {offsets = [0, 96], sizes = [8, 32], strides = [1, 1]} : vector<8x128xf32> to vector<8x32xf32>
    %471 = math.tanh %470 : vector<8x32xf32>
    %472 = arith.mulf %469, %471 : vector<8x32xf32>
    %473 = arith.addf %468, %472 : vector<8x32xf32>
    %474 = vector.extract_strided_slice %466 {offsets = [0, 32], sizes = [8, 32], strides = [1, 1]} : vector<8x96xf32> to vector<8x32xf32>
    %475 = arith.mulf %474, %438 : vector<8x32xf32>
    %476 = vector.extract_strided_slice %466 {offsets = [0, 0], sizes = [8, 32], strides = [1, 1]} : vector<8x96xf32> to vector<8x32xf32>
    %477 = vector.extract_strided_slice %454 {offsets = [0, 96], sizes = [8, 32], strides = [1, 1]} : vector<8x128xf32> to vector<8x32xf32>
    %478 = math.tanh %477 : vector<8x32xf32>
    %479 = arith.mulf %476, %478 : vector<8x32xf32>
    %480 = arith.addf %475, %479 : vector<8x32xf32>
    %481 = vector.extract_strided_slice %460 {offsets = [0, 64], sizes = [8, 32], strides = [1, 1]} : vector<8x96xf32> to vector<8x32xf32>
    %482 = math.tanh %473 : vector<8x32xf32>
    %483 = arith.mulf %481, %482 : vector<8x32xf32>
    %484 = vector.extract_strided_slice %466 {offsets = [0, 64], sizes = [8, 32], strides = [1, 1]} : vector<8x96xf32> to vector<8x32xf32>
    %485 = math.tanh %480 : vector<8x32xf32>
    %486 = arith.mulf %484, %485 : vector<8x32xf32>
    %c16_138 = arith.constant 16 : index
    %c0_139 = arith.constant 0 : index
    %487 = vector.load %arg20[%c16_138, %c0_139] : memref<64x64xf32, #tpu.memory_space<vmem>>, vector<8x32xf32>
    tpu.vector_store %arg20[%c16_138, %c0_139], %483 {strides = array<i32>} : memref<64x64xf32, #tpu.memory_space<vmem>>, vector<8x32xf32>,
    %c40_140 = arith.constant 40 : index
    %c32_141 = arith.constant 32 : index
    %488 = vector.load %arg20[%c40_140, %c32_141] : memref<64x64xf32, #tpu.memory_space<vmem>>, vector<8x32xf32>
    tpu.vector_store %arg20[%c40_140, %c32_141], %486 {strides = array<i32>} : memref<64x64xf32, #tpu.memory_space<vmem>>, vector<8x32xf32>,
    %489 = tpu.concatenate %483, %486 in 1 : vector<8x32xf32>, vector<8x32xf32> -> vector<8x64xf32>
    %cst_142 = arith.constant dense<0.000000e+00> : vector<8x256xf32>
    %490 = tpu.matmul %489, %358, %cst_142 {dimension_numbers = #tpu.dot_dimension_numbers<[1], [0], [0], [1], [0, 0, 1, 1], [], []>} : vector<8x64xf32>, vector<64x256xf32>, vector<8x256xf32> -> vector<8x256xf32>
    %491 = vector.extract_strided_slice %490 {offsets = [0, 0], sizes = [8, 128], strides = [1, 1]} : vector<8x256xf32> to vector<8x128xf32>
    %c24_143 = arith.constant 24 : index
    %c0_144 = arith.constant 0 : index
    %492 = vector.load %arg18[%c24_143, %c0_144] : memref<64x256xf32, #tpu.memory_space<vmem>>, vector<8x128xf32>
    %493 = arith.addf %491, %492 : vector<8x128xf32>
    %494 = vector.extract_strided_slice %490 {offsets = [0, 128], sizes = [8, 128], strides = [1, 1]} : vector<8x256xf32> to vector<8x128xf32>
    %c32_145 = arith.constant 32 : index
    %c128_146 = arith.constant 128 : index
    %495 = vector.load %arg18[%c32_145, %c128_146] : memref<64x256xf32, #tpu.memory_space<vmem>>, vector<8x128xf32>
    %496 = arith.addf %494, %495 : vector<8x128xf32>
    %497 = vector.extract_strided_slice %493 {offsets = [0, 0], sizes = [8, 96], strides = [1, 1]} : vector<8x128xf32> to vector<8x96xf32>
    %498 = arith.negf %497 : vector<8x96xf32>
    %499 = math.exp %498 : vector<8x96xf32>
    %cst_147 = arith.constant 1.000000e+00 : f32
    %500 = vector.broadcast %cst_147 : f32 to vector<8x96xf32>
    %501 = arith.addf %500, %499 : vector<8x96xf32>
    %502 = arith.divf %500, %501 : vector<8x96xf32>
    %503 = vector.extract_strided_slice %496 {offsets = [0, 0], sizes = [8, 96], strides = [1, 1]} : vector<8x128xf32> to vector<8x96xf32>
    %504 = arith.negf %503 : vector<8x96xf32>
    %505 = math.exp %504 : vector<8x96xf32>
    %cst_148 = arith.constant 1.000000e+00 : f32
    %506 = vector.broadcast %cst_148 : f32 to vector<8x96xf32>
    %507 = arith.addf %506, %505 : vector<8x96xf32>
    %508 = arith.divf %506, %507 : vector<8x96xf32>
    %509 = vector.extract_strided_slice %502 {offsets = [0, 32], sizes = [8, 32], strides = [1, 1]} : vector<8x96xf32> to vector<8x32xf32>
    %510 = arith.mulf %509, %473 : vector<8x32xf32>
    %511 = vector.extract_strided_slice %502 {offsets = [0, 0], sizes = [8, 32], strides = [1, 1]} : vector<8x96xf32> to vector<8x32xf32>
    %512 = vector.extract_strided_slice %493 {offsets = [0, 96], sizes = [8, 32], strides = [1, 1]} : vector<8x128xf32> to vector<8x32xf32>
    %513 = math.tanh %512 : vector<8x32xf32>
    %514 = arith.mulf %511, %513 : vector<8x32xf32>
    %515 = arith.addf %510, %514 : vector<8x32xf32>
    %516 = vector.extract_strided_slice %508 {offsets = [0, 32], sizes = [8, 32], strides = [1, 1]} : vector<8x96xf32> to vector<8x32xf32>
    %517 = arith.mulf %516, %480 : vector<8x32xf32>
    %518 = vector.extract_strided_slice %508 {offsets = [0, 0], sizes = [8, 32], strides = [1, 1]} : vector<8x96xf32> to vector<8x32xf32>
    %519 = vector.extract_strided_slice %496 {offsets = [0, 96], sizes = [8, 32], strides = [1, 1]} : vector<8x128xf32> to vector<8x32xf32>
    %520 = math.tanh %519 : vector<8x32xf32>
    %521 = arith.mulf %518, %520 : vector<8x32xf32>
    %522 = arith.addf %517, %521 : vector<8x32xf32>
    %523 = vector.extract_strided_slice %502 {offsets = [0, 64], sizes = [8, 32], strides = [1, 1]} : vector<8x96xf32> to vector<8x32xf32>
    %524 = math.tanh %515 : vector<8x32xf32>
    %525 = arith.mulf %523, %524 : vector<8x32xf32>
    %526 = vector.extract_strided_slice %508 {offsets = [0, 64], sizes = [8, 32], strides = [1, 1]} : vector<8x96xf32> to vector<8x32xf32>
    %527 = math.tanh %522 : vector<8x32xf32>
    %528 = arith.mulf %526, %527 : vector<8x32xf32>
    %c24_149 = arith.constant 24 : index
    %c0_150 = arith.constant 0 : index
    %529 = vector.load %arg20[%c24_149, %c0_150] : memref<64x64xf32, #tpu.memory_space<vmem>>, vector<8x32xf32>
    tpu.vector_store %arg20[%c24_149, %c0_150], %525 {strides = array<i32>} : memref<64x64xf32, #tpu.memory_space<vmem>>, vector<8x32xf32>,
    %c32_151 = arith.constant 32 : index
    %c32_152 = arith.constant 32 : index
    %530 = vector.load %arg20[%c32_151, %c32_152] : memref<64x64xf32, #tpu.memory_space<vmem>>, vector<8x32xf32>
    tpu.vector_store %arg20[%c32_151, %c32_152], %528 {strides = array<i32>} : memref<64x64xf32, #tpu.memory_space<vmem>>, vector<8x32xf32>,
    %531 = tpu.concatenate %525, %528 in 1 : vector<8x32xf32>, vector<8x32xf32> -> vector<8x64xf32>
    %cst_153 = arith.constant dense<0.000000e+00> : vector<8x256xf32>
    %532 = tpu.matmul %531, %358, %cst_153 {dimension_numbers = #tpu.dot_dimension_numbers<[1], [0], [0], [1], [0, 0, 1, 1], [], []>} : vector<8x64xf32>, vector<64x256xf32>, vector<8x256xf32> -> vector<8x256xf32>
    %533 = vector.extract_strided_slice %532 {offsets = [0, 0], sizes = [8, 128], strides = [1, 1]} : vector<8x256xf32> to vector<8x128xf32>
    %c32_154 = arith.constant 32 : index
    %c0_155 = arith.constant 0 : index
    %534 = vector.load %arg18[%c32_154, %c0_155] : memref<64x256xf32, #tpu.memory_space<vmem>>, vector<8x128xf32>
    %535 = arith.addf %533, %534 : vector<8x128xf32>
    %536 = vector.extract_strided_slice %532 {offsets = [0, 128], sizes = [8, 128], strides = [1, 1]} : vector<8x256xf32> to vector<8x128xf32>
    %c24_156 = arith.constant 24 : index
    %c128_157 = arith.constant 128 : index
    %537 = vector.load %arg18[%c24_156, %c128_157] : memref<64x256xf32, #tpu.memory_space<vmem>>, vector<8x128xf32>
    %538 = arith.addf %536, %537 : vector<8x128xf32>
    %539 = vector.extract_strided_slice %535 {offsets = [0, 0], sizes = [8, 96], strides = [1, 1]} : vector<8x128xf32> to vector<8x96xf32>
    %540 = arith.negf %539 : vector<8x96xf32>
    %541 = math.exp %540 : vector<8x96xf32>
    %cst_158 = arith.constant 1.000000e+00 : f32
    %542 = vector.broadcast %cst_158 : f32 to vector<8x96xf32>
    %543 = arith.addf %542, %541 : vector<8x96xf32>
    %544 = arith.divf %542, %543 : vector<8x96xf32>
    %545 = vector.extract_strided_slice %538 {offsets = [0, 0], sizes = [8, 96], strides = [1, 1]} : vector<8x128xf32> to vector<8x96xf32>
    %546 = arith.negf %545 : vector<8x96xf32>
    %547 = math.exp %546 : vector<8x96xf32>
    %cst_159 = arith.constant 1.000000e+00 : f32
    %548 = vector.broadcast %cst_159 : f32 to vector<8x96xf32>
    %549 = arith.addf %548, %547 : vector<8x96xf32>
    %550 = arith.divf %548, %549 : vector<8x96xf32>
    %551 = vector.extract_strided_slice %544 {offsets = [0, 32], sizes = [8, 32], strides = [1, 1]} : vector<8x96xf32> to vector<8x32xf32>
    %552 = arith.mulf %551, %515 : vector<8x32xf32>
    %553 = vector.extract_strided_slice %544 {offsets = [0, 0], sizes = [8, 32], strides = [1, 1]} : vector<8x96xf32> to vector<8x32xf32>
    %554 = vector.extract_strided_slice %535 {offsets = [0, 96], sizes = [8, 32], strides = [1, 1]} : vector<8x128xf32> to vector<8x32xf32>
    %555 = math.tanh %554 : vector<8x32xf32>
    %556 = arith.mulf %553, %555 : vector<8x32xf32>
    %557 = arith.addf %552, %556 : vector<8x32xf32>
    %558 = vector.extract_strided_slice %550 {offsets = [0, 32], sizes = [8, 32], strides = [1, 1]} : vector<8x96xf32> to vector<8x32xf32>
    %559 = arith.mulf %558, %522 : vector<8x32xf32>
    %560 = vector.extract_strided_slice %550 {offsets = [0, 0], sizes = [8, 32], strides = [1, 1]} : vector<8x96xf32> to vector<8x32xf32>
    %561 = vector.extract_strided_slice %538 {offsets = [0, 96], sizes = [8, 32], strides = [1, 1]} : vector<8x128xf32> to vector<8x32xf32>
    %562 = math.tanh %561 : vector<8x32xf32>
    %563 = arith.mulf %560, %562 : vector<8x32xf32>
    %564 = arith.addf %559, %563 : vector<8x32xf32>
    %565 = vector.extract_strided_slice %544 {offsets = [0, 64], sizes = [8, 32], strides = [1, 1]} : vector<8x96xf32> to vector<8x32xf32>
    %566 = math.tanh %557 : vector<8x32xf32>
    %567 = arith.mulf %565, %566 : vector<8x32xf32>
    %568 = vector.extract_strided_slice %550 {offsets = [0, 64], sizes = [8, 32], strides = [1, 1]} : vector<8x96xf32> to vector<8x32xf32>
    %569 = math.tanh %564 : vector<8x32xf32>
    %570 = arith.mulf %568, %569 : vector<8x32xf32>
    %c32_160 = arith.constant 32 : index
    %c0_161 = arith.constant 0 : index
    %571 = vector.load %arg20[%c32_160, %c0_161] : memref<64x64xf32, #tpu.memory_space<vmem>>, vector<8x32xf32>
    tpu.vector_store %arg20[%c32_160, %c0_161], %567 {strides = array<i32>} : memref<64x64xf32, #tpu.memory_space<vmem>>, vector<8x32xf32>,
    %c24_162 = arith.constant 24 : index
    %c32_163 = arith.constant 32 : index
    %572 = vector.load %arg20[%c24_162, %c32_163] : memref<64x64xf32, #tpu.memory_space<vmem>>, vector<8x32xf32>
    tpu.vector_store %arg20[%c24_162, %c32_163], %570 {strides = array<i32>} : memref<64x64xf32, #tpu.memory_space<vmem>>, vector<8x32xf32>,
    %573 = tpu.concatenate %567, %570 in 1 : vector<8x32xf32>, vector<8x32xf32> -> vector<8x64xf32>
    %cst_164 = arith.constant dense<0.000000e+00> : vector<8x256xf32>
    %574 = tpu.matmul %573, %358, %cst_164 {dimension_numbers = #tpu.dot_dimension_numbers<[1], [0], [0], [1], [0, 0, 1, 1], [], []>} : vector<8x64xf32>, vector<64x256xf32>, vector<8x256xf32> -> vector<8x256xf32>
    %575 = vector.extract_strided_slice %574 {offsets = [0, 0], sizes = [8, 128], strides = [1, 1]} : vector<8x256xf32> to vector<8x128xf32>
    %c40_165 = arith.constant 40 : index
    %c0_166 = arith.constant 0 : index
    %576 = vector.load %arg18[%c40_165, %c0_166] : memref<64x256xf32, #tpu.memory_space<vmem>>, vector<8x128xf32>
    %577 = arith.addf %575, %576 : vector<8x128xf32>
    %578 = vector.extract_strided_slice %574 {offsets = [0, 128], sizes = [8, 128], strides = [1, 1]} : vector<8x256xf32> to vector<8x128xf32>
    %c16_167 = arith.constant 16 : index
    %c128_168 = arith.constant 128 : index
    %579 = vector.load %arg18[%c16_167, %c128_168] : memref<64x256xf32, #tpu.memory_space<vmem>>, vector<8x128xf32>
    %580 = arith.addf %578, %579 : vector<8x128xf32>
    %581 = vector.extract_strided_slice %577 {offsets = [0, 0], sizes = [8, 96], strides = [1, 1]} : vector<8x128xf32> to vector<8x96xf32>
    %582 = arith.negf %581 : vector<8x96xf32>
    %583 = math.exp %582 : vector<8x96xf32>
    %cst_169 = arith.constant 1.000000e+00 : f32
    %584 = vector.broadcast %cst_169 : f32 to vector<8x96xf32>
    %585 = arith.addf %584, %583 : vector<8x96xf32>
    %586 = arith.divf %584, %585 : vector<8x96xf32>
    %587 = vector.extract_strided_slice %580 {offsets = [0, 0], sizes = [8, 96], strides = [1, 1]} : vector<8x128xf32> to vector<8x96xf32>
    %588 = arith.negf %587 : vector<8x96xf32>
    %589 = math.exp %588 : vector<8x96xf32>
    %cst_170 = arith.constant 1.000000e+00 : f32
    %590 = vector.broadcast %cst_170 : f32 to vector<8x96xf32>
    %591 = arith.addf %590, %589 : vector<8x96xf32>
    %592 = arith.divf %590, %591 : vector<8x96xf32>
    %593 = vector.extract_strided_slice %586 {offsets = [0, 32], sizes = [8, 32], strides = [1, 1]} : vector<8x96xf32> to vector<8x32xf32>
    %594 = arith.mulf %593, %557 : vector<8x32xf32>
    %595 = vector.extract_strided_slice %586 {offsets = [0, 0], sizes = [8, 32], strides = [1, 1]} : vector<8x96xf32> to vector<8x32xf32>
    %596 = vector.extract_strided_slice %577 {offsets = [0, 96], sizes = [8, 32], strides = [1, 1]} : vector<8x128xf32> to vector<8x32xf32>
    %597 = math.tanh %596 : vector<8x32xf32>
    %598 = arith.mulf %595, %597 : vector<8x32xf32>
    %599 = arith.addf %594, %598 : vector<8x32xf32>
    %600 = vector.extract_strided_slice %592 {offsets = [0, 32], sizes = [8, 32], strides = [1, 1]} : vector<8x96xf32> to vector<8x32xf32>
    %601 = arith.mulf %600, %564 : vector<8x32xf32>
    %602 = vector.extract_strided_slice %592 {offsets = [0, 0], sizes = [8, 32], strides = [1, 1]} : vector<8x96xf32> to vector<8x32xf32>
    %603 = vector.extract_strided_slice %580 {offsets = [0, 96], sizes = [8, 32], strides = [1, 1]} : vector<8x128xf32> to vector<8x32xf32>
    %604 = math.tanh %603 : vector<8x32xf32>
    %605 = arith.mulf %602, %604 : vector<8x32xf32>
    %606 = arith.addf %601, %605 : vector<8x32xf32>
    %607 = vector.extract_strided_slice %586 {offsets = [0, 64], sizes = [8, 32], strides = [1, 1]} : vector<8x96xf32> to vector<8x32xf32>
    %608 = math.tanh %599 : vector<8x32xf32>
    %609 = arith.mulf %607, %608 : vector<8x32xf32>
    %610 = vector.extract_strided_slice %592 {offsets = [0, 64], sizes = [8, 32], strides = [1, 1]} : vector<8x96xf32> to vector<8x32xf32>
    %611 = math.tanh %606 : vector<8x32xf32>
    %612 = arith.mulf %610, %611 : vector<8x32xf32>
    %c40_171 = arith.constant 40 : index
    %c0_172 = arith.constant 0 : index
    %613 = vector.load %arg20[%c40_171, %c0_172] : memref<64x64xf32, #tpu.memory_space<vmem>>, vector<8x32xf32>
    tpu.vector_store %arg20[%c40_171, %c0_172], %609 {strides = array<i32>} : memref<64x64xf32, #tpu.memory_space<vmem>>, vector<8x32xf32>,
    %c16_173 = arith.constant 16 : index
    %c32_174 = arith.constant 32 : index
    %614 = vector.load %arg20[%c16_173, %c32_174] : memref<64x64xf32, #tpu.memory_space<vmem>>, vector<8x32xf32>
    tpu.vector_store %arg20[%c16_173, %c32_174], %612 {strides = array<i32>} : memref<64x64xf32, #tpu.memory_space<vmem>>, vector<8x32xf32>,
    %615 = tpu.concatenate %609, %612 in 1 : vector<8x32xf32>, vector<8x32xf32> -> vector<8x64xf32>
    %cst_175 = arith.constant dense<0.000000e+00> : vector<8x256xf32>
    %616 = tpu.matmul %615, %358, %cst_175 {dimension_numbers = #tpu.dot_dimension_numbers<[1], [0], [0], [1], [0, 0, 1, 1], [], []>} : vector<8x64xf32>, vector<64x256xf32>, vector<8x256xf32> -> vector<8x256xf32>
    %617 = vector.extract_strided_slice %616 {offsets = [0, 0], sizes = [8, 128], strides = [1, 1]} : vector<8x256xf32> to vector<8x128xf32>
    %c48_176 = arith.constant 48 : index
    %c0_177 = arith.constant 0 : index
    %618 = vector.load %arg18[%c48_176, %c0_177] : memref<64x256xf32, #tpu.memory_space<vmem>>, vector<8x128xf32>
    %619 = arith.addf %617, %618 : vector<8x128xf32>
    %620 = vector.extract_strided_slice %616 {offsets = [0, 128], sizes = [8, 128], strides = [1, 1]} : vector<8x256xf32> to vector<8x128xf32>
    %c8_178 = arith.constant 8 : index
    %c128_179 = arith.constant 128 : index
    %621 = vector.load %arg18[%c8_178, %c128_179] : memref<64x256xf32, #tpu.memory_space<vmem>>, vector<8x128xf32>
    %622 = arith.addf %620, %621 : vector<8x128xf32>
    %623 = vector.extract_strided_slice %619 {offsets = [0, 0], sizes = [8, 96], strides = [1, 1]} : vector<8x128xf32> to vector<8x96xf32>
    %624 = arith.negf %623 : vector<8x96xf32>
    %625 = math.exp %624 : vector<8x96xf32>
    %cst_180 = arith.constant 1.000000e+00 : f32
    %626 = vector.broadcast %cst_180 : f32 to vector<8x96xf32>
    %627 = arith.addf %626, %625 : vector<8x96xf32>
    %628 = arith.divf %626, %627 : vector<8x96xf32>
    %629 = vector.extract_strided_slice %622 {offsets = [0, 0], sizes = [8, 96], strides = [1, 1]} : vector<8x128xf32> to vector<8x96xf32>
    %630 = arith.negf %629 : vector<8x96xf32>
    %631 = math.exp %630 : vector<8x96xf32>
    %cst_181 = arith.constant 1.000000e+00 : f32
    %632 = vector.broadcast %cst_181 : f32 to vector<8x96xf32>
    %633 = arith.addf %632, %631 : vector<8x96xf32>
    %634 = arith.divf %632, %633 : vector<8x96xf32>
    %635 = vector.extract_strided_slice %628 {offsets = [0, 32], sizes = [8, 32], strides = [1, 1]} : vector<8x96xf32> to vector<8x32xf32>
    %636 = arith.mulf %635, %599 : vector<8x32xf32>
    %637 = vector.extract_strided_slice %628 {offsets = [0, 0], sizes = [8, 32], strides = [1, 1]} : vector<8x96xf32> to vector<8x32xf32>
    %638 = vector.extract_strided_slice %619 {offsets = [0, 96], sizes = [8, 32], strides = [1, 1]} : vector<8x128xf32> to vector<8x32xf32>
    %639 = math.tanh %638 : vector<8x32xf32>
    %640 = arith.mulf %637, %639 : vector<8x32xf32>
    %641 = arith.addf %636, %640 : vector<8x32xf32>
    %642 = vector.extract_strided_slice %634 {offsets = [0, 32], sizes = [8, 32], strides = [1, 1]} : vector<8x96xf32> to vector<8x32xf32>
    %643 = arith.mulf %642, %606 : vector<8x32xf32>
    %644 = vector.extract_strided_slice %634 {offsets = [0, 0], sizes = [8, 32], strides = [1, 1]} : vector<8x96xf32> to vector<8x32xf32>
    %645 = vector.extract_strided_slice %622 {offsets = [0, 96], sizes = [8, 32], strides = [1, 1]} : vector<8x128xf32> to vector<8x32xf32>
    %646 = math.tanh %645 : vector<8x32xf32>
    %647 = arith.mulf %644, %646 : vector<8x32xf32>
    %648 = arith.addf %643, %647 : vector<8x32xf32>
    %649 = vector.extract_strided_slice %628 {offsets = [0, 64], sizes = [8, 32], strides = [1, 1]} : vector<8x96xf32> to vector<8x32xf32>
    %650 = math.tanh %641 : vector<8x32xf32>
    %651 = arith.mulf %649, %650 : vector<8x32xf32>
    %652 = vector.extract_strided_slice %634 {offsets = [0, 64], sizes = [8, 32], strides = [1, 1]} : vector<8x96xf32> to vector<8x32xf32>
    %653 = math.tanh %648 : vector<8x32xf32>
    %654 = arith.mulf %652, %653 : vector<8x32xf32>
    %c48_182 = arith.constant 48 : index
    %c0_183 = arith.constant 0 : index
    %655 = vector.load %arg20[%c48_182, %c0_183] : memref<64x64xf32, #tpu.memory_space<vmem>>, vector<8x32xf32>
    tpu.vector_store %arg20[%c48_182, %c0_183], %651 {strides = array<i32>} : memref<64x64xf32, #tpu.memory_space<vmem>>, vector<8x32xf32>,
    %c8_184 = arith.constant 8 : index
    %c32_185 = arith.constant 32 : index
    %656 = vector.load %arg20[%c8_184, %c32_185] : memref<64x64xf32, #tpu.memory_space<vmem>>, vector<8x32xf32>
    tpu.vector_store %arg20[%c8_184, %c32_185], %654 {strides = array<i32>} : memref<64x64xf32, #tpu.memory_space<vmem>>, vector<8x32xf32>,
    %657 = tpu.concatenate %651, %654 in 1 : vector<8x32xf32>, vector<8x32xf32> -> vector<8x64xf32>
    %cst_186 = arith.constant dense<0.000000e+00> : vector<8x256xf32>
    %658 = tpu.matmul %657, %358, %cst_186 {dimension_numbers = #tpu.dot_dimension_numbers<[1], [0], [0], [1], [0, 0, 1, 1], [], []>} : vector<8x64xf32>, vector<64x256xf32>, vector<8x256xf32> -> vector<8x256xf32>
    %659 = vector.extract_strided_slice %658 {offsets = [0, 0], sizes = [8, 128], strides = [1, 1]} : vector<8x256xf32> to vector<8x128xf32>
    %c56_187 = arith.constant 56 : index
    %c0_188 = arith.constant 0 : index
    %660 = vector.load %arg18[%c56_187, %c0_188] : memref<64x256xf32, #tpu.memory_space<vmem>>, vector<8x128xf32>
    %661 = arith.addf %659, %660 : vector<8x128xf32>
    %662 = vector.extract_strided_slice %658 {offsets = [0, 128], sizes = [8, 128], strides = [1, 1]} : vector<8x256xf32> to vector<8x128xf32>
    %c0_189 = arith.constant 0 : index
    %c128_190 = arith.constant 128 : index
    %663 = vector.load %arg18[%c0_189, %c128_190] : memref<64x256xf32, #tpu.memory_space<vmem>>, vector<8x128xf32>
    %664 = arith.addf %662, %663 : vector<8x128xf32>
    %665 = vector.extract_strided_slice %661 {offsets = [0, 0], sizes = [8, 96], strides = [1, 1]} : vector<8x128xf32> to vector<8x96xf32>
    %666 = arith.negf %665 : vector<8x96xf32>
    %667 = math.exp %666 : vector<8x96xf32>
    %cst_191 = arith.constant 1.000000e+00 : f32
    %668 = vector.broadcast %cst_191 : f32 to vector<8x96xf32>
    %669 = arith.addf %668, %667 : vector<8x96xf32>
    %670 = arith.divf %668, %669 : vector<8x96xf32>
    %671 = vector.extract_strided_slice %664 {offsets = [0, 0], sizes = [8, 96], strides = [1, 1]} : vector<8x128xf32> to vector<8x96xf32>
    %672 = arith.negf %671 : vector<8x96xf32>
    %673 = math.exp %672 : vector<8x96xf32>
    %cst_192 = arith.constant 1.000000e+00 : f32
    %674 = vector.broadcast %cst_192 : f32 to vector<8x96xf32>
    %675 = arith.addf %674, %673 : vector<8x96xf32>
    %676 = arith.divf %674, %675 : vector<8x96xf32>
    %677 = vector.extract_strided_slice %670 {offsets = [0, 32], sizes = [8, 32], strides = [1, 1]} : vector<8x96xf32> to vector<8x32xf32>
    %678 = arith.mulf %677, %641 : vector<8x32xf32>
    %679 = vector.extract_strided_slice %670 {offsets = [0, 0], sizes = [8, 32], strides = [1, 1]} : vector<8x96xf32> to vector<8x32xf32>
    %680 = vector.extract_strided_slice %661 {offsets = [0, 96], sizes = [8, 32], strides = [1, 1]} : vector<8x128xf32> to vector<8x32xf32>
    %681 = math.tanh %680 : vector<8x32xf32>
    %682 = arith.mulf %679, %681 : vector<8x32xf32>
    %683 = arith.addf %678, %682 : vector<8x32xf32>
    %684 = vector.extract_strided_slice %676 {offsets = [0, 32], sizes = [8, 32], strides = [1, 1]} : vector<8x96xf32> to vector<8x32xf32>
    %685 = arith.mulf %684, %648 : vector<8x32xf32>
    %686 = vector.extract_strided_slice %676 {offsets = [0, 0], sizes = [8, 32], strides = [1, 1]} : vector<8x96xf32> to vector<8x32xf32>
    %687 = vector.extract_strided_slice %664 {offsets = [0, 96], sizes = [8, 32], strides = [1, 1]} : vector<8x128xf32> to vector<8x32xf32>
    %688 = math.tanh %687 : vector<8x32xf32>
    %689 = arith.mulf %686, %688 : vector<8x32xf32>
    %690 = arith.addf %685, %689 : vector<8x32xf32>
    %691 = vector.extract_strided_slice %670 {offsets = [0, 64], sizes = [8, 32], strides = [1, 1]} : vector<8x96xf32> to vector<8x32xf32>
    %692 = math.tanh %683 : vector<8x32xf32>
    %693 = arith.mulf %691, %692 : vector<8x32xf32>
    %694 = vector.extract_strided_slice %676 {offsets = [0, 64], sizes = [8, 32], strides = [1, 1]} : vector<8x96xf32> to vector<8x32xf32>
    %695 = math.tanh %690 : vector<8x32xf32>
    %696 = arith.mulf %694, %695 : vector<8x32xf32>
    %c56_193 = arith.constant 56 : index
    %c0_194 = arith.constant 0 : index
    %697 = vector.load %arg20[%c56_193, %c0_194] : memref<64x64xf32, #tpu.memory_space<vmem>>, vector<8x32xf32>
    tpu.vector_store %arg20[%c56_193, %c0_194], %693 {strides = array<i32>} : memref<64x64xf32, #tpu.memory_space<vmem>>, vector<8x32xf32>,
    %c0_195 = arith.constant 0 : index
    %c32_196 = arith.constant 32 : index
    %698 = vector.load %arg20[%c0_195, %c32_196] : memref<64x64xf32, #tpu.memory_space<vmem>>, vector<8x32xf32>
    tpu.vector_store %arg20[%c0_195, %c32_196], %696 {strides = array<i32>} : memref<64x64xf32, #tpu.memory_space<vmem>>, vector<8x32xf32>,
    %c0_197 = arith.constant 0 : index
    %c0_198 = arith.constant 0 : index
    %699 = vector.load %arg20[%c0_197, %c0_198] : memref<64x64xf32, #tpu.memory_space<vmem>>, vector<64x64xf32>
    %c0_199 = arith.constant 0 : index
    %c0_200 = arith.constant 0 : index
    %700 = vector.load %arg1[%c0_199, %c0_200] : memref<64x1xf32, #tpu.memory_space<vmem>>, vector<64x1xf32>
    %701 = vector.broadcast %700 : vector<64x1xf32> to vector<64x64xf32>
    %702 = arith.mulf %699, %701 : vector<64x64xf32>
    %703 = arith.truncf %702 : vector<64x64xf32> to vector<64x64xbf16>
    %c0_201 = arith.constant 0 : index
    %c0_202 = arith.constant 0 : index
    %704 = vector.load %arg5[%c0_201, %c0_202] : memref<64x96xbf16, #tpu.memory_space<vmem>>, vector<64x96xbf16>
    %cst_203 = arith.constant dense<0.000000e+00> : vector<64x96xf32>
    %705 = tpu.matmul %703, %704, %cst_203 {dimension_numbers = #tpu.dot_dimension_numbers<[1], [0], [0], [1], [0, 0, 1, 1], [], []>} : vector<64x64xbf16>, vector<64x96xbf16>, vector<64x96xf32> -> vector<64x96xf32>
    %c2_204 = arith.constant 2 : index
    %c0_205 = arith.constant 0 : index
    %706 = vector.load %arg16[%c2_204, %c0_205] : memref<16x384xf32, #tpu.memory_space<vmem>>, vector<1x96xf32>
    %707 = vector.broadcast %706 : vector<1x96xf32> to vector<64x96xf32>
    %708 = arith.addf %705, %707 : vector<64x96xf32>
    %709 = math.tanh %708 : vector<64x96xf32>
    %c3 = arith.constant 3 : index
    %c0_206 = arith.constant 0 : index
    %710 = vector.load %arg16[%c3, %c0_206] : memref<16x384xf32, #tpu.memory_space<vmem>>, vector<1x96xf32>
    %711 = vector.broadcast %710 : vector<1x96xf32> to vector<64x96xf32>
    %712 = arith.mulf %709, %711 : vector<64x96xf32>
    %713 = vector.extract_strided_slice %712 {offsets = [0, 0], sizes = [64, 32], strides = [1, 1]} : vector<64x96xf32> to vector<64x32xf32>
    %cst_207 = arith.constant dense<0.000000e+00> : vector<64xf32>
    %714 = vector.multi_reduction <add>, %713, %cst_207 [1] : vector<64x32xf32> to vector<64xf32>
    %715 = vector.shape_cast %714 : vector<64xf32> to vector<64x1xf32>
    %716 = vector.extract_strided_slice %712 {offsets = [0, 32], sizes = [64, 32], strides = [1, 1]} : vector<64x96xf32> to vector<64x32xf32>
    %cst_208 = arith.constant dense<0.000000e+00> : vector<64xf32>
    %717 = vector.multi_reduction <add>, %716, %cst_208 [1] : vector<64x32xf32> to vector<64xf32>
    %718 = vector.shape_cast %717 : vector<64xf32> to vector<64x1xf32>
    %719 = vector.extract_strided_slice %712 {offsets = [0, 64], sizes = [64, 32], strides = [1, 1]} : vector<64x96xf32> to vector<64x32xf32>
    %cst_209 = arith.constant dense<0.000000e+00> : vector<64xf32>
    %720 = vector.multi_reduction <add>, %719, %cst_209 [1] : vector<64x32xf32> to vector<64xf32>
    %721 = vector.shape_cast %720 : vector<64xf32> to vector<64x1xf32>
    %722 = tpu.concatenate %715, %718, %721 in 1 : vector<64x1xf32>, vector<64x1xf32>, vector<64x1xf32> -> vector<64x3xf32>
    %723 = vector.shape_cast %722 : vector<64x3xf32> to vector<8x8x3xf32>
    %cst_210 = arith.constant dense<0xFF800000> : vector<8x3xf32>
    %724 = vector.multi_reduction <maximumf>, %723, %cst_210 [0] : vector<8x8x3xf32> to vector<8x3xf32>
    %725 = vector.shape_cast %724 : vector<8x3xf32> to vector<1x8x3xf32>
    %726 = vector.broadcast %725 : vector<1x8x3xf32> to vector<8x8x3xf32>
    %727 = arith.subf %723, %726 : vector<8x8x3xf32>
    %728 = math.exp %727 : vector<8x8x3xf32>
    %cst_211 = arith.constant dense<0.000000e+00> : vector<8x3xf32>
    %729 = vector.multi_reduction <add>, %728, %cst_211 [0] : vector<8x8x3xf32> to vector<8x3xf32>
    %730 = vector.shape_cast %729 : vector<8x3xf32> to vector<1x8x3xf32>
    %731 = vector.broadcast %730 : vector<1x8x3xf32> to vector<8x8x3xf32>
    %732 = arith.divf %728, %731 : vector<8x8x3xf32>
    %733 = vector.shape_cast %702 : vector<64x64xf32> to vector<8x8x64xf32>
    %734 = vector.extract_strided_slice %732 {offsets = [0, 0, 0], sizes = [8, 8, 1], strides = [1, 1, 1]} : vector<8x8x3xf32> to vector<8x8x1xf32>
    %735 = vector.broadcast %734 : vector<8x8x1xf32> to vector<8x8x64xf32>
    %736 = arith.mulf %733, %735 : vector<8x8x64xf32>
    %cst_212 = arith.constant dense<0.000000e+00> : vector<8x64xf32>
    %737 = vector.multi_reduction <add>, %736, %cst_212 [0] : vector<8x8x64xf32> to vector<8x64xf32>
    %738 = vector.extract_strided_slice %732 {offsets = [0, 0, 1], sizes = [8, 8, 1], strides = [1, 1, 1]} : vector<8x8x3xf32> to vector<8x8x1xf32>
    %739 = vector.broadcast %738 : vector<8x8x1xf32> to vector<8x8x64xf32>
    %740 = arith.mulf %733, %739 : vector<8x8x64xf32>
    %cst_213 = arith.constant dense<0.000000e+00> : vector<8x64xf32>
    %741 = vector.multi_reduction <add>, %740, %cst_213 [0] : vector<8x8x64xf32> to vector<8x64xf32>
    %742 = vector.extract_strided_slice %732 {offsets = [0, 0, 2], sizes = [8, 8, 1], strides = [1, 1, 1]} : vector<8x8x3xf32> to vector<8x8x1xf32>
    %743 = vector.broadcast %742 : vector<8x8x1xf32> to vector<8x8x64xf32>
    %744 = arith.mulf %733, %743 : vector<8x8x64xf32>
    %cst_214 = arith.constant dense<0.000000e+00> : vector<8x64xf32>
    %745 = vector.multi_reduction <add>, %744, %cst_214 [0] : vector<8x8x64xf32> to vector<8x64xf32>
    %746 = tpu.concatenate %737, %741, %745 in 1 : vector<8x64xf32>, vector<8x64xf32>, vector<8x64xf32> -> vector<8x192xf32>
    %c0_215 = arith.constant 0 : index
    %c0_216 = arith.constant 0 : index
    %747 = vector.load %arg2[%c0_215, %c0_216] : memref<8x16xf32, #tpu.memory_space<vmem>>, vector<8x16xf32>
    %748 = arith.truncf %747 : vector<8x16xf32> to vector<8x16xbf16>
    %c0_217 = arith.constant 0 : index
    %c0_218 = arith.constant 0 : index
    %749 = vector.load %arg6[%c0_217, %c0_218] : memref<16x128xbf16, #tpu.memory_space<vmem>>, vector<16x128xbf16>
    %cst_219 = arith.constant dense<0.000000e+00> : vector<8x128xf32>
    %750 = tpu.matmul %748, %749, %cst_219 {dimension_numbers = #tpu.dot_dimension_numbers<[1], [0], [0], [1], [0, 0, 1, 1], [], []>} : vector<8x16xbf16>, vector<16x128xbf16>, vector<8x128xf32> -> vector<8x128xf32>
    %c4 = arith.constant 4 : index
    %c0_220 = arith.constant 0 : index
    %751 = vector.load %arg16[%c4, %c0_220] : memref<16x384xf32, #tpu.memory_space<vmem>>, vector<1x128xf32>
    %752 = vector.broadcast %751 : vector<1x128xf32> to vector<8x128xf32>
    %753 = arith.addf %750, %752 : vector<8x128xf32>
    %cst_221 = arith.constant 0.000000e+00 : f32
    %754 = vector.broadcast %cst_221 : f32 to vector<8x128xf32>
    %755 = arith.maximumf %753, %754 : vector<8x128xf32>
    %756 = arith.truncf %755 : vector<8x128xf32> to vector<8x128xbf16>
    %c0_222 = arith.constant 0 : index
    %c0_223 = arith.constant 0 : index
    %757 = vector.load %arg7[%c0_222, %c0_223] : memref<128x96xbf16, #tpu.memory_space<vmem>>, vector<128x96xbf16>
    %cst_224 = arith.constant dense<0.000000e+00> : vector<8x96xf32>
    %758 = tpu.matmul %756, %757, %cst_224 {dimension_numbers = #tpu.dot_dimension_numbers<[1], [0], [0], [1], [0, 0, 1, 1], [], []>} : vector<8x128xbf16>, vector<128x96xbf16>, vector<8x96xf32> -> vector<8x96xf32>
    %c5 = arith.constant 5 : index
    %c0_225 = arith.constant 0 : index
    %759 = vector.load %arg16[%c5, %c0_225] : memref<16x384xf32, #tpu.memory_space<vmem>>, vector<1x96xf32>
    %760 = vector.broadcast %759 : vector<1x96xf32> to vector<8x96xf32>
    %761 = arith.addf %758, %760 : vector<8x96xf32>
    %cst_226 = arith.constant 0.000000e+00 : f32
    %762 = vector.broadcast %cst_226 : f32 to vector<8x96xf32>
    %763 = arith.maximumf %761, %762 : vector<8x96xf32>
    %764 = arith.truncf %763 : vector<8x96xf32> to vector<8x96xbf16>
    %c0_227 = arith.constant 0 : index
    %c0_228 = arith.constant 0 : index
    %765 = vector.load %arg8[%c0_227, %c0_228] : memref<96x64xbf16, #tpu.memory_space<vmem>>, vector<96x64xbf16>
    %cst_229 = arith.constant dense<0.000000e+00> : vector<8x64xf32>
    %766 = tpu.matmul %764, %765, %cst_229 {dimension_numbers = #tpu.dot_dimension_numbers<[1], [0], [0], [1], [0, 0, 1, 1], [], []>} : vector<8x96xbf16>, vector<96x64xbf16>, vector<8x64xf32> -> vector<8x64xf32>
    %c6 = arith.constant 6 : index
    %c0_230 = arith.constant 0 : index
    %767 = vector.load %arg16[%c6, %c0_230] : memref<16x384xf32, #tpu.memory_space<vmem>>, vector<1x64xf32>
    %768 = vector.broadcast %767 : vector<1x64xf32> to vector<8x64xf32>
    %769 = arith.addf %766, %768 : vector<8x64xf32>
    %cst_231 = arith.constant 0.000000e+00 : f32
    %770 = vector.broadcast %cst_231 : f32 to vector<8x64xf32>
    %771 = arith.maximumf %769, %770 : vector<8x64xf32>
    %772 = arith.truncf %771 : vector<8x64xf32> to vector<8x64xbf16>
    %c0_232 = arith.constant 0 : index
    %c0_233 = arith.constant 0 : index
    %773 = vector.load %arg9[%c0_232, %c0_233] : memref<64x48xbf16, #tpu.memory_space<vmem>>, vector<64x48xbf16>
    %cst_234 = arith.constant dense<0.000000e+00> : vector<8x48xf32>
    %774 = tpu.matmul %772, %773, %cst_234 {dimension_numbers = #tpu.dot_dimension_numbers<[1], [0], [0], [1], [0, 0, 1, 1], [], []>} : vector<8x64xbf16>, vector<64x48xbf16>, vector<8x48xf32> -> vector<8x48xf32>
    %c7 = arith.constant 7 : index
    %c0_235 = arith.constant 0 : index
    %775 = vector.load %arg16[%c7, %c0_235] : memref<16x384xf32, #tpu.memory_space<vmem>>, vector<1x48xf32>
    %776 = vector.broadcast %775 : vector<1x48xf32> to vector<8x48xf32>
    %777 = arith.addf %774, %776 : vector<8x48xf32>
    %cst_236 = arith.constant 0.000000e+00 : f32
    %778 = vector.broadcast %cst_236 : f32 to vector<8x48xf32>
    %779 = arith.maximumf %777, %778 : vector<8x48xf32>
    %780 = tpu.concatenate %746, %779 in 1 : vector<8x192xf32>, vector<8x48xf32> -> vector<8x240xf32>
    %781 = arith.truncf %780 : vector<8x240xf32> to vector<8x240xbf16>
    %c0_237 = arith.constant 0 : index
    %c0_238 = arith.constant 0 : index
    %782 = vector.load %arg10[%c0_237, %c0_238] : memref<240x384xbf16, #tpu.memory_space<vmem>>, vector<240x384xbf16>
    %cst_239 = arith.constant dense<0.000000e+00> : vector<8x384xf32>
    %783 = tpu.matmul %781, %782, %cst_239 {dimension_numbers = #tpu.dot_dimension_numbers<[1], [0], [0], [1], [0, 0, 1, 1], [], []>} : vector<8x240xbf16>, vector<240x384xbf16>, vector<8x384xf32> -> vector<8x384xf32>
    %c8_240 = arith.constant 8 : index
    %c0_241 = arith.constant 0 : index
    %784 = vector.load %arg16[%c8_240, %c0_241] : memref<16x384xf32, #tpu.memory_space<vmem>>, vector<1x384xf32>
    %785 = vector.broadcast %784 : vector<1x384xf32> to vector<8x384xf32>
    %786 = arith.addf %783, %785 : vector<8x384xf32>
    %cst_242 = arith.constant 0.000000e+00 : f32
    %787 = vector.broadcast %cst_242 : f32 to vector<8x384xf32>
    %788 = arith.maximumf %786, %787 : vector<8x384xf32>
    %789 = arith.truncf %788 : vector<8x384xf32> to vector<8x384xbf16>
    %c0_243 = arith.constant 0 : index
    %c0_244 = arith.constant 0 : index
    %790 = vector.load %arg11[%c0_243, %c0_244] : memref<384x256xbf16, #tpu.memory_space<vmem>>, vector<384x256xbf16>
    %cst_245 = arith.constant dense<0.000000e+00> : vector<8x256xf32>
    %791 = tpu.matmul %789, %790, %cst_245 {dimension_numbers = #tpu.dot_dimension_numbers<[1], [0], [0], [1], [0, 0, 1, 1], [], []>} : vector<8x384xbf16>, vector<384x256xbf16>, vector<8x256xf32> -> vector<8x256xf32>
    %c9 = arith.constant 9 : index
    %c0_246 = arith.constant 0 : index
    %792 = vector.load %arg16[%c9, %c0_246] : memref<16x384xf32, #tpu.memory_space<vmem>>, vector<1x256xf32>
    %793 = vector.broadcast %792 : vector<1x256xf32> to vector<8x256xf32>
    %794 = arith.addf %791, %793 : vector<8x256xf32>
    %cst_247 = arith.constant 0.000000e+00 : f32
    %795 = vector.broadcast %cst_247 : f32 to vector<8x256xf32>
    %796 = arith.maximumf %794, %795 : vector<8x256xf32>
    %797 = arith.truncf %796 : vector<8x256xf32> to vector<8x256xbf16>
    %c0_248 = arith.constant 0 : index
    %c0_249 = arith.constant 0 : index
    %798 = vector.load %arg12[%c0_248, %c0_249] : memref<256x128xbf16, #tpu.memory_space<vmem>>, vector<256x128xbf16>
    %cst_250 = arith.constant dense<0.000000e+00> : vector<8x128xf32>
    %799 = tpu.matmul %797, %798, %cst_250 {dimension_numbers = #tpu.dot_dimension_numbers<[1], [0], [0], [1], [0, 0, 1, 1], [], []>} : vector<8x256xbf16>, vector<256x128xbf16>, vector<8x128xf32> -> vector<8x128xf32>
    %c10 = arith.constant 10 : index
    %c0_251 = arith.constant 0 : index
    %800 = vector.load %arg16[%c10, %c0_251] : memref<16x384xf32, #tpu.memory_space<vmem>>, vector<1x128xf32>
    %801 = vector.broadcast %800 : vector<1x128xf32> to vector<8x128xf32>
    %802 = arith.addf %799, %801 : vector<8x128xf32>
    %cst_252 = arith.constant 0.000000e+00 : f32
    %803 = vector.broadcast %cst_252 : f32 to vector<8x128xf32>
    %804 = arith.maximumf %802, %803 : vector<8x128xf32>
    %805 = arith.truncf %804 : vector<8x128xf32> to vector<8x128xbf16>
    %c0_253 = arith.constant 0 : index
    %c0_254 = arith.constant 0 : index
    %806 = vector.load %arg13[%c0_253, %c0_254] : memref<128x256xbf16, #tpu.memory_space<vmem>>, vector<128x256xbf16>
    %cst_255 = arith.constant dense<0.000000e+00> : vector<8x256xf32>
    %807 = tpu.matmul %805, %806, %cst_255 {dimension_numbers = #tpu.dot_dimension_numbers<[1], [0], [0], [1], [0, 0, 1, 1], [], []>} : vector<8x128xbf16>, vector<128x256xbf16>, vector<8x256xf32> -> vector<8x256xf32>
    %c11 = arith.constant 11 : index
    %c0_256 = arith.constant 0 : index
    %808 = vector.load %arg16[%c11, %c0_256] : memref<16x384xf32, #tpu.memory_space<vmem>>, vector<1x256xf32>
    %809 = vector.broadcast %808 : vector<1x256xf32> to vector<8x256xf32>
    %810 = arith.addf %807, %809 : vector<8x256xf32>
    %cst_257 = arith.constant 0.000000e+00 : f32
    %811 = vector.broadcast %cst_257 : f32 to vector<8x256xf32>
    %812 = arith.maximumf %810, %811 : vector<8x256xf32>
    %813 = arith.truncf %812 : vector<8x256xf32> to vector<8x256xbf16>
    %c0_258 = arith.constant 0 : index
    %c0_259 = arith.constant 0 : index
    %814 = vector.load %arg14[%c0_258, %c0_259] : memref<256x128xbf16, #tpu.memory_space<vmem>>, vector<256x128xbf16>
    %cst_260 = arith.constant dense<0.000000e+00> : vector<8x128xf32>
    %815 = tpu.matmul %813, %814, %cst_260 {dimension_numbers = #tpu.dot_dimension_numbers<[1], [0], [0], [1], [0, 0, 1, 1], [], []>} : vector<8x256xbf16>, vector<256x128xbf16>, vector<8x128xf32> -> vector<8x128xf32>
    %c12 = arith.constant 12 : index
    %c0_261 = arith.constant 0 : index
    %816 = vector.load %arg16[%c12, %c0_261] : memref<16x384xf32, #tpu.memory_space<vmem>>, vector<1x128xf32>
    %817 = vector.broadcast %816 : vector<1x128xf32> to vector<8x128xf32>
    %818 = arith.addf %815, %817 : vector<8x128xf32>
    %cst_262 = arith.constant 0.000000e+00 : f32
    %819 = vector.broadcast %cst_262 : f32 to vector<8x128xf32>
    %820 = arith.maximumf %818, %819 : vector<8x128xf32>
    %821 = arith.truncf %820 : vector<8x128xf32> to vector<8x128xbf16>
    %c0_263 = arith.constant 0 : index
    %c0_264 = arith.constant 0 : index
    %822 = vector.load %arg15[%c0_263, %c0_264] : memref<128x12xbf16, #tpu.memory_space<vmem>>, vector<128x12xbf16>
    %cst_265 = arith.constant dense<0.000000e+00> : vector<8x12xf32>
    %823 = tpu.matmul %821, %822, %cst_265 {dimension_numbers = #tpu.dot_dimension_numbers<[1], [0], [0], [1], [0, 0, 1, 1], [], []>} : vector<8x128xbf16>, vector<128x12xbf16>, vector<8x12xf32> -> vector<8x12xf32>
    %c13 = arith.constant 13 : index
    %c0_266 = arith.constant 0 : index
    %824 = vector.load %arg16[%c13, %c0_266] : memref<16x384xf32, #tpu.memory_space<vmem>>, vector<1x12xf32>
    %825 = vector.broadcast %824 : vector<1x12xf32> to vector<8x12xf32>
    %826 = arith.addf %823, %825 : vector<8x12xf32>
    %c0_267 = arith.constant 0 : index
    %c0_268 = arith.constant 0 : index
    %827 = vector.load %arg17[%c0_267, %c0_268] : memref<8x12xf32, #tpu.memory_space<vmem>>, vector<8x12xf32>
    tpu.vector_store %arg17[%c0_267, %c0_268], %826 {strides = array<i32>} : memref<8x12xf32, #tpu.memory_space<vmem>>, vector<8x12xf32>,
    return
  }
}

</mosaic_0001>

<llo_original>
// kernel: multitoxic_forward.1
$region0: #{multitoxic_forward.1}
  #allocation0 [shape = 'u32[]', space=smem, size = 0x4, offset = 0x4, fixed_abs, tag = 'smem constant byte address 0x4 - core index']
  #allocation1 [shape = 'u32[144,128]{1,0:T(1,128)}', space=vmem, size = 0x12000, scoped, tag = 'internal scratch']
  #allocation2 [shape = 'f32[64,256]{1,0:T(8,128)}', space=vmem, size = 0x10000, scoped, tag = 'scratch operand']
  #allocation3 [shape = 'f32[64,64]{1,0:T(8,128)}', space=vmem, size = 0x8000, scoped, tag = 'scratch operand']
  #allocation4 [shape = 'f32[64,64]{1,0:T(8,128)}', space=vmem, size = 0x8000, scoped, tag = 'scratch operand']
  %s0 = inlined_call_operand.vmem [shape: f32[64,32], index: 0, kind: input, shape index: {}]
  %s1 = inlined_call_operand.vmem [shape: f32[64,1], index: 1, kind: input, shape index: {}]
  %s2 = inlined_call_operand.vmem [shape: f32[8,16], index: 2, kind: input, shape index: {}]
  %s3 = inlined_call_operand.vmem [shape: f32[32,256], index: 3, kind: input, shape index: {}]
  %s4 = inlined_call_operand.vmem [shape: f32[3,64,256], index: 4, kind: input, shape index: {}]
  %s5 = inlined_call_operand.vmem [shape: bf16[64,96], index: 5, kind: input, shape index: {}]
  %s6 = inlined_call_operand.vmem [shape: bf16[16,128], index: 6, kind: input, shape index: {}]
  %s7 = inlined_call_operand.vmem [shape: bf16[128,96], index: 7, kind: input, shape index: {}]
  %s8 = inlined_call_operand.vmem [shape: bf16[96,64], index: 8, kind: input, shape index: {}]
  %s9 = inlined_call_operand.vmem [shape: bf16[64,48], index: 9, kind: input, shape index: {}]
  %s10 = inlined_call_operand.vmem [shape: bf16[240,384], index: 10, kind: input, shape index: {}]
  %s11 = inlined_call_operand.vmem [shape: bf16[384,256], index: 11, kind: input, shape index: {}]
  %s12 = inlined_call_operand.vmem [shape: bf16[256,128], index: 12, kind: input, shape index: {}]
  %s13 = inlined_call_operand.vmem [shape: bf16[128,256], index: 13, kind: input, shape index: {}]
  %s14 = inlined_call_operand.vmem [shape: bf16[256,128], index: 14, kind: input, shape index: {}]
  %s15 = inlined_call_operand.vmem [shape: bf16[128,12], index: 15, kind: input, shape index: {}]
  %s16 = inlined_call_operand.vmem [shape: f32[16,384], index: 16, kind: input, shape index: {}]
  %s17 = inlined_call_operand.vmem [shape: f32[8,12], index: 17, kind: output, shape index: {}]
  %s18 = sld [smem:[#allocation0]]
  $region78: #{multitoxic_forward.1} parent=0
    _
  %s20 = ssub.s32 1, %s18
  %s21 = scalar_select 0, %s20, %s18
  // Predicated region
  $region2: #{multitoxic_forward.1} parent=0 // pred_check
    _
  $region3: #{multitoxic_forward.1} parent=0 // pred_check_branch
    %23 = sbr.rel (0) target = $region5
  $region4: #{multitoxic_forward.1} parent=0 // pred_region
    _
  $region5: #{multitoxic_forward.1} parent=0 // pred_fallthru
    _
  // Predicated region
  $region6: #{multitoxic_forward.1} parent=0 // pred_check
    _
  $region7: #{multitoxic_forward.1} parent=0 // pred_check_branch
    %25 = sbr.rel (0) target = $region9
  $region8: #{multitoxic_forward.1} parent=0 // pred_region
    _
  $region9: #{multitoxic_forward.1} parent=0 // pred_fallthru
    _
  // Predicated region
  $region10: #{multitoxic_forward.1} parent=0 // pred_check
    _
  $region11: #{multitoxic_forward.1} parent=0 // pred_check_branch
    %27 = sbr.rel (0) target = $region13
  $region12: #{multitoxic_forward.1} parent=0 // pred_region
    _
  $region13: #{multitoxic_forward.1} parent=0 // pred_fallthru
    _
  // Predicated region
  $region14: #{multitoxic_forward.1} parent=0 // pred_check
    _
  $region15: #{multitoxic_forward.1} parent=0 // pred_check_branch
    %29 = sbr.rel (0) target = $region17
  $region16: #{multitoxic_forward.1} parent=0 // pred_region
    _
  $region17: #{multitoxic_forward.1} parent=0 // pred_fallthru
    _
  // Predicated region
  $region18: #{multitoxic_forward.1} parent=0 // pred_check
    _
  $region19: #{multitoxic_forward.1} parent=0 // pred_check_branch
    %31 = sbr.rel (0) target = $region21
  $region20: #{multitoxic_forward.1} parent=0 // pred_region
    _
  $region21: #{multitoxic_forward.1} parent=0 // pred_fallthru
    _
  // Predicated region
  $region22: #{multitoxic_forward.1} parent=0 // pred_check
    _
  $region23: #{multitoxic_forward.1} parent=0 // pred_check_branch
    %33 = sbr.rel (0) target = $region25
  $region24: #{multitoxic_forward.1} parent=0 // pred_region
    _
  $region25: #{multitoxic_forward.1} parent=0 // pred_fallthru
    _
  // Predicated region
  $region26: #{multitoxic_forward.1} parent=0 // pred_check
    _
  $region27: #{multitoxic_forward.1} parent=0 // pred_check_branch
    %35 = sbr.rel (0) target = $region29
  $region28: #{multitoxic_forward.1} parent=0 // pred_region
    _
  $region29: #{multitoxic_forward.1} parent=0 // pred_fallthru
    _
  // Predicated region
  $region30: #{multitoxic_forward.1} parent=0 // pred_check
    _
  $region31: #{multitoxic_forward.1} parent=0 // pred_check_branch
    %37 = sbr.rel (0) target = $region33
  $region32: #{multitoxic_forward.1} parent=0 // pred_region
    _
  $region33: #{multitoxic_forward.1} parent=0 // pred_fallthru
    _
  // Predicated region
  $region34: #{multitoxic_forward.1} parent=0 // pred_check
    _
  $region35: #{multitoxic_forward.1} parent=0 // pred_check_branch
    %39 = sbr.rel (0) target = $region37
  $region36: #{multitoxic_forward.1} parent=0 // pred_region
    _
  $region37: #{multitoxic_forward.1} parent=0 // pred_fallthru
    _
  // Predicated region
  $region38: #{multitoxic_forward.1} parent=0 // pred_check
    _
  $region39: #{multitoxic_forward.1} parent=0 // pred_check_branch
    %41 = sbr.rel (0) target = $region41
  $region40: #{multitoxic_forward.1} parent=0 // pred_region
    _
  $region41: #{multitoxic_forward.1} parent=0 // pred_fallthru
    _
  // Predicated region
  $region42: #{multitoxic_forward.1} parent=0 // pred_check
    _
  $region43: #{multitoxic_forward.1} parent=0 // pred_check_branch
    %43 = sbr.rel (0) target = $region45
  $region44: #{multitoxic_forward.1} parent=0 // pred_region
    _
  $region45: #{multitoxic_forward.1} parent=0 // pred_fallthru
    _
  // Predicated region
  $region46: #{multitoxic_forward.1} parent=0 // pred_check
    _
  $region47: #{multitoxic_forward.1} parent=0 // pred_check_branch
    %45 = sbr.rel (0) target = $region49
  $region48: #{multitoxic_forward.1} parent=0 // pred_region
    _
  $region49: #{multitoxic_forward.1} parent=0 // pred_fallthru
    _
  // Predicated region
  $region50: #{multitoxic_forward.1} parent=0 // pred_check
    _
  $region51: #{multitoxic_forward.1} parent=0 // pred_check_branch
    %47 = sbr.rel (0) target = $region53
  $region52: #{multitoxic_forward.1} parent=0 // pred_region
    _
  $region53: #{multitoxic_forward.1} parent=0 // pred_fallthru
    _
  // Predicated region
  $region54: #{multitoxic_forward.1} parent=0 // pred_check
    _
  $region55: #{multitoxic_forward.1} parent=0 // pred_check_branch
    %49 = sbr.rel (0) target = $region57
  $region56: #{multitoxic_forward.1} parent=0 // pred_region
    _
  $region57: #{multitoxic_forward.1} parent=0 // pred_fallthru
    _
  // Predicated region
  $region58: #{multitoxic_forward.1} parent=0 // pred_check
    _
  $region59: #{multitoxic_forward.1} parent=0 // pred_check_branch
    %51 = sbr.rel (0) target = $region61
  $region60: #{multitoxic_forward.1} parent=0 // pred_region
    _
  $region61: #{multitoxic_forward.1} parent=0 // pred_fallthru
    _
  // Predicated region
  $region62: #{multitoxic_forward.1} parent=0 // pred_check
    _
  $region63: #{multitoxic_forward.1} parent=0 // pred_check_branch
    %53 = sbr.rel (0) target = $region65
  $region64: #{multitoxic_forward.1} parent=0 // pred_region
    _
  $region65: #{multitoxic_forward.1} parent=0 // pred_fallthru
    _
  // Predicated region
  $region66: #{multitoxic_forward.1} parent=0 // pred_check
    _
  $region67: #{multitoxic_forward.1} parent=0 // pred_check_branch
    %55 = sbr.rel (0) target = $region69
  $region68: #{multitoxic_forward.1} parent=0 // pred_region
    _
  $region69: #{multitoxic_forward.1} parent=0 // pred_fallthru
    _
  %v57 = vld [vmem:[%s0] sm:$0xff]
  %v58 = vld [vmem:[%s0 + $0x8] sm:$0xff]
  %v59 = vld [vmem:[%s0 + $0x10] sm:$0xff]
  %v60 = vld [vmem:[%s0 + $0x18] sm:$0xff]
  %v61 = vld [vmem:[%s0 + $0x20] sm:$0xff]
  %v62 = vld [vmem:[%s0 + $0x28] sm:$0xff]
  %v63 = vld [vmem:[%s0 + $0x30] sm:$0xff]
  %v64 = vld [vmem:[%s0 + $0x38] sm:$0xff]
  %v65 = vld [vmem:[%s3] sm:$0xff]
  %v66 = vld [vmem:[%s3 + $0x8] sm:$0xff]
  %v67 = vld [vmem:[%s3 + $0x10] sm:$0xff]
  %v68 = vld [vmem:[%s3 + $0x18] sm:$0xff]
  %v69 = vld [vmem:[%s3 + $0x20] sm:$0xff]
  %v70 = vld [vmem:[%s3 + $0x28] sm:$0xff]
  %v71 = vld [vmem:[%s3 + $0x30] sm:$0xff]
  %v72 = vld [vmem:[%s3 + $0x38] sm:$0xff]
  %v73 = vld [vmem:[%s16] ss:$8 sm:$0x3]
  %v75 = vlaneseq
  %v76 = vshrl.u32 %v75, 7
  %v77 = vsub.s32 0, %v76
  %v78 = vrot.slane %v73, %v77
  %v79 = vlaneseq
  %v80 = vshrl.u32 %v79, 7
  %v81 = vsub.s32 1, %v80
  %v82 = vrot.slane %v73, %v81
  %vm85 = vcmask 261120
  %v87 = vsel %vm85, %v57, 0
  %v90 = vsel %vm85, %v58, 0
  %v93 = vsel %vm85, %v59, 0
  %v96 = vsel %vm85, %v60, 0
  %v99 = vsel %vm85, %v61, 0
  %v102 = vsel %vm85, %v62, 0
  %v105 = vsel %vm85, %v63, 0
  %v108 = vsel %vm85, %v64, 0
  %110 = vmatprep.subr.mxu0 %v66
  %111 = vmatpush1.msra.mxu0 %v65
  %112 = vmatprep.subr.mxu0 %v68
  %113 = vmatpush1.msra.mxu0 %v67
  %114 = vmatprep.subr.mxu0 %v70
  %115 = vmatpush1.msra.mxu0 %v69
  %116 = vmatprep.subr.mxu0 %v72
  %117 = vmatpush1.msra.mxu0 %v71
  %118 = vmatprep.subr.mxu0 0.0
  %119 = vmatpush1.msra.mxu0 0.0
  %120 = vmatprep.subr.mxu0 0.0
  %121 = vmatpush1.msra.mxu0 0.0
  %122 = vmatprep.subr.mxu0 0.0
  %123 = vmatpush1.msra.mxu0 0.0
  %124 = vmatprep.subr.mxu0 0.0
  %125 = vmatpush1.msra.mxu0 0.0
  %126 = vmatprep.subr.mxu0 0.0
  %127 = vmatpush1.msra.mxu0 0.0
  %128 = vmatprep.subr.mxu0 0.0
  %129 = vmatpush1.msra.mxu0 0.0
  %130 = vmatprep.subr.mxu0 0.0
  %131 = vmatpush1.msra.mxu0 0.0
  %132 = vmatprep.subr.mxu0 0.0
  %133 = vmatpush1.msra.mxu0 0.0
  %134 = vmatprep.subr.mxu0 0.0
  %135 = vmatpush1.msra.mxu0 0.0
  %136 = vmatprep.subr.mxu0 0.0
  %137 = vmatpush1.msra.mxu0 0.0
  %138 = vmatprep.subr.mxu0 0.0
  %139 = vmatpush1.msra.mxu0 0.0
  %140 = vmatprep.subr.mxu0 0.0
  %141 = vmatpush1.msra.mxu0 0.0
  %142 = vmatprep.subr.mxu0 0.0
  %143 = vmatpush1.msra.mxu0 0.0
  %144 = vmatprep.subr.mxu0 0.0
  %145 = vmatpush1.msra.mxu0 0.0
  %146 = vmatprep.subr.mxu0 0.0
  %147 = vmatpush1.msra.mxu0 0.0
  %148 = vmatprep.subr.mxu0 0.0
  %149 = vmatpush1.msra.mxu0 0.0
  %150 = vmatprep.subr.mxu0 0.0
  %151 = vmatpush1.msra.mxu0 0.0
  %152 = vmatprep.subr.mxu0 0.0
  %153 = vmatpush1.msra.mxu0 0.0
  %154 = vmatprep.subr.mxu0 0.0
  %155 = vmatpush1.msra.mxu0 0.0
  %156 = vmatprep.subr.mxu0 0.0
  %157 = vmatpush1.msra.mxu0 0.0
  %158 = vmatprep.subr.mxu0 0.0
  %159 = vmatpush1.msra.mxu0 0.0
  %160 = vmatprep.subr.mxu0 0.0
  %161 = vmatpush1.msra.mxu0 0.0
  %162 = vmatprep.subr.mxu0 0.0
  %163 = vmatpush1.msra.mxu0 0.0
  %164 = vmatprep.subr.mxu0 0.0
  %165 = vmatpush1.msra.mxu0 0.0
  %166 = vmatprep.subr.mxu0 0.0
  %167 = vmatpush1.msra.mxu0 0.0
  %168 = vmatprep.subr.mxu0 0.0
  %169 = vmatpush1.msra.mxu0 0.0
  %170 = vmatprep.subr.mxu0 0.0
  %171 = vmatpush1.msra.mxu0 0.0
  %172 = vmatprep.subr.mxu0 0.0
  %173 = vmatpush1.msra.mxu0 0.0
  %174 = vmatprep.mubr.f32.mxu0 0.0
  %175 = vmatmul.mubr.f32.gmra.mrb[0].mxu0 %v87
  %v176 = vpop.f32.mrb[0].mxu0
  %v177 = vadd.f32 %v78, %v176
  %v178 = vpop.f32.mrb[0].mxu0
  %v179 = vadd.f32 %v82, %v178
  %180 = vmatprep.mubr.f32.mxu0 0.0
  %181 = vmatmul.mubr.f32.gmra.mrb[0].mxu0 %v90
  %v182 = vpop.f32.mrb[0].mxu0
  %v183 = vadd.f32 %v78, %v182
  %v184 = vpop.f32.mrb[0].mxu0
  %v185 = vadd.f32 %v82, %v184
  %186 = vmatprep.mubr.f32.mxu0 0.0
  %187 = vmatmul.mubr.f32.gmra.mrb[0].mxu0 %v93
  %v188 = vpop.f32.mrb[0].mxu0
  %v189 = vadd.f32 %v78, %v188
  %v190 = vpop.f32.mrb[0].mxu0
  %v191 = vadd.f32 %v82, %v190
  %192 = vmatprep.mubr.f32.mxu0 0.0
  %193 = vmatmul.mubr.f32.gmra.mrb[0].mxu0 %v96
  %v194 = vpop.f32.mrb[0].mxu0
  %v195 = vadd.f32 %v78, %v194
  %v196 = vpop.f32.mrb[0].mxu0
  %v197 = vadd.f32 %v82, %v196
  %198 = vmatprep.mubr.f32.mxu0 0.0
  %199 = vmatmul.mubr.f32.gmra.mrb[0].mxu0 %v99
  %v200 = vpop.f32.mrb[0].mxu0
  %v201 = vadd.f32 %v78, %v200
  %v202 = vpop.f32.mrb[0].mxu0
  %v203 = vadd.f32 %v82, %v202
  %204 = vmatprep.mubr.f32.mxu0 0.0
  %205 = vmatmul.mubr.f32.gmra.mrb[0].mxu0 %v102
  %v206 = vpop.f32.mrb[0].mxu0
  %v207 = vadd.f32 %v78, %v206
  %v208 = vpop.f32.mrb[0].mxu0
  %v209 = vadd.f32 %v82, %v208
  %210 = vmatprep.mubr.f32.mxu0 0.0
  %211 = vmatmul.mubr.f32.gmra.mrb[0].mxu0 %v105
  %v212 = vpop.f32.mrb[0].mxu0
  %v213 = vadd.f32 %v78, %v212
  %v214 = vpop.f32.mrb[0].mxu0
  %v215 = vadd.f32 %v82, %v214
  %216 = vmatprep.mubr.f32.mxu0 0.0
  %217 = vmatmul.mubr.f32.gmra.mrb[0].mxu0 %v108
  %v218 = vpop.f32.mrb[0].mxu0
  %v219 = vadd.f32 %v78, %v218
  %v220 = vpop.f32.mrb[0].mxu0
  %v221 = vadd.f32 %v82, %v220
  %222 = vdwg.mxu0
  %223 = vst [vmem:[#allocation2] sm:$0xff] %v177
  %224 = vst [vmem:[#allocation2 + $0x8] sm:$0xff] %v179
  %225 = vst [vmem:[#allocation2 + $0x10] sm:$0xff] %v183
  %226 = vst [vmem:[#allocation2 + $0x18] sm:$0xff] %v185
  %227 = vst [vmem:[#allocation2 + $0x20] sm:$0xff] %v189
  %228 = vst [vmem:[#allocation2 + $0x28] sm:$0xff] %v191
  %229 = vst [vmem:[#allocation2 + $0x30] sm:$0xff] %v195
  %230 = vst [vmem:[#allocation2 + $0x38] sm:$0xff] %v197
  %231 = vst [vmem:[#allocation2 + $0x40] sm:$0xff] %v201
  %232 = vst [vmem:[#allocation2 + $0x48] sm:$0xff] %v203
  %233 = vst [vmem:[#allocation2 + $0x50] sm:$0xff] %v207
  %234 = vst [vmem:[#allocation2 + $0x58] sm:$0xff] %v209
  %235 = vst [vmem:[#allocation2 + $0x60] sm:$0xff] %v213
  %236 = vst [vmem:[#allocation2 + $0x68] sm:$0xff] %v215
  %237 = vst [vmem:[#allocation2 + $0x70] sm:$0xff] %v219
  %238 = vst [vmem:[#allocation2 + $0x78] sm:$0xff] %v221
  %v239 = vld [vmem:[%s4] sm:$0xff]
  %v240 = vld [vmem:[%s4 + $0x8] sm:$0xff]
  %v241 = vld [vmem:[%s4 + $0x10] sm:$0xff]
  %v242 = vld [vmem:[%s4 + $0x18] sm:$0xff]
  %v243 = vld [vmem:[%s4 + $0x20] sm:$0xff]
  %v244 = vld [vmem:[%s4 + $0x28] sm:$0xff]
  %v245 = vld [vmem:[%s4 + $0x30] sm:$0xff]
  %v246 = vld [vmem:[%s4 + $0x38] sm:$0xff]
  %v247 = vld [vmem:[%s4 + $0x40] sm:$0xff]
  %v248 = vld [vmem:[%s4 + $0x48] sm:$0xff]
  %v249 = vld [vmem:[%s4 + $0x50] sm:$0xff]
  %v250 = vld [vmem:[%s4 + $0x58] sm:$0xff]
  %v251 = vld [vmem:[%s4 + $0x60] sm:$0xff]
  %v252 = vld [vmem:[%s4 + $0x68] sm:$0xff]
  %v253 = vld [vmem:[%s4 + $0x70] sm:$0xff]
  %v254 = vld [vmem:[%s4 + $0x78] sm:$0xff]
  %vm255 = vcmask 523264
  %v257 = vsel %vm255, 0.0, 0
  %259 = vmatprep.subr.mxu0 %v240
  %260 = vmatpush1.msra.mxu0 %v239
  %261 = vmatprep.subr.mxu0 %v242
  %262 = vmatpush1.msra.mxu0 %v241
  %263 = vmatprep.subr.mxu0 %v244
  %264 = vmatpush1.msra.mxu0 %v243
  %265 = vmatprep.subr.mxu0 %v246
  %266 = vmatpush1.msra.mxu0 %v245
  %267 = vmatprep.subr.mxu0 %v248
  %268 = vmatpush1.msra.mxu0 %v247
  %269 = vmatprep.subr.mxu0 %v250
  %270 = vmatpush1.msra.mxu0 %v249
  %271 = vmatprep.subr.mxu0 %v252
  %272 = vmatpush1.msra.mxu0 %v251
  %273 = vmatprep.subr.mxu0 %v254
  %274 = vmatpush1.msra.mxu0 %v253
  %275 = vmatprep.subr.mxu0 0.0
  %276 = vmatpush1.msra.mxu0 0.0
  %277 = vmatprep.subr.mxu0 0.0
  %278 = vmatpush1.msra.mxu0 0.0
  %279 = vmatprep.subr.mxu0 0.0
  %280 = vmatpush1.msra.mxu0 0.0
  %281 = vmatprep.subr.mxu0 0.0
  %282 = vmatpush1.msra.mxu0 0.0
  %283 = vmatprep.subr.mxu0 0.0
  %284 = vmatpush1.msra.mxu0 0.0
  %285 = vmatprep.subr.mxu0 0.0
  %286 = vmatpush1.msra.mxu0 0.0
  %287 = vmatprep.subr.mxu0 0.0
  %288 = vmatpush1.msra.mxu0 0.0
  %289 = vmatprep.subr.mxu0 0.0
  %290 = vmatpush1.msra.mxu0 0.0
  %291 = vmatprep.subr.mxu0 0.0
  %292 = vmatpush1.msra.mxu0 0.0
  %293 = vmatprep.subr.mxu0 0.0
  %294 = vmatpush1.msra.mxu0 0.0
  %295 = vmatprep.subr.mxu0 0.0
  %296 = vmatpush1.msra.mxu0 0.0
  %297 = vmatprep.subr.mxu0 0.0
  %298 = vmatpush1.msra.mxu0 0.0
  %299 = vmatprep.subr.mxu0 0.0
  %300 = vmatpush1.msra.mxu0 0.0
  %301 = vmatprep.subr.mxu0 0.0
  %302 = vmatpush1.msra.mxu0 0.0
  %303 = vmatprep.subr.mxu0 0.0
  %304 = vmatpush1.msra.mxu0 0.0
  %305 = vmatprep.subr.mxu0 0.0
  %306 = vmatpush1.msra.mxu0 0.0
  %307 = vmatprep.subr.mxu0 0.0
  %308 = vmatpush1.msra.mxu0 0.0
  %309 = vmatprep.subr.mxu0 0.0
  %310 = vmatpush1.msra.mxu0 0.0
  %311 = vmatprep.subr.mxu0 0.0
  %312 = vmatpush1.msra.mxu0 0.0
  %313 = vmatprep.subr.mxu0 0.0
  %314 = vmatpush1.msra.mxu0 0.0
  %315 = vmatprep.subr.mxu0 0.0
  %316 = vmatpush1.msra.mxu0 0.0
  %317 = vmatprep.subr.mxu0 0.0
  %318 = vmatpush1.msra.mxu0 0.0
  %319 = vmatprep.subr.mxu0 0.0
  %320 = vmatpush1.msra.mxu0 0.0
  %321 = vmatprep.subr.mxu0 0.0
  %322 = vmatpush1.msra.mxu0 0.0
  %323 = vmatprep.mubr.f32.mxu0 0.0
  %324 = vmatmul.mubr.f32.gmra.mrb[0].mxu0 %v257
  %v325 = vpop.f32.mrb[0].mxu0
  %v326 = vadd.f32 0.0, %v325
  %v327 = vpop.f32.mrb[0].mxu0
  %v328 = vadd.f32 0.0, %v327
  %329 = vdwg.mxu0
  %v330 = vld [vmem:[#allocation2] sm:$0xff]
  %v331 = vadd.f32 %v326, %v330
  %v332 = vld [vmem:[#allocation2 + $0x78] sm:$0xff]
  %v333 = vadd.f32 %v328, %v332
  %v334 = vxor.u32 %v331, 2147483648
  %v335 = vmul.f32 %v334, 1.442695
  %v336 = vpow.pop %v335
  %v337 = vadd.f32 %v336, 1.0
  %v338 = vrcp.pop %v337
  %v339 = vmul.f32 1.0, %v338
  %v340 = vxor.u32 %v333, 2147483648
  %v341 = vmul.f32 %v340, 1.442695
  %v342 = vpow.pop %v341
  %v343 = vadd.f32 %v342, 1.0
  %v344 = vrcp.pop %v343
  %v345 = vmul.f32 1.0, %v344
  %v346 = vmul.f32 %v339, 0.0
  %v347 = vtanh.pop %v331
  %349 = vrot.lane.b32.xlu0 %v347, 32
  %v350 = vpop.permute.xlu0 %349
  %v352 = vmul.f32 %v339, %v350
  %354 = vrot.lane.b32.xlu0 %v352, 32
  %v355 = vpop.permute.xlu0 %354
  %v357 = vadd.f32 %v346, %v355
  %v358 = vmul.f32 %v345, 0.0
  %v359 = vtanh.pop %v333
  %361 = vrot.lane.b32.xlu0 %v359, 32
  %v362 = vpop.permute.xlu0 %361
  %v364 = vmul.f32 %v345, %v362
  %366 = vrot.lane.b32.xlu0 %v364, 32
  %v367 = vpop.permute.xlu0 %366
  %v369 = vadd.f32 %v358, %v367
  %v370 = vtanh.pop %v357
  %372 = vrot.lane.b32.xlu0 %v370, 32
  %v373 = vpop.permute.xlu0 %372
  %v375 = vmul.f32 %v339, %v373
  %v376 = vtanh.pop %v369
  %378 = vrot.lane.b32.xlu0 %v376, 32
  %v379 = vpop.permute.xlu0 %378
  %v381 = vmul.f32 %v345, %v379
  %383 = vrot.lane.b32.xlu0 %v375, 64
  %v384 = vpop.permute.xlu0 %383
  %386 = vst.msk [vmem:[#allocation3] sm:$0xff] %vm85, %v384
  %388 = vrot.lane.b32.xlu0 %v381, 96
  %v389 = vpop.permute.xlu0 %388
  %vm391 = vcmask 523520
  %392 = vst.msk [vmem:[#allocation3 + $0x38] sm:$0xff] %vm391, %v389
  %v393 = vsel %vm85, %v384, %v389
  %v395 = vsel %vm255, %v393, 0
  %397 = vmatprep.subr.mxu0 %v240
  %398 = vmatpush1.msra.mxu0 %v239
  %399 = vmatprep.subr.mxu0 %v242
  %400 = vmatpush1.msra.mxu0 %v241
  %401 = vmatprep.subr.mxu0 %v244
  %402 = vmatpush1.msra.mxu0 %v243
  %403 = vmatprep.subr.mxu0 %v246
  %404 = vmatpush1.msra.mxu0 %v245
  %405 = vmatprep.subr.mxu0 %v248
  %406 = vmatpush1.msra.mxu0 %v247
  %407 = vmatprep.subr.mxu0 %v250
  %408 = vmatpush1.msra.mxu0 %v249
  %409 = vmatprep.subr.mxu0 %v252
  %410 = vmatpush1.msra.mxu0 %v251
  %411 = vmatprep.subr.mxu0 %v254
  %412 = vmatpush1.msra.mxu0 %v253
  %413 = vmatprep.subr.mxu0 0.0
  %414 = vmatpush1.msra.mxu0 0.0
  %415 = vmatprep.subr.mxu0 0.0
  %416 = vmatpush1.msra.mxu0 0.0
  %417 = vmatprep.subr.mxu0 0.0
  %418 = vmatpush1.msra.mxu0 0.0
  %419 = vmatprep.subr.mxu0 0.0
  %420 = vmatpush1.msra.mxu0 0.0
  %421 = vmatprep.subr.mxu0 0.0
  %422 = vmatpush1.msra.mxu0 0.0
  %423 = vmatprep.subr.mxu0 0.0
  %424 = vmatpush1.msra.mxu0 0.0
  %425 = vmatprep.subr.mxu0 0.0
  %426 = vmatpush1.msra.mxu0 0.0
  %427 = vmatprep.subr.mxu0 0.0
  %428 = vmatpush1.msra.mxu0 0.0
  %429 = vmatprep.subr.mxu0 0.0
  %430 = vmatpush1.msra.mxu0 0.0
  %431 = vmatprep.subr.mxu0 0.0
  %432 = vmatpush1.msra.mxu0 0.0
  %433 = vmatprep.subr.mxu0 0.0
  %434 = vmatpush1.msra.mxu0 0.0
  %435 = vmatprep.subr.mxu0 0.0
  %436 = vmatpush1.msra.mxu0 0.0
  %437 = vmatprep.subr.mxu0 0.0
  %438 = vmatpush1.msra.mxu0 0.0
  %439 = vmatprep.subr.mxu0 0.0
  %440 = vmatpush1.msra.mxu0 0.0
  %441 = vmatprep.subr.mxu0 0.0
  %442 = vmatpush1.msra.mxu0 0.0
  %443 = vmatprep.subr.mxu0 0.0
  %444 = vmatpush1.msra.mxu0 0.0
  %445 = vmatprep.subr.mxu0 0.0
  %446 = vmatpush1.msra.mxu0 0.0
  %447 = vmatprep.subr.mxu0 0.0
  %448 = vmatpush1.msra.mxu0 0.0
  %449 = vmatprep.subr.mxu0 0.0
  %450 = vmatpush1.msra.mxu0 0.0
  %451 = vmatprep.subr.mxu0 0.0
  %452 = vmatpush1.msra.mxu0 0.0
  %453 = vmatprep.subr.mxu0 0.0
  %454 = vmatpush1.msra.mxu0 0.0
  %455 = vmatprep.subr.mxu0 0.0
  %456 = vmatpush1.msra.mxu0 0.0
  %457 = vmatprep.subr.mxu0 0.0
  %458 = vmatpush1.msra.mxu0 0.0
  %459 = vmatprep.subr.mxu0 0.0
  %460 = vmatpush1.msra.mxu0 0.0
  %461 = vmatprep.mubr.f32.mxu0 0.0
  %462 = vmatmul.mubr.f32.gmra.mrb[0].mxu0 %v395
  %v463 = vpop.f32.mrb[0].mxu0
  %v464 = vadd.f32 0.0, %v463
  %v465 = vpop.f32.mrb[0].mxu0
  %v466 = vadd.f32 0.0, %v465
  %467 = vdwg.mxu0
  %v468 = vld [vmem:[#allocation2 + $0x10] sm:$0xff]
  %v469 = vadd.f32 %v464, %v468
  %v470 = vld [vmem:[#allocation2 + $0x68] sm:$0xff]
  %v471 = vadd.f32 %v466, %v470
  %v472 = vxor.u32 %v469, 2147483648
  %v473 = vmul.f32 %v472, 1.442695
  %v474 = vpow.pop %v473
  %v475 = vadd.f32 %v474, 1.0
  %v476 = vrcp.pop %v475
  %v477 = vmul.f32 1.0, %v476
  %v478 = vxor.u32 %v471, 2147483648
  %v479 = vmul.f32 %v478, 1.442695
  %v480 = vpow.pop %v479
  %v481 = vadd.f32 %v480, 1.0
  %v482 = vrcp.pop %v481
  %v483 = vmul.f32 1.0, %v482
  %v484 = vmul.f32 %v477, %v357
  %v485 = vtanh.pop %v469
  %487 = vrot.lane.b32.xlu0 %v485, 32
  %v488 = vpop.permute.xlu0 %487
  %v490 = vmul.f32 %v477, %v488
  %492 = vrot.lane.b32.xlu0 %v490, 32
  %v493 = vpop.permute.xlu0 %492
  %v495 = vadd.f32 %v484, %v493
  %v496 = vmul.f32 %v483, %v369
  %v497 = vtanh.pop %v471
  %499 = vrot.lane.b32.xlu0 %v497, 32
  %v500 = vpop.permute.xlu0 %499
  %v502 = vmul.f32 %v483, %v500
  %504 = vrot.lane.b32.xlu0 %v502, 32
  %v505 = vpop.permute.xlu0 %504
  %v507 = vadd.f32 %v496, %v505
  %v508 = vtanh.pop %v495
  %510 = vrot.lane.b32.xlu0 %v508, 32
  %v511 = vpop.permute.xlu0 %510
  %v513 = vmul.f32 %v477, %v511
  %v514 = vtanh.pop %v507
  %516 = vrot.lane.b32.xlu0 %v514, 32
  %v517 = vpop.permute.xlu0 %516
  %v519 = vmul.f32 %v483, %v517
  %521 = vrot.lane.b32.xlu0 %v513, 64
  %v522 = vpop.permute.xlu0 %521
  %524 = vst.msk [vmem:[#allocation3 + $0x8] sm:$0xff] %vm85, %v522
  %526 = vrot.lane.b32.xlu0 %v519, 96
  %v527 = vpop.permute.xlu0 %526
  %529 = vst.msk [vmem:[#allocation3 + $0x30] sm:$0xff] %vm391, %v527
  %v530 = vsel %vm85, %v522, %v527
  %v532 = vsel %vm255, %v530, 0
  %534 = vmatprep.subr.mxu0 %v240
  %535 = vmatpush1.msra.mxu0 %v239
  %536 = vmatprep.subr.mxu0 %v242
  %537 = vmatpush1.msra.mxu0 %v241
  %538 = vmatprep.subr.mxu0 %v244
  %539 = vmatpush1.msra.mxu0 %v243
  %540 = vmatprep.subr.mxu0 %v246
  %541 = vmatpush1.msra.mxu0 %v245
  %542 = vmatprep.subr.mxu0 %v248
  %543 = vmatpush1.msra.mxu0 %v247
  %544 = vmatprep.subr.mxu0 %v250
  %545 = vmatpush1.msra.mxu0 %v249
  %546 = vmatprep.subr.mxu0 %v252
  %547 = vmatpush1.msra.mxu0 %v251
  %548 = vmatprep.subr.mxu0 %v254
  %549 = vmatpush1.msra.mxu0 %v253
  %550 = vmatprep.subr.mxu0 0.0
  %551 = vmatpush1.msra.mxu0 0.0
  %552 = vmatprep.subr.mxu0 0.0
  %553 = vmatpush1.msra.mxu0 0.0
  %554 = vmatprep.subr.mxu0 0.0
  %555 = vmatpush1.msra.mxu0 0.0
  %556 = vmatprep.subr.mxu0 0.0
  %557 = vmatpush1.msra.mxu0 0.0
  %558 = vmatprep.subr.mxu0 0.0
  %559 = vmatpush1.msra.mxu0 0.0
  %560 = vmatprep.subr.mxu0 0.0
  %561 = vmatpush1.msra.mxu0 0.0
  %562 = vmatprep.subr.mxu0 0.0
  %563 = vmatpush1.msra.mxu0 0.0
  %564 = vmatprep.subr.mxu0 0.0
  %565 = vmatpush1.msra.mxu0 0.0
  %566 = vmatprep.subr.mxu0 0.0
  %567 = vmatpush1.msra.mxu0 0.0
  %568 = vmatprep.subr.mxu0 0.0
  %569 = vmatpush1.msra.mxu0 0.0
  %570 = vmatprep.subr.mxu0 0.0
  %571 = vmatpush1.msra.mxu0 0.0
  %572 = vmatprep.subr.mxu0 0.0
  %573 = vmatpush1.msra.mxu0 0.0
  %574 = vmatprep.subr.mxu0 0.0
  %575 = vmatpush1.msra.mxu0 0.0
  %576 = vmatprep.subr.mxu0 0.0
  %577 = vmatpush1.msra.mxu0 0.0
  %578 = vmatprep.subr.mxu0 0.0
  %579 = vmatpush1.msra.mxu0 0.0
  %580 = vmatprep.subr.mxu0 0.0
  %581 = vmatpush1.msra.mxu0 0.0
  %582 = vmatprep.subr.mxu0 0.0
  %583 = vmatpush1.msra.mxu0 0.0
  %584 = vmatprep.subr.mxu0 0.0
  %585 = vmatpush1.msra.mxu0 0.0
  %586 = vmatprep.subr.mxu0 0.0
  %587 = vmatpush1.msra.mxu0 0.0
  %588 = vmatprep.subr.mxu0 0.0
  %589 = vmatpush1.msra.mxu0 0.0
  %590 = vmatprep.subr.mxu0 0.0
  %591 = vmatpush1.msra.mxu0 0.0
  %592 = vmatprep.subr.mxu0 0.0
  %593 = vmatpush1.msra.mxu0 0.0
  %594 = vmatprep.subr.mxu0 0.0
  %595 = vmatpush1.msra.mxu0 0.0
  %596 = vmatprep.subr.mxu0 0.0
  %597 = vmatpush1.msra.mxu0 0.0
  %598 = vmatprep.mubr.f32.mxu0 0.0
  %599 = vmatmul.mubr.f32.gmra.mrb[0].mxu0 %v532
  %v600 = vpop.f32.mrb[0].mxu0
  %v601 = vadd.f32 0.0, %v600
  %v602 = vpop.f32.mrb[0].mxu0
  %v603 = vadd.f32 0.0, %v602
  %604 = vdwg.mxu0
  %v605 = vld [vmem:[#allocation2 + $0x20] sm:$0xff]
  %v606 = vadd.f32 %v601, %v605
  %v607 = vld [vmem:[#allocation2 + $0x58] sm:$0xff]
  %v608 = vadd.f32 %v603, %v607
  %v609 = vxor.u32 %v606, 2147483648
  %v610 = vmul.f32 %v609, 1.442695
  %v611 = vpow.pop %v610
  %v612 = vadd.f32 %v611, 1.0
  %v613 = vrcp.pop %v612
  %v614 = vmul.f32 1.0, %v613
  %v615 = vxor.u32 %v608, 2147483648
  %v616 = vmul.f32 %v615, 1.442695
  %v617 = vpow.pop %v616
  %v618 = vadd.f32 %v617, 1.0
  %v619 = vrcp.pop %v618
  %v620 = vmul.f32 1.0, %v619
  %v621 = vmul.f32 %v614, %v495
  %v622 = vtanh.pop %v606
  %624 = vrot.lane.b32.xlu0 %v622, 32
  %v625 = vpop.permute.xlu0 %624
  %v627 = vmul.f32 %v614, %v625
  %629 = vrot.lane.b32.xlu0 %v627, 32
  %v630 = vpop.permute.xlu0 %629
  %v632 = vadd.f32 %v621, %v630
  %v633 = vmul.f32 %v620, %v507
  %v634 = vtanh.pop %v608
  %636 = vrot.lane.b32.xlu0 %v634, 32
  %v637 = vpop.permute.xlu0 %636
  %v639 = vmul.f32 %v620, %v637
  %641 = vrot.lane.b32.xlu0 %v639, 32
  %v642 = vpop.permute.xlu0 %641
  %v644 = vadd.f32 %v633, %v642
  %v645 = vtanh.pop %v632
  %647 = vrot.lane.b32.xlu0 %v645, 32
  %v648 = vpop.permute.xlu0 %647
  %v650 = vmul.f32 %v614, %v648
  %v651 = vtanh.pop %v644
  %653 = vrot.lane.b32.xlu0 %v651, 32
  %v654 = vpop.permute.xlu0 %653
  %v656 = vmul.f32 %v620, %v654
  %658 = vrot.lane.b32.xlu0 %v650, 64
  %v659 = vpop.permute.xlu0 %658
  %661 = vst.msk [vmem:[#allocation3 + $0x10] sm:$0xff] %vm85, %v659
  %663 = vrot.lane.b32.xlu0 %v656, 96
  %v664 = vpop.permute.xlu0 %663
  %666 = vst.msk [vmem:[#allocation3 + $0x28] sm:$0xff] %vm391, %v664
  %v667 = vsel %vm85, %v659, %v664
  %v669 = vsel %vm255, %v667, 0
  %671 = vmatprep.subr.mxu0 %v240
  %672 = vmatpush1.msra.mxu0 %v239
  %673 = vmatprep.subr.mxu0 %v242
  %674 = vmatpush1.msra.mxu0 %v241
  %675 = vmatprep.subr.mxu0 %v244
  %676 = vmatpush1.msra.mxu0 %v243
  %677 = vmatprep.subr.mxu0 %v246
  %678 = vmatpush1.msra.mxu0 %v245
  %679 = vmatprep.subr.mxu0 %v248
  %680 = vmatpush1.msra.mxu0 %v247
  %681 = vmatprep.subr.mxu0 %v250
  %682 = vmatpush1.msra.mxu0 %v249
  %683 = vmatprep.subr.mxu0 %v252
  %684 = vmatpush1.msra.mxu0 %v251
  %685 = vmatprep.subr.mxu0 %v254
  %686 = vmatpush1.msra.mxu0 %v253
  %687 = vmatprep.subr.mxu0 0.0
  %688 = vmatpush1.msra.mxu0 0.0
  %689 = vmatprep.subr.mxu0 0.0
  %690 = vmatpush1.msra.mxu0 0.0
  %691 = vmatprep.subr.mxu0 0.0
  %692 = vmatpush1.msra.mxu0 0.0
  %693 = vmatprep.subr.mxu0 0.0
  %694 = vmatpush1.msra.mxu0 0.0
  %695 = vmatprep.subr.mxu0 0.0
  %696 = vmatpush1.msra.mxu0 0.0
  %697 = vmatprep.subr.mxu0 0.0
  %698 = vmatpush1.msra.mxu0 0.0
  %699 = vmatprep.subr.mxu0 0.0
  %700 = vmatpush1.msra.mxu0 0.0
  %701 = vmatprep.subr.mxu0 0.0
  %702 = vmatpush1.msra.mxu0 0.0
  %703 = vmatprep.subr.mxu0 0.0
  %704 = vmatpush1.msra.mxu0 0.0
  %705 = vmatprep.subr.mxu0 0.0
  %706 = vmatpush1.msra.mxu0 0.0
  %707 = vmatprep.subr.mxu0 0.0
  %708 = vmatpush1.msra.mxu0 0.0
  %709 = vmatprep.subr.mxu0 0.0
  %710 = vmatpush1.msra.mxu0 0.0
  %711 = vmatprep.subr.mxu0 0.0
  %712 = vmatpush1.msra.mxu0 0.0
  %713 = vmatprep.subr.mxu0 0.0
  %714 = vmatpush1.msra.mxu0 0.0
  %715 = vmatprep.subr.mxu0 0.0
  %716 = vmatpush1.msra.mxu0 0.0
  %717 = vmatprep.subr.mxu0 0.0
  %718 = vmatpush1.msra.mxu0 0.0
  %719 = vmatprep.subr.mxu0 0.0
  %720 = vmatpush1.msra.mxu0 0.0
  %721 = vmatprep.subr.mxu0 0.0
  %722 = vmatpush1.msra.mxu0 0.0
  %723 = vmatprep.subr.mxu0 0.0
  %724 = vmatpush1.msra.mxu0 0.0
  %725 = vmatprep.subr.mxu0 0.0
  %726 = vmatpush1.msra.mxu0 0.0
  %727 = vmatprep.subr.mxu0 0.0
  %728 = vmatpush1.msra.mxu0 0.0
  %729 = vmatprep.subr.mxu0 0.0
  %730 = vmatpush1.msra.mxu0 0.0
  %731 = vmatprep.subr.mxu0 0.0
  %732 = vmatpush1.msra.mxu0 0.0
  %733 = vmatprep.subr.mxu0 0.0
  %734 = vmatpush1.msra.mxu0 0.0
  %735 = vmatprep.mubr.f32.mxu0 0.0
  %736 = vmatmul.mubr.f32.gmra.mrb[0].mxu0 %v669
  %v737 = vpop.f32.mrb[0].mxu0
  %v738 = vadd.f32 0.0, %v737
  %v739 = vpop.f32.mrb[0].mxu0
  %v740 = vadd.f32 0.0, %v739
  %741 = vdwg.mxu0
  %v742 = vld [vmem:[#allocation2 + $0x30] sm:$0xff]
  %v743 = vadd.f32 %v738, %v742
  %v744 = vld [vmem:[#allocation2 + $0x48] sm:$0xff]
  %v745 = vadd.f32 %v740, %v744
  %v746 = vxor.u32 %v743, 2147483648
  %v747 = vmul.f32 %v746, 1.442695
  %v748 = vpow.pop %v747
  %v749 = vadd.f32 %v748, 1.0
  %v750 = vrcp.pop %v749
  %v751 = vmul.f32 1.0, %v750
  %v752 = vxor.u32 %v745, 2147483648
  %v753 = vmul.f32 %v752, 1.442695
  %v754 = vpow.pop %v753
  %v755 = vadd.f32 %v754, 1.0
  %v756 = vrcp.pop %v755
  %v757 = vmul.f32 1.0, %v756
  %v758 = vmul.f32 %v751, %v632
  %v759 = vtanh.pop %v743
  %761 = vrot.lane.b32.xlu0 %v759, 32
  %v762 = vpop.permute.xlu0 %761
  %v764 = vmul.f32 %v751, %v762
  %766 = vrot.lane.b32.xlu0 %v764, 32
  %v767 = vpop.permute.xlu0 %766
  %v769 = vadd.f32 %v758, %v767
  %v770 = vmul.f32 %v757, %v644
  %v771 = vtanh.pop %v745
  %773 = vrot.lane.b32.xlu0 %v771, 32
  %v774 = vpop.permute.xlu0 %773
  %v776 = vmul.f32 %v757, %v774
  %778 = vrot.lane.b32.xlu0 %v776, 32
  %v779 = vpop.permute.xlu0 %778
  %v781 = vadd.f32 %v770, %v779
  %v782 = vtanh.pop %v769
  %784 = vrot.lane.b32.xlu0 %v782, 32
  %v785 = vpop.permute.xlu0 %784
  %v787 = vmul.f32 %v751, %v785
  %v788 = vtanh.pop %v781
  %790 = vrot.lane.b32.xlu0 %v788, 32
  %v791 = vpop.permute.xlu0 %790
  %v793 = vmul.f32 %v757, %v791
  %795 = vrot.lane.b32.xlu0 %v787, 64
  %v796 = vpop.permute.xlu0 %795
  %798 = vst.msk [vmem:[#allocation3 + $0x18] sm:$0xff] %vm85, %v796
  %800 = vrot.lane.b32.xlu0 %v793, 96
  %v801 = vpop.permute.xlu0 %800
  %803 = vst.msk [vmem:[#allocation3 + $0x20] sm:$0xff] %vm391, %v801
  %v804 = vsel %vm85, %v796, %v801
  %v806 = vsel %vm255, %v804, 0
  %808 = vmatprep.subr.mxu0 %v240
  %809 = vmatpush1.msra.mxu0 %v239
  %810 = vmatprep.subr.mxu0 %v242
  %811 = vmatpush1.msra.mxu0 %v241
  %812 = vmatprep.subr.mxu0 %v244
  %813 = vmatpush1.msra.mxu0 %v243
  %814 = vmatprep.subr.mxu0 %v246
  %815 = vmatpush1.msra.mxu0 %v245
  %816 = vmatprep.subr.mxu0 %v248
  %817 = vmatpush1.msra.mxu0 %v247
  %818 = vmatprep.subr.mxu0 %v250
  %819 = vmatpush1.msra.mxu0 %v249
  %820 = vmatprep.subr.mxu0 %v252
  %821 = vmatpush1.msra.mxu0 %v251
  %822 = vmatprep.subr.mxu0 %v254
  %823 = vmatpush1.msra.mxu0 %v253
  %824 = vmatprep.subr.mxu0 0.0
  %825 = vmatpush1.msra.mxu0 0.0
  %826 = vmatprep.subr.mxu0 0.0
  %827 = vmatpush1.msra.mxu0 0.0
  %828 = vmatprep.subr.mxu0 0.0
  %829 = vmatpush1.msra.mxu0 0.0
  %830 = vmatprep.subr.mxu0 0.0
  %831 = vmatpush1.msra.mxu0 0.0
  %832 = vmatprep.subr.mxu0 0.0
  %833 = vmatpush1.msra.mxu0 0.0
  %834 = vmatprep.subr.mxu0 0.0
  %835 = vmatpush1.msra.mxu0 0.0
  %836 = vmatprep.subr.mxu0 0.0
  %837 = vmatpush1.msra.mxu0 0.0
  %838 = vmatprep.subr.mxu0 0.0
  %839 = vmatpush1.msra.mxu0 0.0
  %840 = vmatprep.subr.mxu0 0.0
  %841 = vmatpush1.msra.mxu0 0.0
  %842 = vmatprep.subr.mxu0 0.0
  %843 = vmatpush1.msra.mxu0 0.0
  %844 = vmatprep.subr.mxu0 0.0
  %845 = vmatpush1.msra.mxu0 0.0
  %846 = vmatprep.subr.mxu0 0.0
  %847 = vmatpush1.msra.mxu0 0.0
  %848 = vmatprep.subr.mxu0 0.0
  %849 = vmatpush1.msra.mxu0 0.0
  %850 = vmatprep.subr.mxu0 0.0
  %851 = vmatpush1.msra.mxu0 0.0
  %852 = vmatprep.subr.mxu0 0.0
  %853 = vmatpush1.msra.mxu0 0.0
  %854 = vmatprep.subr.mxu0 0.0
  %855 = vmatpush1.msra.mxu0 0.0
  %856 = vmatprep.subr.mxu0 0.0
  %857 = vmatpush1.msra.mxu0 0.0
  %858 = vmatprep.subr.mxu0 0.0
  %859 = vmatpush1.msra.mxu0 0.0
  %860 = vmatprep.subr.mxu0 0.0
  %861 = vmatpush1.msra.mxu0 0.0
  %862 = vmatprep.subr.mxu0 0.0
  %863 = vmatpush1.msra.mxu0 0.0
  %864 = vmatprep.subr.mxu0 0.0
  %865 = vmatpush1.msra.mxu0 0.0
  %866 = vmatprep.subr.mxu0 0.0
  %867 = vmatpush1.msra.mxu0 0.0
  %868 = vmatprep.subr.mxu0 0.0
  %869 = vmatpush1.msra.mxu0 0.0
  %870 = vmatprep.subr.mxu0 0.0
  %871 = vmatpush1.msra.mxu0 0.0
  %872 = vmatprep.mubr.f32.mxu0 0.0
  %873 = vmatmul.mubr.f32.gmra.mrb[0].mxu0 %v806
  %v874 = vpop.f32.mrb[0].mxu0
  %v875 = vadd.f32 0.0, %v874
  %v876 = vpop.f32.mrb[0].mxu0
  %v877 = vadd.f32 0.0, %v876
  %878 = vdwg.mxu0
  %v879 = vld [vmem:[#allocation2 + $0x40] sm:$0xff]
  %v880 = vadd.f32 %v875, %v879
  %v881 = vld [vmem:[#allocation2 + $0x38] sm:$0xff]
  %v882 = vadd.f32 %v877, %v881
  %v883 = vxor.u32 %v880, 2147483648
  %v884 = vmul.f32 %v883, 1.442695
  %v885 = vpow.pop %v884
  %v886 = vadd.f32 %v885, 1.0
  %v887 = vrcp.pop %v886
  %v888 = vmul.f32 1.0, %v887
  %v889 = vxor.u32 %v882, 2147483648
  %v890 = vmul.f32 %v889, 1.442695
  %v891 = vpow.pop %v890
  %v892 = vadd.f32 %v891, 1.0
  %v893 = vrcp.pop %v892
  %v894 = vmul.f32 1.0, %v893
  %v895 = vmul.f32 %v888, %v769
  %v896 = vtanh.pop %v880
  %898 = vrot.lane.b32.xlu0 %v896, 32
  %v899 = vpop.permute.xlu0 %898
  %v901 = vmul.f32 %v888, %v899
  %903 = vrot.lane.b32.xlu0 %v901, 32
  %v904 = vpop.permute.xlu0 %903
  %v906 = vadd.f32 %v895, %v904
  %v907 = vmul.f32 %v894, %v781
  %v908 = vtanh.pop %v882
  %910 = vrot.lane.b32.xlu0 %v908, 32
  %v911 = vpop.permute.xlu0 %910
  %v913 = vmul.f32 %v894, %v911
  %915 = vrot.lane.b32.xlu0 %v913, 32
  %v916 = vpop.permute.xlu0 %915
  %v918 = vadd.f32 %v907, %v916
  %v919 = vtanh.pop %v906
  %921 = vrot.lane.b32.xlu0 %v919, 32
  %v922 = vpop.permute.xlu0 %921
  %v924 = vmul.f32 %v888, %v922
  %v925 = vtanh.pop %v918
  %927 = vrot.lane.b32.xlu0 %v925, 32
  %v928 = vpop.permute.xlu0 %927
  %v930 = vmul.f32 %v894, %v928
  %932 = vrot.lane.b32.xlu0 %v924, 64
  %v933 = vpop.permute.xlu0 %932
  %935 = vst.msk [vmem:[#allocation3 + $0x20] sm:$0xff] %vm85, %v933
  %937 = vrot.lane.b32.xlu0 %v930, 96
  %v938 = vpop.permute.xlu0 %937
  %940 = vst.msk [vmem:[#allocation3 + $0x18] sm:$0xff] %vm391, %v938
  %v941 = vsel %vm85, %v933, %v938
  %v943 = vsel %vm255, %v941, 0
  %945 = vmatprep.subr.mxu0 %v240
  %946 = vmatpush1.msra.mxu0 %v239
  %947 = vmatprep.subr.mxu0 %v242
  %948 = vmatpush1.msra.mxu0 %v241
  %949 = vmatprep.subr.mxu0 %v244
  %950 = vmatpush1.msra.mxu0 %v243
  %951 = vmatprep.subr.mxu0 %v246
  %952 = vmatpush1.msra.mxu0 %v245
  %953 = vmatprep.subr.mxu0 %v248
  %954 = vmatpush1.msra.mxu0 %v247
  %955 = vmatprep.subr.mxu0 %v250
  %956 = vmatpush1.msra.mxu0 %v249
  %957 = vmatprep.subr.mxu0 %v252
  %958 = vmatpush1.msra.mxu0 %v251
  %959 = vmatprep.subr.mxu0 %v254
  %960 = vmatpush1.msra.mxu0 %v253
  %961 = vmatprep.subr.mxu0 0.0
  %962 = vmatpush1.msra.mxu0 0.0
  %963 = vmatprep.subr.mxu0 0.0
  %964 = vmatpush1.msra.mxu0 0.0
  %965 = vmatprep.subr.mxu0 0.0
  %966 = vmatpush1.msra.mxu0 0.0
  %967 = vmatprep.subr.mxu0 0.0
  %968 = vmatpush1.msra.mxu0 0.0
  %969 = vmatprep.subr.mxu0 0.0
  %970 = vmatpush1.msra.mxu0 0.0
  %971 = vmatprep.subr.mxu0 0.0
  %972 = vmatpush1.msra.mxu0 0.0
  %973 = vmatprep.subr.mxu0 0.0
  %974 = vmatpush1.msra.mxu0 0.0
  %975 = vmatprep.subr.mxu0 0.0
  %976 = vmatpush1.msra.mxu0 0.0
  %977 = vmatprep.subr.mxu0 0.0
  %978 = vmatpush1.msra.mxu0 0.0
  %979 = vmatprep.subr.mxu0 0.0
  %980 = vmatpush1.msra.mxu0 0.0
  %981 = vmatprep.subr.mxu0 0.0
  %982 = vmatpush1.msra.mxu0 0.0
  %983 = vmatprep.subr.mxu0 0.0
  %984 = vmatpush1.msra.mxu0 0.0
  %985 = vmatprep.subr.mxu0 0.0
  %986 = vmatpush1.msra.mxu0 0.0
  %987 = vmatprep.subr.mxu0 0.0
  %988 = vmatpush1.msra.mxu0 0.0
  %989 = vmatprep.subr.mxu0 0.0
  %990 = vmatpush1.msra.mxu0 0.0
  %991 = vmatprep.subr.mxu0 0.0
  %992 = vmatpush1.msra.mxu0 0.0
  %993 = vmatprep.subr.mxu0 0.0
  %994 = vmatpush1.msra.mxu0 0.0
  %995 = vmatprep.subr.mxu0 0.0
  %996 = vmatpush1.msra.mxu0 0.0
  %997 = vmatprep.subr.mxu0 0.0
  %998 = vmatpush1.msra.mxu0 0.0
  %999 = vmatprep.subr.mxu0 0.0
  %1000 = vmatpush1.msra.mxu0 0.0
  %1001 = vmatprep.subr.mxu0 0.0
  %1002 = vmatpush1.msra.mxu0 0.0
  %1003 = vmatprep.subr.mxu0 0.0
  %1004 = vmatpush1.msra.mxu0 0.0
  %1005 = vmatprep.subr.mxu0 0.0
  %1006 = vmatpush1.msra.mxu0 0.0
  %1007 = vmatprep.subr.mxu0 0.0
  %1008 = vmatpush1.msra.mxu0 0.0
  %1009 = vmatprep.mubr.f32.mxu0 0.0
  %1010 = vmatmul.mubr.f32.gmra.mrb[0].mxu0 %v943
  %v1011 = vpop.f32.mrb[0].mxu0
  %v1012 = vadd.f32 0.0, %v1011
  %v1013 = vpop.f32.mrb[0].mxu0
  %v1014 = vadd.f32 0.0, %v1013
  %1015 = vdwg.mxu0
  %v1016 = vld [vmem:[#allocation2 + $0x50] sm:$0xff]
  %v1017 = vadd.f32 %v1012, %v1016
  %v1018 = vld [vmem:[#allocation2 + $0x28] sm:$0xff]
  %v1019 = vadd.f32 %v1014, %v1018
  %v1020 = vxor.u32 %v1017, 2147483648
  %v1021 = vmul.f32 %v1020, 1.442695
  %v1022 = vpow.pop %v1021
  %v1023 = vadd.f32 %v1022, 1.0
  %v1024 = vrcp.pop %v1023
  %v1025 = vmul.f32 1.0, %v1024
  %v1026 = vxor.u32 %v1019, 2147483648
  %v1027 = vmul.f32 %v1026, 1.442695
  %v1028 = vpow.pop %v1027
  %v1029 = vadd.f32 %v1028, 1.0
  %v1030 = vrcp.pop %v1029
  %v1031 = vmul.f32 1.0, %v1030
  %v1032 = vmul.f32 %v1025, %v906
  %v1033 = vtanh.pop %v1017
  %1035 = vrot.lane.b32.xlu0 %v1033, 32
  %v1036 = vpop.permute.xlu0 %1035
  %v1038 = vmul.f32 %v1025, %v1036
  %1040 = vrot.lane.b32.xlu0 %v1038, 32
  %v1041 = vpop.permute.xlu0 %1040
  %v1043 = vadd.f32 %v1032, %v1041
  %v1044 = vmul.f32 %v1031, %v918
  %v1045 = vtanh.pop %v1019
  %1047 = vrot.lane.b32.xlu0 %v1045, 32
  %v1048 = vpop.permute.xlu0 %1047
  %v1050 = vmul.f32 %v1031, %v1048
  %1052 = vrot.lane.b32.xlu0 %v1050, 32
  %v1053 = vpop.permute.xlu0 %1052
  %v1055 = vadd.f32 %v1044, %v1053
  %v1056 = vtanh.pop %v1043
  %1058 = vrot.lane.b32.xlu0 %v1056, 32
  %v1059 = vpop.permute.xlu0 %1058
  %v1061 = vmul.f32 %v1025, %v1059
  %v1062 = vtanh.pop %v1055
  %1064 = vrot.lane.b32.xlu0 %v1062, 32
  %v1065 = vpop.permute.xlu0 %1064
  %v1067 = vmul.f32 %v1031, %v1065
  %1069 = vrot.lane.b32.xlu0 %v1061, 64
  %v1070 = vpop.permute.xlu0 %1069
  %1072 = vst.msk [vmem:[#allocation3 + $0x28] sm:$0xff] %vm85, %v1070
  %1074 = vrot.lane.b32.xlu0 %v1067, 96
  %v1075 = vpop.permute.xlu0 %1074
  %1077 = vst.msk [vmem:[#allocation3 + $0x10] sm:$0xff] %vm391, %v1075
  %v1078 = vsel %vm85, %v1070, %v1075
  %v1080 = vsel %vm255, %v1078, 0
  %1082 = vmatprep.subr.mxu0 %v240
  %1083 = vmatpush1.msra.mxu0 %v239
  %1084 = vmatprep.subr.mxu0 %v242
  %1085 = vmatpush1.msra.mxu0 %v241
  %1086 = vmatprep.subr.mxu0 %v244
  %1087 = vmatpush1.msra.mxu0 %v243
  %1088 = vmatprep.subr.mxu0 %v246
  %1089 = vmatpush1.msra.mxu0 %v245
  %1090 = vmatprep.subr.mxu0 %v248
  %1091 = vmatpush1.msra.mxu0 %v247
  %1092 = vmatprep.subr.mxu0 %v250
  %1093 = vmatpush1.msra.mxu0 %v249
  %1094 = vmatprep.subr.mxu0 %v252
  %1095 = vmatpush1.msra.mxu0 %v251
  %1096 = vmatprep.subr.mxu0 %v254
  %1097 = vmatpush1.msra.mxu0 %v253
  %1098 = vmatprep.subr.mxu0 0.0
  %1099 = vmatpush1.msra.mxu0 0.0
  %1100 = vmatprep.subr.mxu0 0.0
  %1101 = vmatpush1.msra.mxu0 0.0
  %1102 = vmatprep.subr.mxu0 0.0
  %1103 = vmatpush1.msra.mxu0 0.0
  %1104 = vmatprep.subr.mxu0 0.0
  %1105 = vmatpush1.msra.mxu0 0.0
  %1106 = vmatprep.subr.mxu0 0.0
  %1107 = vmatpush1.msra.mxu0 0.0
  %1108 = vmatprep.subr.mxu0 0.0
  %1109 = vmatpush1.msra.mxu0 0.0
  %1110 = vmatprep.subr.mxu0 0.0
  %1111 = vmatpush1.msra.mxu0 0.0
  %1112 = vmatprep.subr.mxu0 0.0
  %1113 = vmatpush1.msra.mxu0 0.0
  %1114 = vmatprep.subr.mxu0 0.0
  %1115 = vmatpush1.msra.mxu0 0.0
  %1116 = vmatprep.subr.mxu0 0.0
  %1117 = vmatpush1.msra.mxu0 0.0
  %1118 = vmatprep.subr.mxu0 0.0
  %1119 = vmatpush1.msra.mxu0 0.0
  %1120 = vmatprep.subr.mxu0 0.0
  %1121 = vmatpush1.msra.mxu0 0.0
  %1122 = vmatprep.subr.mxu0 0.0
  %1123 = vmatpush1.msra.mxu0 0.0
  %1124 = vmatprep.subr.mxu0 0.0
  %1125 = vmatpush1.msra.mxu0 0.0
  %1126 = vmatprep.subr.mxu0 0.0
  %1127 = vmatpush1.msra.mxu0 0.0
  %1128 = vmatprep.subr.mxu0 0.0
  %1129 = vmatpush1.msra.mxu0 0.0
  %1130 = vmatprep.subr.mxu0 0.0
  %1131 = vmatpush1.msra.mxu0 0.0
  %1132 = vmatprep.subr.mxu0 0.0
  %1133 = vmatpush1.msra.mxu0 0.0
  %1134 = vmatprep.subr.mxu0 0.0
  %1135 = vmatpush1.msra.mxu0 0.0
  %1136 = vmatprep.subr.mxu0 0.0
  %1137 = vmatpush1.msra.mxu0 0.0
  %1138 = vmatprep.subr.mxu0 0.0
  %1139 = vmatpush1.msra.mxu0 0.0
  %1140 = vmatprep.subr.mxu0 0.0
  %1141 = vmatpush1.msra.mxu0 0.0
  %1142 = vmatprep.subr.mxu0 0.0
  %1143 = vmatpush1.msra.mxu0 0.0
  %1144 = vmatprep.subr.mxu0 0.0
  %1145 = vmatpush1.msra.mxu0 0.0
  %1146 = vmatprep.mubr.f32.mxu0 0.0
  %1147 = vmatmul.mubr.f32.gmra.mrb[0].mxu0 %v1080
  %v1148 = vpop.f32.mrb[0].mxu0
  %v1149 = vadd.f32 0.0, %v1148
  %v1150 = vpop.f32.mrb[0].mxu0
  %v1151 = vadd.f32 0.0, %v1150
  %1152 = vdwg.mxu0
  %v1153 = vld [vmem:[#allocation2 + $0x60] sm:$0xff]
  %v1154 = vadd.f32 %v1149, %v1153
  %v1155 = vld [vmem:[#allocation2 + $0x18] sm:$0xff]
  %v1156 = vadd.f32 %v1151, %v1155
  %v1157 = vxor.u32 %v1154, 2147483648
  %v1158 = vmul.f32 %v1157, 1.442695
  %v1159 = vpow.pop %v1158
  %v1160 = vadd.f32 %v1159, 1.0
  %v1161 = vrcp.pop %v1160
  %v1162 = vmul.f32 1.0, %v1161
  %v1163 = vxor.u32 %v1156, 2147483648
  %v1164 = vmul.f32 %v1163, 1.442695
  %v1165 = vpow.pop %v1164
  %v1166 = vadd.f32 %v1165, 1.0
  %v1167 = vrcp.pop %v1166
  %v1168 = vmul.f32 1.0, %v1167
  %v1169 = vmul.f32 %v1162, %v1043
  %v1170 = vtanh.pop %v1154
  %1172 = vrot.lane.b32.xlu0 %v1170, 32
  %v1173 = vpop.permute.xlu0 %1172
  %v1175 = vmul.f32 %v1162, %v1173
  %1177 = vrot.lane.b32.xlu0 %v1175, 32
  %v1178 = vpop.permute.xlu0 %1177
  %v1180 = vadd.f32 %v1169, %v1178
  %v1181 = vmul.f32 %v1168, %v1055
  %v1182 = vtanh.pop %v1156
  %1184 = vrot.lane.b32.xlu0 %v1182, 32
  %v1185 = vpop.permute.xlu0 %1184
  %v1187 = vmul.f32 %v1168, %v1185
  %1189 = vrot.lane.b32.xlu0 %v1187, 32
  %v1190 = vpop.permute.xlu0 %1189
  %v1192 = vadd.f32 %v1181, %v1190
  %v1193 = vtanh.pop %v1180
  %1195 = vrot.lane.b32.xlu0 %v1193, 32
  %v1196 = vpop.permute.xlu0 %1195
  %v1198 = vmul.f32 %v1162, %v1196
  %v1199 = vtanh.pop %v1192
  %1201 = vrot.lane.b32.xlu0 %v1199, 32
  %v1202 = vpop.permute.xlu0 %1201
  %v1204 = vmul.f32 %v1168, %v1202
  %1206 = vrot.lane.b32.xlu0 %v1198, 64
  %v1207 = vpop.permute.xlu0 %1206
  %1209 = vst.msk [vmem:[#allocation3 + $0x30] sm:$0xff] %vm85, %v1207
  %1211 = vrot.lane.b32.xlu0 %v1204, 96
  %v1212 = vpop.permute.xlu0 %1211
  %1214 = vst.msk [vmem:[#allocation3 + $0x8] sm:$0xff] %vm391, %v1212
  %v1215 = vsel %vm85, %v1207, %v1212
  %v1217 = vsel %vm255, %v1215, 0
  %1219 = vmatprep.subr.mxu0 %v240
  %1220 = vmatpush1.msra.mxu0 %v239
  %1221 = vmatprep.subr.mxu0 %v242
  %1222 = vmatpush1.msra.mxu0 %v241
  %1223 = vmatprep.subr.mxu0 %v244
  %1224 = vmatpush1.msra.mxu0 %v243
  %1225 = vmatprep.subr.mxu0 %v246
  %1226 = vmatpush1.msra.mxu0 %v245
  %1227 = vmatprep.subr.mxu0 %v248
  %1228 = vmatpush1.msra.mxu0 %v247
  %1229 = vmatprep.subr.mxu0 %v250
  %1230 = vmatpush1.msra.mxu0 %v249
  %1231 = vmatprep.subr.mxu0 %v252
  %1232 = vmatpush1.msra.mxu0 %v251
  %1233 = vmatprep.subr.mxu0 %v254
  %1234 = vmatpush1.msra.mxu0 %v253
  %1235 = vmatprep.subr.mxu0 0.0
  %1236 = vmatpush1.msra.mxu0 0.0
  %1237 = vmatprep.subr.mxu0 0.0
  %1238 = vmatpush1.msra.mxu0 0.0
  %1239 = vmatprep.subr.mxu0 0.0
  %1240 = vmatpush1.msra.mxu0 0.0
  %1241 = vmatprep.subr.mxu0 0.0
  %1242 = vmatpush1.msra.mxu0 0.0
  %1243 = vmatprep.subr.mxu0 0.0
  %1244 = vmatpush1.msra.mxu0 0.0
  %1245 = vmatprep.subr.mxu0 0.0
  %1246 = vmatpush1.msra.mxu0 0.0
  %1247 = vmatprep.subr.mxu0 0.0
  %1248 = vmatpush1.msra.mxu0 0.0
  %1249 = vmatprep.subr.mxu0 0.0
  %1250 = vmatpush1.msra.mxu0 0.0
  %1251 = vmatprep.subr.mxu0 0.0
  %1252 = vmatpush1.msra.mxu0 0.0
  %1253 = vmatprep.subr.mxu0 0.0
  %1254 = vmatpush1.msra.mxu0 0.0
  %1255 = vmatprep.subr.mxu0 0.0
  %1256 = vmatpush1.msra.mxu0 0.0
  %1257 = vmatprep.subr.mxu0 0.0
  %1258 = vmatpush1.msra.mxu0 0.0
  %1259 = vmatprep.subr.mxu0 0.0
  %1260 = vmatpush1.msra.mxu0 0.0
  %1261 = vmatprep.subr.mxu0 0.0
  %1262 = vmatpush1.msra.mxu0 0.0
  %1263 = vmatprep.subr.mxu0 0.0
  %1264 = vmatpush1.msra.mxu0 0.0
  %1265 = vmatprep.subr.mxu0 0.0
  %1266 = vmatpush1.msra.mxu0 0.0
  %1267 = vmatprep.subr.mxu0 0.0
  %1268 = vmatpush1.msra.mxu0 0.0
  %1269 = vmatprep.subr.mxu0 0.0
  %1270 = vmatpush1.msra.mxu0 0.0
  %1271 = vmatprep.subr.mxu0 0.0
  %1272 = vmatpush1.msra.mxu0 0.0
  %1273 = vmatprep.subr.mxu0 0.0
  %1274 = vmatpush1.msra.mxu0 0.0
  %1275 = vmatprep.subr.mxu0 0.0
  %1276 = vmatpush1.msra.mxu0 0.0
  %1277 = vmatprep.subr.mxu0 0.0
  %1278 = vmatpush1.msra.mxu0 0.0
  %1279 = vmatprep.subr.mxu0 0.0
  %1280 = vmatpush1.msra.mxu0 0.0
  %1281 = vmatprep.subr.mxu0 0.0
  %1282 = vmatpush1.msra.mxu0 0.0
  %1283 = vmatprep.mubr.f32.mxu0 0.0
  %1284 = vmatmul.mubr.f32.gmra.mrb[0].mxu0 %v1217
  %v1285 = vpop.f32.mrb[0].mxu0
  %v1286 = vadd.f32 0.0, %v1285
  %v1287 = vpop.f32.mrb[0].mxu0
  %v1288 = vadd.f32 0.0, %v1287
  %1289 = vdwg.mxu0
  %v1290 = vld [vmem:[#allocation2 + $0x70] sm:$0xff]
  %v1291 = vadd.f32 %v1286, %v1290
  %v1292 = vld [vmem:[#allocation2 + $0x8] sm:$0xff]
  %v1293 = vadd.f32 %v1288, %v1292
  %v1294 = vxor.u32 %v1291, 2147483648
  %v1295 = vmul.f32 %v1294, 1.442695
  %v1296 = vpow.pop %v1295
  %v1297 = vadd.f32 %v1296, 1.0
  %v1298 = vrcp.pop %v1297
  %v1299 = vmul.f32 1.0, %v1298
  %v1300 = vxor.u32 %v1293, 2147483648
  %v1301 = vmul.f32 %v1300, 1.442695
  %v1302 = vpow.pop %v1301
  %v1303 = vadd.f32 %v1302, 1.0
  %v1304 = vrcp.pop %v1303
  %v1305 = vmul.f32 1.0, %v1304
  %v1306 = vmul.f32 %v1299, %v1180
  %v1307 = vtanh.pop %v1291
  %1309 = vrot.lane.b32.xlu0 %v1307, 32
  %v1310 = vpop.permute.xlu0 %1309
  %v1312 = vmul.f32 %v1299, %v1310
  %1314 = vrot.lane.b32.xlu0 %v1312, 32
  %v1315 = vpop.permute.xlu0 %1314
  %v1317 = vadd.f32 %v1306, %v1315
  %v1318 = vmul.f32 %v1305, %v1192
  %v1319 = vtanh.pop %v1293
  %1321 = vrot.lane.b32.xlu0 %v1319, 32
  %v1322 = vpop.permute.xlu0 %1321
  %v1324 = vmul.f32 %v1305, %v1322
  %1326 = vrot.lane.b32.xlu0 %v1324, 32
  %v1327 = vpop.permute.xlu0 %1326
  %v1329 = vadd.f32 %v1318, %v1327
  %v1330 = vtanh.pop %v1317
  %1332 = vrot.lane.b32.xlu0 %v1330, 32
  %v1333 = vpop.permute.xlu0 %1332
  %v1335 = vmul.f32 %v1299, %v1333
  %v1336 = vtanh.pop %v1329
  %1338 = vrot.lane.b32.xlu0 %v1336, 32
  %v1339 = vpop.permute.xlu0 %1338
  %v1341 = vmul.f32 %v1305, %v1339
  %1343 = vrot.lane.b32.xlu0 %v1335, 64
  %v1344 = vpop.permute.xlu0 %1343
  %1346 = vst.msk [vmem:[#allocation3 + $0x38] sm:$0xff] %vm85, %v1344
  %1348 = vrot.lane.b32.xlu0 %v1341, 96
  %v1349 = vpop.permute.xlu0 %1348
  %1351 = vst.msk [vmem:[#allocation3] sm:$0xff] %vm391, %v1349
  %v1352 = vld [vmem:[#allocation3] sm:$0xff]
  %v1353 = vld [vmem:[#allocation3 + $0x8] sm:$0xff]
  %v1354 = vld [vmem:[#allocation3 + $0x10] sm:$0xff]
  %v1355 = vld [vmem:[#allocation3 + $0x18] sm:$0xff]
  %v1356 = vld [vmem:[#allocation3 + $0x20] sm:$0xff]
  %v1357 = vld [vmem:[#allocation3 + $0x28] sm:$0xff]
  %v1358 = vld [vmem:[#allocation3 + $0x30] sm:$0xff]
  %v1359 = vld [vmem:[#allocation3 + $0x38] sm:$0xff]
  %s1360 = scalar_lea.vmem %s4, 128
  %v1361 = vld [vmem:[%s1360] sm:$0xff]
  %v1362 = vld [vmem:[%s1360 + $0x8] sm:$0xff]
  %v1363 = vld [vmem:[%s1360 + $0x10] sm:$0xff]
  %v1364 = vld [vmem:[%s1360 + $0x18] sm:$0xff]
  %v1365 = vld [vmem:[%s1360 + $0x20] sm:$0xff]
  %v1366 = vld [vmem:[%s1360 + $0x28] sm:$0xff]
  %v1367 = vld [vmem:[%s1360 + $0x30] sm:$0xff]
  %v1368 = vld [vmem:[%s1360 + $0x38] sm:$0xff]
  %v1369 = vld [vmem:[%s1360 + $0x40] sm:$0xff]
  %v1370 = vld [vmem:[%s1360 + $0x48] sm:$0xff]
  %v1371 = vld [vmem:[%s1360 + $0x50] sm:$0xff]
  %v1372 = vld [vmem:[%s1360 + $0x58] sm:$0xff]
  %v1373 = vld [vmem:[%s1360 + $0x60] sm:$0xff]
  %v1374 = vld [vmem:[%s1360 + $0x68] sm:$0xff]
  %v1375 = vld [vmem:[%s1360 + $0x70] sm:$0xff]
  %v1376 = vld [vmem:[%s1360 + $0x78] sm:$0xff]
  %s1377 = scalar_lea.vmem %s16, 1
  %v1378 = vld [vmem:[%s1377] ss:$8 sm:$0x3]
  %v1380 = vlaneseq
  %v1381 = vshrl.u32 %v1380, 7
  %v1382 = vsub.s32 0, %v1381
  %v1383 = vrot.slane %v1378, %v1382
  %v1384 = vlaneseq
  %v1385 = vshrl.u32 %v1384, 7
  %v1386 = vsub.s32 1, %v1385
  %v1387 = vrot.slane %v1378, %v1386
  %v1391 = vsel %vm255, %v1352, 0
  %v1394 = vsel %vm255, %v1353, 0
  %v1397 = vsel %vm255, %v1354, 0
  %v1400 = vsel %vm255, %v1355, 0
  %v1403 = vsel %vm255, %v1356, 0
  %v1406 = vsel %vm255, %v1357, 0
  %v1409 = vsel %vm255, %v1358, 0
  %v1412 = vsel %vm255, %v1359, 0
  %1414 = vmatprep.subr.mxu0 %v1362
  %1415 = vmatpush1.msra.mxu0 %v1361
  %1416 = vmatprep.subr.mxu0 %v1364
  %1417 = vmatpush1.msra.mxu0 %v1363
  %1418 = vmatprep.subr.mxu0 %v1366
  %1419 = vmatpush1.msra.mxu0 %v1365
  %1420 = vmatprep.subr.mxu0 %v1368
  %1421 = vmatpush1.msra.mxu0 %v1367
  %1422 = vmatprep.subr.mxu0 %v1370
  %1423 = vmatpush1.msra.mxu0 %v1369
  %1424 = vmatprep.subr.mxu0 %v1372
  %1425 = vmatpush1.msra.mxu0 %v1371
  %1426 = vmatprep.subr.mxu0 %v1374
  %1427 = vmatpush1.msra.mxu0 %v1373
  %1428 = vmatprep.subr.mxu0 %v1376
  %1429 = vmatpush1.msra.mxu0 %v1375
  %1430 = vmatprep.subr.mxu0 0.0
  %1431 = vmatpush1.msra.mxu0 0.0
  %1432 = vmatprep.subr.mxu0 0.0
  %1433 = vmatpush1.msra.mxu0 0.0
  %1434 = vmatprep.subr.mxu0 0.0
  %1435 = vmatpush1.msra.mxu0 0.0
  %1436 = vmatprep.subr.mxu0 0.0
  %1437 = vmatpush1.msra.mxu0 0.0
  %1438 = vmatprep.subr.mxu0 0.0
  %1439 = vmatpush1.msra.mxu0 0.0
  %1440 = vmatprep.subr.mxu0 0.0
  %1441 = vmatpush1.msra.mxu0 0.0
  %1442 = vmatprep.subr.mxu0 0.0
  %1443 = vmatpush1.msra.mxu0 0.0
  %1444 = vmatprep.subr.mxu0 0.0
  %1445 = vmatpush1.msra.mxu0 0.0
  %1446 = vmatprep.subr.mxu0 0.0
  %1447 = vmatpush1.msra.mxu0 0.0
  %1448 = vmatprep.subr.mxu0 0.0
  %1449 = vmatpush1.msra.mxu0 0.0
  %1450 = vmatprep.subr.mxu0 0.0
  %1451 = vmatpush1.msra.mxu0 0.0
  %1452 = vmatprep.subr.mxu0 0.0
  %1453 = vmatpush1.msra.mxu0 0.0
  %1454 = vmatprep.subr.mxu0 0.0
  %1455 = vmatpush1.msra.mxu0 0.0
  %1456 = vmatprep.subr.mxu0 0.0
  %1457 = vmatpush1.msra.mxu0 0.0
  %1458 = vmatprep.subr.mxu0 0.0
  %1459 = vmatpush1.msra.mxu0 0.0
  %1460 = vmatprep.subr.mxu0 0.0
  %1461 = vmatpush1.msra.mxu0 0.0
  %1462 = vmatprep.subr.mxu0 0.0
  %1463 = vmatpush1.msra.mxu0 0.0
  %1464 = vmatprep.subr.mxu0 0.0
  %1465 = vmatpush1.msra.mxu0 0.0
  %1466 = vmatprep.subr.mxu0 0.0
  %1467 = vmatpush1.msra.mxu0 0.0
  %1468 = vmatprep.subr.mxu0 0.0
  %1469 = vmatpush1.msra.mxu0 0.0
  %1470 = vmatprep.subr.mxu0 0.0
  %1471 = vmatpush1.msra.mxu0 0.0
  %1472 = vmatprep.subr.mxu0 0.0
  %1473 = vmatpush1.msra.mxu0 0.0
  %1474 = vmatprep.subr.mxu0 0.0
  %1475 = vmatpush1.msra.mxu0 0.0
  %1476 = vmatprep.subr.mxu0 0.0
  %1477 = vmatpush1.msra.mxu0 0.0
  %1478 = vmatprep.mubr.f32.mxu0 0.0
  %1479 = vmatmul.mubr.f32.gmra.mrb[0].mxu0 %v1391
  %v1480 = vpop.f32.mrb[0].mxu0
  %v1481 = vadd.f32 %v1383, %v1480
  %v1482 = vpop.f32.mrb[0].mxu0
  %v1483 = vadd.f32 %v1387, %v1482
  %1484 = vmatprep.mubr.f32.mxu0 0.0
  %1485 = vmatmul.mubr.f32.gmra.mrb[0].mxu0 %v1394
  %v1486 = vpop.f32.mrb[0].mxu0
  %v1487 = vadd.f32 %v1383, %v1486
  %v1488 = vpop.f32.mrb[0].mxu0
  %v1489 = vadd.f32 %v1387, %v1488
  %1490 = vmatprep.mubr.f32.mxu0 0.0
  %1491 = vmatmul.mubr.f32.gmra.mrb[0].mxu0 %v1397
  %v1492 = vpop.f32.mrb[0].mxu0
  %v1493 = vadd.f32 %v1383, %v1492
  %v1494 = vpop.f32.mrb[0].mxu0
  %v1495 = vadd.f32 %v1387, %v1494
  %1496 = vmatprep.mubr.f32.mxu0 0.0
  %1497 = vmatmul.mubr.f32.gmra.mrb[0].mxu0 %v1400
  %v1498 = vpop.f32.mrb[0].mxu0
  %v1499 = vadd.f32 %v1383, %v1498
  %v1500 = vpop.f32.mrb[0].mxu0
  %v1501 = vadd.f32 %v1387, %v1500
  %1502 = vmatprep.mubr.f32.mxu0 0.0
  %1503 = vmatmul.mubr.f32.gmra.mrb[0].mxu0 %v1403
  %v1504 = vpop.f32.mrb[0].mxu0
  %v1505 = vadd.f32 %v1383, %v1504
  %v1506 = vpop.f32.mrb[0].mxu0
  %v1507 = vadd.f32 %v1387, %v1506
  %1508 = vmatprep.mubr.f32.mxu0 0.0
  %1509 = vmatmul.mubr.f32.gmra.mrb[0].mxu0 %v1406
  %v1510 = vpop.f32.mrb[0].mxu0
  %v1511 = vadd.f32 %v1383, %v1510
  %v1512 = vpop.f32.mrb[0].mxu0
  %v1513 = vadd.f32 %v1387, %v1512
  %1514 = vmatprep.mubr.f32.mxu0 0.0
  %1515 = vmatmul.mubr.f32.gmra.mrb[0].mxu0 %v1409
  %v1516 = vpop.f32.mrb[0].mxu0
  %v1517 = vadd.f32 %v1383, %v1516
  %v1518 = vpop.f32.mrb[0].mxu0
  %v1519 = vadd.f32 %v1387, %v1518
  %1520 = vmatprep.mubr.f32.mxu0 0.0
  %1521 = vmatmul.mubr.f32.gmra.mrb[0].mxu0 %v1412
  %v1522 = vpop.f32.mrb[0].mxu0
  %v1523 = vadd.f32 %v1383, %v1522
  %v1524 = vpop.f32.mrb[0].mxu0
  %v1525 = vadd.f32 %v1387, %v1524
  %1526 = vdwg.mxu0
  %1527 = vst [vmem:[#allocation2] sm:$0xff] %v1481
  %1528 = vst [vmem:[#allocation2 + $0x8] sm:$0xff] %v1483
  %1529 = vst [vmem:[#allocation2 + $0x10] sm:$0xff] %v1487
  %1530 = vst [vmem:[#allocation2 + $0x18] sm:$0xff] %v1489
  %1531 = vst [vmem:[#allocation2 + $0x20] sm:$0xff] %v1493
  %1532 = vst [vmem:[#allocation2 + $0x28] sm:$0xff] %v1495
  %1533 = vst [vmem:[#allocation2 + $0x30] sm:$0xff] %v1499
  %1534 = vst [vmem:[#allocation2 + $0x38] sm:$0xff] %v1501
  %1535 = vst [vmem:[#allocation2 + $0x40] sm:$0xff] %v1505
  %1536 = vst [vmem:[#allocation2 + $0x48] sm:$0xff] %v1507
  %1537 = vst [vmem:[#allocation2 + $0x50] sm:$0xff] %v1511
  %1538 = vst [vmem:[#allocation2 + $0x58] sm:$0xff] %v1513
  %1539 = vst [vmem:[#allocation2 + $0x60] sm:$0xff] %v1517
  %1540 = vst [vmem:[#allocation2 + $0x68] sm:$0xff] %v1519
  %1541 = vst [vmem:[#allocation2 + $0x70] sm:$0xff] %v1523
  %1542 = vst [vmem:[#allocation2 + $0x78] sm:$0xff] %v1525
  %s1543 = scalar_lea.vmem %s4, 256
  %v1544 = vld [vmem:[%s1543] sm:$0xff]
  %v1545 = vld [vmem:[%s1543 + $0x8] sm:$0xff]
  %v1546 = vld [vmem:[%s1543 + $0x10] sm:$0xff]
  %v1547 = vld [vmem:[%s1543 + $0x18] sm:$0xff]
  %v1548 = vld [vmem:[%s1543 + $0x20] sm:$0xff]
  %v1549 = vld [vmem:[%s1543 + $0x28] sm:$0xff]
  %v1550 = vld [vmem:[%s1543 + $0x30] sm:$0xff]
  %v1551 = vld [vmem:[%s1543 + $0x38] sm:$0xff]
  %v1552 = vld [vmem:[%s1543 + $0x40] sm:$0xff]
  %v1553 = vld [vmem:[%s1543 + $0x48] sm:$0xff]
  %v1554 = vld [vmem:[%s1543 + $0x50] sm:$0xff]
  %v1555 = vld [vmem:[%s1543 + $0x58] sm:$0xff]
  %v1556 = vld [vmem:[%s1543 + $0x60] sm:$0xff]
  %v1557 = vld [vmem:[%s1543 + $0x68] sm:$0xff]
  %v1558 = vld [vmem:[%s1543 + $0x70] sm:$0xff]
  %v1559 = vld [vmem:[%s1543 + $0x78] sm:$0xff]
  %1560 = vmatprep.subr.mxu0 %v1545
  %1561 = vmatpush1.msra.mxu0 %v1544
  %1562 = vmatprep.subr.mxu0 %v1547
  %1563 = vmatpush1.msra.mxu0 %v1546
  %1564 = vmatprep.subr.mxu0 %v1549
  %1565 = vmatpush1.msra.mxu0 %v1548
  %1566 = vmatprep.subr.mxu0 %v1551
  %1567 = vmatpush1.msra.mxu0 %v1550
  %1568 = vmatprep.subr.mxu0 %v1553
  %1569 = vmatpush1.msra.mxu0 %v1552
  %1570 = vmatprep.subr.mxu0 %v1555
  %1571 = vmatpush1.msra.mxu0 %v1554
  %1572 = vmatprep.subr.mxu0 %v1557
  %1573 = vmatpush1.msra.mxu0 %v1556
  %1574 = vmatprep.subr.mxu0 %v1559
  %1575 = vmatpush1.msra.mxu0 %v1558
  %1576 = vmatprep.subr.mxu0 0.0
  %1577 = vmatpush1.msra.mxu0 0.0
  %1578 = vmatprep.subr.mxu0 0.0
  %1579 = vmatpush1.msra.mxu0 0.0
  %1580 = vmatprep.subr.mxu0 0.0
  %1581 = vmatpush1.msra.mxu0 0.0
  %1582 = vmatprep.subr.mxu0 0.0
  %1583 = vmatpush1.msra.mxu0 0.0
  %1584 = vmatprep.subr.mxu0 0.0
  %1585 = vmatpush1.msra.mxu0 0.0
  %1586 = vmatprep.subr.mxu0 0.0
  %1587 = vmatpush1.msra.mxu0 0.0
  %1588 = vmatprep.subr.mxu0 0.0
  %1589 = vmatpush1.msra.mxu0 0.0
  %1590 = vmatprep.subr.mxu0 0.0
  %1591 = vmatpush1.msra.mxu0 0.0
  %1592 = vmatprep.subr.mxu0 0.0
  %1593 = vmatpush1.msra.mxu0 0.0
  %1594 = vmatprep.subr.mxu0 0.0
  %1595 = vmatpush1.msra.mxu0 0.0
  %1596 = vmatprep.subr.mxu0 0.0
  %1597 = vmatpush1.msra.mxu0 0.0
  %1598 = vmatprep.subr.mxu0 0.0
  %1599 = vmatpush1.msra.mxu0 0.0
  %1600 = vmatprep.subr.mxu0 0.0
  %1601 = vmatpush1.msra.mxu0 0.0
  %1602 = vmatprep.subr.mxu0 0.0
  %1603 = vmatpush1.msra.mxu0 0.0
  %1604 = vmatprep.subr.mxu0 0.0
  %1605 = vmatpush1.msra.mxu0 0.0
  %1606 = vmatprep.subr.mxu0 0.0
  %1607 = vmatpush1.msra.mxu0 0.0
  %1608 = vmatprep.subr.mxu0 0.0
  %1609 = vmatpush1.msra.mxu0 0.0
  %1610 = vmatprep.subr.mxu0 0.0
  %1611 = vmatpush1.msra.mxu0 0.0
  %1612 = vmatprep.subr.mxu0 0.0
  %1613 = vmatpush1.msra.mxu0 0.0
  %1614 = vmatprep.subr.mxu0 0.0
  %1615 = vmatpush1.msra.mxu0 0.0
  %1616 = vmatprep.subr.mxu0 0.0
  %1617 = vmatpush1.msra.mxu0 0.0
  %1618 = vmatprep.subr.mxu0 0.0
  %1619 = vmatpush1.msra.mxu0 0.0
  %1620 = vmatprep.subr.mxu0 0.0
  %1621 = vmatpush1.msra.mxu0 0.0
  %1622 = vmatprep.subr.mxu0 0.0
  %1623 = vmatpush1.msra.mxu0 0.0
  %1624 = vmatprep.mubr.f32.mxu0 0.0
  %1625 = vmatmul.mubr.f32.gmra.mrb[0].mxu0 %v257
  %v1626 = vpop.f32.mrb[0].mxu0
  %v1627 = vadd.f32 0.0, %v1626
  %v1628 = vpop.f32.mrb[0].mxu0
  %v1629 = vadd.f32 0.0, %v1628
  %1630 = vdwg.mxu0
  %v1631 = vld [vmem:[#allocation2] sm:$0xff]
  %v1632 = vadd.f32 %v1627, %v1631
  %v1633 = vld [vmem:[#allocation2 + $0x78] sm:$0xff]
  %v1634 = vadd.f32 %v1629, %v1633
  %v1635 = vxor.u32 %v1632, 2147483648
  %v1636 = vmul.f32 %v1635, 1.442695
  %v1637 = vpow.pop %v1636
  %v1638 = vadd.f32 %v1637, 1.0
  %v1639 = vrcp.pop %v1638
  %v1640 = vmul.f32 1.0, %v1639
  %v1641 = vxor.u32 %v1634, 2147483648
  %v1642 = vmul.f32 %v1641, 1.442695
  %v1643 = vpow.pop %v1642
  %v1644 = vadd.f32 %v1643, 1.0
  %v1645 = vrcp.pop %v1644
  %v1646 = vmul.f32 1.0, %v1645
  %v1647 = vmul.f32 %v1640, 0.0
  %v1648 = vtanh.pop %v1632
  %1650 = vrot.lane.b32.xlu0 %v1648, 32
  %v1651 = vpop.permute.xlu0 %1650
  %v1653 = vmul.f32 %v1640, %v1651
  %1655 = vrot.lane.b32.xlu0 %v1653, 32
  %v1656 = vpop.permute.xlu0 %1655
  %v1658 = vadd.f32 %v1647, %v1656
  %v1659 = vmul.f32 %v1646, 0.0
  %v1660 = vtanh.pop %v1634
  %1662 = vrot.lane.b32.xlu0 %v1660, 32
  %v1663 = vpop.permute.xlu0 %1662
  %v1665 = vmul.f32 %v1646, %v1663
  %1667 = vrot.lane.b32.xlu0 %v1665, 32
  %v1668 = vpop.permute.xlu0 %1667
  %v1670 = vadd.f32 %v1659, %v1668
  %v1671 = vtanh.pop %v1658
  %1673 = vrot.lane.b32.xlu0 %v1671, 32
  %v1674 = vpop.permute.xlu0 %1673
  %v1676 = vmul.f32 %v1640, %v1674
  %v1677 = vtanh.pop %v1670
  %1679 = vrot.lane.b32.xlu0 %v1677, 32
  %v1680 = vpop.permute.xlu0 %1679
  %v1682 = vmul.f32 %v1646, %v1680
  %1684 = vrot.lane.b32.xlu0 %v1676, 64
  %v1685 = vpop.permute.xlu0 %1684
  %1687 = vst.msk [vmem:[#allocation4] sm:$0xff] %vm85, %v1685
  %1689 = vrot.lane.b32.xlu0 %v1682, 96
  %v1690 = vpop.permute.xlu0 %1689
  %1692 = vst.msk [vmem:[#allocation4 + $0x38] sm:$0xff] %vm391, %v1690
  %v1693 = vsel %vm85, %v1685, %v1690
  %v1695 = vsel %vm255, %v1693, 0
  %1697 = vmatprep.subr.mxu0 %v1545
  %1698 = vmatpush1.msra.mxu0 %v1544
  %1699 = vmatprep.subr.mxu0 %v1547
  %1700 = vmatpush1.msra.mxu0 %v1546
  %1701 = vmatprep.subr.mxu0 %v1549
  %1702 = vmatpush1.msra.mxu0 %v1548
  %1703 = vmatprep.subr.mxu0 %v1551
  %1704 = vmatpush1.msra.mxu0 %v1550
  %1705 = vmatprep.subr.mxu0 %v1553
  %1706 = vmatpush1.msra.mxu0 %v1552
  %1707 = vmatprep.subr.mxu0 %v1555
  %1708 = vmatpush1.msra.mxu0 %v1554
  %1709 = vmatprep.subr.mxu0 %v1557
  %1710 = vmatpush1.msra.mxu0 %v1556
  %1711 = vmatprep.subr.mxu0 %v1559
  %1712 = vmatpush1.msra.mxu0 %v1558
  %1713 = vmatprep.subr.mxu0 0.0
  %1714 = vmatpush1.msra.mxu0 0.0
  %1715 = vmatprep.subr.mxu0 0.0
  %1716 = vmatpush1.msra.mxu0 0.0
  %1717 = vmatprep.subr.mxu0 0.0
  %1718 = vmatpush1.msra.mxu0 0.0
  %1719 = vmatprep.subr.mxu0 0.0
  %1720 = vmatpush1.msra.mxu0 0.0
  %1721 = vmatprep.subr.mxu0 0.0
  %1722 = vmatpush1.msra.mxu0 0.0
  %1723 = vmatprep.subr.mxu0 0.0
  %1724 = vmatpush1.msra.mxu0 0.0
  %1725 = vmatprep.subr.mxu0 0.0
  %1726 = vmatpush1.msra.mxu0 0.0
  %1727 = vmatprep.subr.mxu0 0.0
  %1728 = vmatpush1.msra.mxu0 0.0
  %1729 = vmatprep.subr.mxu0 0.0
  %1730 = vmatpush1.msra.mxu0 0.0
  %1731 = vmatprep.subr.mxu0 0.0
  %1732 = vmatpush1.msra.mxu0 0.0
  %1733 = vmatprep.subr.mxu0 0.0
  %1734 = vmatpush1.msra.mxu0 0.0
  %1735 = vmatprep.subr.mxu0 0.0
  %1736 = vmatpush1.msra.mxu0 0.0
  %1737 = vmatprep.subr.mxu0 0.0
  %1738 = vmatpush1.msra.mxu0 0.0
  %1739 = vmatprep.subr.mxu0 0.0
  %1740 = vmatpush1.msra.mxu0 0.0
  %1741 = vmatprep.subr.mxu0 0.0
  %1742 = vmatpush1.msra.mxu0 0.0
  %1743 = vmatprep.subr.mxu0 0.0
  %1744 = vmatpush1.msra.mxu0 0.0
  %1745 = vmatprep.subr.mxu0 0.0
  %1746 = vmatpush1.msra.mxu0 0.0
  %1747 = vmatprep.subr.mxu0 0.0
  %1748 = vmatpush1.msra.mxu0 0.0
  %1749 = vmatprep.subr.mxu0 0.0
  %1750 = vmatpush1.msra.mxu0 0.0
  %1751 = vmatprep.subr.mxu0 0.0
  %1752 = vmatpush1.msra.mxu0 0.0
  %1753 = vmatprep.subr.mxu0 0.0
  %1754 = vmatpush1.msra.mxu0 0.0
  %1755 = vmatprep.subr.mxu0 0.0
  %1756 = vmatpush1.msra.mxu0 0.0
  %1757 = vmatprep.subr.mxu0 0.0
  %1758 = vmatpush1.msra.mxu0 0.0
  %1759 = vmatprep.subr.mxu0 0.0
  %1760 = vmatpush1.msra.mxu0 0.0
  %1761 = vmatprep.mubr.f32.mxu0 0.0
  %1762 = vmatmul.mubr.f32.gmra.mrb[0].mxu0 %v1695
  %v1763 = vpop.f32.mrb[0].mxu0
  %v1764 = vadd.f32 0.0, %v1763
  %v1765 = vpop.f32.mrb[0].mxu0
  %v1766 = vadd.f32 0.0, %v1765
  %1767 = vdwg.mxu0
  %v1768 = vld [vmem:[#allocation2 + $0x10] sm:$0xff]
  %v1769 = vadd.f32 %v1764, %v1768
  %v1770 = vld [vmem:[#allocation2 + $0x68] sm:$0xff]
  %v1771 = vadd.f32 %v1766, %v1770
  %v1772 = vxor.u32 %v1769, 2147483648
  %v1773 = vmul.f32 %v1772, 1.442695
  %v1774 = vpow.pop %v1773
  %v1775 = vadd.f32 %v1774, 1.0
  %v1776 = vrcp.pop %v1775
  %v1777 = vmul.f32 1.0, %v1776
  %v1778 = vxor.u32 %v1771, 2147483648
  %v1779 = vmul.f32 %v1778, 1.442695
  %v1780 = vpow.pop %v1779
  %v1781 = vadd.f32 %v1780, 1.0
  %v1782 = vrcp.pop %v1781
  %v1783 = vmul.f32 1.0, %v1782
  %v1784 = vmul.f32 %v1777, %v1658
  %v1785 = vtanh.pop %v1769
  %1787 = vrot.lane.b32.xlu0 %v1785, 32
  %v1788 = vpop.permute.xlu0 %1787
  %v1790 = vmul.f32 %v1777, %v1788
  %1792 = vrot.lane.b32.xlu0 %v1790, 32
  %v1793 = vpop.permute.xlu0 %1792
  %v1795 = vadd.f32 %v1784, %v1793
  %v1796 = vmul.f32 %v1783, %v1670
  %v1797 = vtanh.pop %v1771
  %1799 = vrot.lane.b32.xlu0 %v1797, 32
  %v1800 = vpop.permute.xlu0 %1799
  %v1802 = vmul.f32 %v1783, %v1800
  %1804 = vrot.lane.b32.xlu0 %v1802, 32
  %v1805 = vpop.permute.xlu0 %1804
  %v1807 = vadd.f32 %v1796, %v1805
  %v1808 = vtanh.pop %v1795
  %1810 = vrot.lane.b32.xlu0 %v1808, 32
  %v1811 = vpop.permute.xlu0 %1810
  %v1813 = vmul.f32 %v1777, %v1811
  %v1814 = vtanh.pop %v1807
  %1816 = vrot.lane.b32.xlu0 %v1814, 32
  %v1817 = vpop.permute.xlu0 %1816
  %v1819 = vmul.f32 %v1783, %v1817
  %1821 = vrot.lane.b32.xlu0 %v1813, 64
  %v1822 = vpop.permute.xlu0 %1821
  %1824 = vst.msk [vmem:[#allocation4 + $0x8] sm:$0xff] %vm85, %v1822
  %1826 = vrot.lane.b32.xlu0 %v1819, 96
  %v1827 = vpop.permute.xlu0 %1826
  %1829 = vst.msk [vmem:[#allocation4 + $0x30] sm:$0xff] %vm391, %v1827
  %v1830 = vsel %vm85, %v1822, %v1827
  %v1832 = vsel %vm255, %v1830, 0
  %1834 = vmatprep.subr.mxu0 %v1545
  %1835 = vmatpush1.msra.mxu0 %v1544
  %1836 = vmatprep.subr.mxu0 %v1547
  %1837 = vmatpush1.msra.mxu0 %v1546
  %1838 = vmatprep.subr.mxu0 %v1549
  %1839 = vmatpush1.msra.mxu0 %v1548
  %1840 = vmatprep.subr.mxu0 %v1551
  %1841 = vmatpush1.msra.mxu0 %v1550
  %1842 = vmatprep.subr.mxu0 %v1553
  %1843 = vmatpush1.msra.mxu0 %v1552
  %1844 = vmatprep.subr.mxu0 %v1555
  %1845 = vmatpush1.msra.mxu0 %v1554
  %1846 = vmatprep.subr.mxu0 %v1557
  %1847 = vmatpush1.msra.mxu0 %v1556
  %1848 = vmatprep.subr.mxu0 %v1559
  %1849 = vmatpush1.msra.mxu0 %v1558
  %1850 = vmatprep.subr.mxu0 0.0
  %1851 = vmatpush1.msra.mxu0 0.0
  %1852 = vmatprep.subr.mxu0 0.0
  %1853 = vmatpush1.msra.mxu0 0.0
  %1854 = vmatprep.subr.mxu0 0.0
  %1855 = vmatpush1.msra.mxu0 0.0
  %1856 = vmatprep.subr.mxu0 0.0
  %1857 = vmatpush1.msra.mxu0 0.0
  %1858 = vmatprep.subr.mxu0 0.0
  %1859 = vmatpush1.msra.mxu0 0.0
  %1860 = vmatprep.subr.mxu0 0.0
  %1861 = vmatpush1.msra.mxu0 0.0
  %1862 = vmatprep.subr.mxu0 0.0
  %1863 = vmatpush1.msra.mxu0 0.0
  %1864 = vmatprep.subr.mxu0 0.0
  %1865 = vmatpush1.msra.mxu0 0.0
  %1866 = vmatprep.subr.mxu0 0.0
  %1867 = vmatpush1.msra.mxu0 0.0
  %1868 = vmatprep.subr.mxu0 0.0
  %1869 = vmatpush1.msra.mxu0 0.0
  %1870 = vmatprep.subr.mxu0 0.0
  %1871 = vmatpush1.msra.mxu0 0.0
  %1872 = vmatprep.subr.mxu0 0.0
  %1873 = vmatpush1.msra.mxu0 0.0
  %1874 = vmatprep.subr.mxu0 0.0
  %1875 = vmatpush1.msra.mxu0 0.0
  %1876 = vmatprep.subr.mxu0 0.0
  %1877 = vmatpush1.msra.mxu0 0.0
  %1878 = vmatprep.subr.mxu0 0.0
  %1879 = vmatpush1.msra.mxu0 0.0
  %1880 = vmatprep.subr.mxu0 0.0
  %1881 = vmatpush1.msra.mxu0 0.0
  %1882 = vmatprep.subr.mxu0 0.0
  %1883 = vmatpush1.msra.mxu0 0.0
  %1884 = vmatprep.subr.mxu0 0.0
  %1885 = vmatpush1.msra.mxu0 0.0
  %1886 = vmatprep.subr.mxu0 0.0
  %1887 = vmatpush1.msra.mxu0 0.0
  %1888 = vmatprep.subr.mxu0 0.0
  %1889 = vmatpush1.msra.mxu0 0.0
  %1890 = vmatprep.subr.mxu0 0.0
  %1891 = vmatpush1.msra.mxu0 0.0
  %1892 = vmatprep.subr.mxu0 0.0
  %1893 = vmatpush1.msra.mxu0 0.0
  %1894 = vmatprep.subr.mxu0 0.0
  %1895 = vmatpush1.msra.mxu0 0.0
  %1896 = vmatprep.subr.mxu0 0.0
  %1897 = vmatpush1.msra.mxu0 0.0
  %1898 = vmatprep.mubr.f32.mxu0 0.0
  %1899 = vmatmul.mubr.f32.gmra.mrb[0].mxu0 %v1832
  %v1900 = vpop.f32.mrb[0].mxu0
  %v1901 = vadd.f32 0.0, %v1900
  %v1902 = vpop.f32.mrb[0].mxu0
  %v1903 = vadd.f32 0.0, %v1902
  %1904 = vdwg.mxu0
  %v1905 = vld [vmem:[#allocation2 + $0x20] sm:$0xff]
  %v1906 = vadd.f32 %v1901, %v1905
  %v1907 = vld [vmem:[#allocation2 + $0x58] sm:$0xff]
  %v1908 = vadd.f32 %v1903, %v1907
  %v1909 = vxor.u32 %v1906, 2147483648
  %v1910 = vmul.f32 %v1909, 1.442695
  %v1911 = vpow.pop %v1910
  %v1912 = vadd.f32 %v1911, 1.0
  %v1913 = vrcp.pop %v1912
  %v1914 = vmul.f32 1.0, %v1913
  %v1915 = vxor.u32 %v1908, 2147483648
  %v1916 = vmul.f32 %v1915, 1.442695
  %v1917 = vpow.pop %v1916
  %v1918 = vadd.f32 %v1917, 1.0
  %v1919 = vrcp.pop %v1918
  %v1920 = vmul.f32 1.0, %v1919
  %v1921 = vmul.f32 %v1914, %v1795
  %v1922 = vtanh.pop %v1906
  %1924 = vrot.lane.b32.xlu0 %v1922, 32
  %v1925 = vpop.permute.xlu0 %1924
  %v1927 = vmul.f32 %v1914, %v1925
  %1929 = vrot.lane.b32.xlu0 %v1927, 32
  %v1930 = vpop.permute.xlu0 %1929
  %v1932 = vadd.f32 %v1921, %v1930
  %v1933 = vmul.f32 %v1920, %v1807
  %v1934 = vtanh.pop %v1908
  %1936 = vrot.lane.b32.xlu0 %v1934, 32
  %v1937 = vpop.permute.xlu0 %1936
  %v1939 = vmul.f32 %v1920, %v1937
  %1941 = vrot.lane.b32.xlu0 %v1939, 32
  %v1942 = vpop.permute.xlu0 %1941
  %v1944 = vadd.f32 %v1933, %v1942
  %v1945 = vtanh.pop %v1932
  %1947 = vrot.lane.b32.xlu0 %v1945, 32
  %v1948 = vpop.permute.xlu0 %1947
  %v1950 = vmul.f32 %v1914, %v1948
  %v1951 = vtanh.pop %v1944
  %1953 = vrot.lane.b32.xlu0 %v1951, 32
  %v1954 = vpop.permute.xlu0 %1953
  %v1956 = vmul.f32 %v1920, %v1954
  %1958 = vrot.lane.b32.xlu0 %v1950, 64
  %v1959 = vpop.permute.xlu0 %1958
  %1961 = vst.msk [vmem:[#allocation4 + $0x10] sm:$0xff] %vm85, %v1959
  %1963 = vrot.lane.b32.xlu0 %v1956, 96
  %v1964 = vpop.permute.xlu0 %1963
  %1966 = vst.msk [vmem:[#allocation4 + $0x28] sm:$0xff] %vm391, %v1964
  %v1967 = vsel %vm85, %v1959, %v1964
  %v1969 = vsel %vm255, %v1967, 0
  %1971 = vmatprep.subr.mxu0 %v1545
  %1972 = vmatpush1.msra.mxu0 %v1544
  %1973 = vmatprep.subr.mxu0 %v1547
  %1974 = vmatpush1.msra.mxu0 %v1546
  %1975 = vmatprep.subr.mxu0 %v1549
  %1976 = vmatpush1.msra.mxu0 %v1548
  %1977 = vmatprep.subr.mxu0 %v1551
  %1978 = vmatpush1.msra.mxu0 %v1550
  %1979 = vmatprep.subr.mxu0 %v1553
  %1980 = vmatpush1.msra.mxu0 %v1552
  %1981 = vmatprep.subr.mxu0 %v1555
  %1982 = vmatpush1.msra.mxu0 %v1554
  %1983 = vmatprep.subr.mxu0 %v1557
  %1984 = vmatpush1.msra.mxu0 %v1556
  %1985 = vmatprep.subr.mxu0 %v1559
  %1986 = vmatpush1.msra.mxu0 %v1558
  %1987 = vmatprep.subr.mxu0 0.0
  %1988 = vmatpush1.msra.mxu0 0.0
  %1989 = vmatprep.subr.mxu0 0.0
  %1990 = vmatpush1.msra.mxu0 0.0
  %1991 = vmatprep.subr.mxu0 0.0
  %1992 = vmatpush1.msra.mxu0 0.0
  %1993 = vmatprep.subr.mxu0 0.0
  %1994 = vmatpush1.msra.mxu0 0.0
  %1995 = vmatprep.subr.mxu0 0.0
  %1996 = vmatpush1.msra.mxu0 0.0
  %1997 = vmatprep.subr.mxu0 0.0
  %1998 = vmatpush1.msra.mxu0 0.0
  %1999 = vmatprep.subr.mxu0 0.0
  %2000 = vmatpush1.msra.mxu0 0.0
  %2001 = vmatprep.subr.mxu0 0.0
  %2002 = vmatpush1.msra.mxu0 0.0
  %2003 = vmatprep.subr.mxu0 0.0
  %2004 = vmatpush1.msra.mxu0 0.0
  %2005 = vmatprep.subr.mxu0 0.0
  %2006 = vmatpush1.msra.mxu0 0.0
  %2007 = vmatprep.subr.mxu0 0.0
  %2008 = vmatpush1.msra.mxu0 0.0
  %2009 = vmatprep.subr.mxu0 0.0
  %2010 = vmatpush1.msra.mxu0 0.0
  %2011 = vmatprep.subr.mxu0 0.0
  %2012 = vmatpush1.msra.mxu0 0.0
  %2013 = vmatprep.subr.mxu0 0.0
  %2014 = vmatpush1.msra.mxu0 0.0
  %2015 = vmatprep.subr.mxu0 0.0
  %2016 = vmatpush1.msra.mxu0 0.0
  %2017 = vmatprep.subr.mxu0 0.0
  %2018 = vmatpush1.msra.mxu0 0.0
  %2019 = vmatprep.subr.mxu0 0.0
  %2020 = vmatpush1.msra.mxu0 0.0
  %2021 = vmatprep.subr.mxu0 0.0
  %2022 = vmatpush1.msra.mxu0 0.0
  %2023 = vmatprep.subr.mxu0 0.0
  %2024 = vmatpush1.msra.mxu0 0.0
  %2025 = vmatprep.subr.mxu0 0.0
  %2026 = vmatpush1.msra.mxu0 0.0
  %2027 = vmatprep.subr.mxu0 0.0
  %2028 = vmatpush1.msra.mxu0 0.0
  %2029 = vmatprep.subr.mxu0 0.0
  %2030 = vmatpush1.msra.mxu0 0.0
  %2031 = vmatprep.subr.mxu0 0.0
  %2032 = vmatpush1.msra.mxu0 0.0
  %2033 = vmatprep.subr.mxu0 0.0
  %2034 = vmatpush1.msra.mxu0 0.0
  %2035 = vmatprep.mubr.f32.mxu0 0.0
  %2036 = vmatmul.mubr.f32.gmra.mrb[0].mxu0 %v1969
  %v2037 = vpop.f32.mrb[0].mxu0
  %v2038 = vadd.f32 0.0, %v2037
  %v2039 = vpop.f32.mrb[0].mxu0
  %v2040 = vadd.f32 0.0, %v2039
  %2041 = vdwg.mxu0
  %v2042 = vld [vmem:[#allocation2 + $0x30] sm:$0xff]
  %v2043 = vadd.f32 %v2038, %v2042
  %v2044 = vld [vmem:[#allocation2 + $0x48] sm:$0xff]
  %v2045 = vadd.f32 %v2040, %v2044
  %v2046 = vxor.u32 %v2043, 2147483648
  %v2047 = vmul.f32 %v2046, 1.442695
  %v2048 = vpow.pop %v2047
  %v2049 = vadd.f32 %v2048, 1.0
  %v2050 = vrcp.pop %v2049
  %v2051 = vmul.f32 1.0, %v2050
  %v2052 = vxor.u32 %v2045, 2147483648
  %v2053 = vmul.f32 %v2052, 1.442695
  %v2054 = vpow.pop %v2053
  %v2055 = vadd.f32 %v2054, 1.0
  %v2056 = vrcp.pop %v2055
  %v2057 = vmul.f32 1.0, %v2056
  %v2058 = vmul.f32 %v2051, %v1932
  %v2059 = vtanh.pop %v2043
  %2061 = vrot.lane.b32.xlu0 %v2059, 32
  %v2062 = vpop.permute.xlu0 %2061
  %v2064 = vmul.f32 %v2051, %v2062
  %2066 = vrot.lane.b32.xlu0 %v2064, 32
  %v2067 = vpop.permute.xlu0 %2066
  %v2069 = vadd.f32 %v2058, %v2067
  %v2070 = vmul.f32 %v2057, %v1944
  %v2071 = vtanh.pop %v2045
  %2073 = vrot.lane.b32.xlu0 %v2071, 32
  %v2074 = vpop.permute.xlu0 %2073
  %v2076 = vmul.f32 %v2057, %v2074
  %2078 = vrot.lane.b32.xlu0 %v2076, 32
  %v2079 = vpop.permute.xlu0 %2078
  %v2081 = vadd.f32 %v2070, %v2079
  %v2082 = vtanh.pop %v2069
  %2084 = vrot.lane.b32.xlu0 %v2082, 32
  %v2085 = vpop.permute.xlu0 %2084
  %v2087 = vmul.f32 %v2051, %v2085
  %v2088 = vtanh.pop %v2081
  %2090 = vrot.lane.b32.xlu0 %v2088, 32
  %v2091 = vpop.permute.xlu0 %2090
  %v2093 = vmul.f32 %v2057, %v2091
  %2095 = vrot.lane.b32.xlu0 %v2087, 64
  %v2096 = vpop.permute.xlu0 %2095
  %2098 = vst.msk [vmem:[#allocation4 + $0x18] sm:$0xff] %vm85, %v2096
  %2100 = vrot.lane.b32.xlu0 %v2093, 96
  %v2101 = vpop.permute.xlu0 %2100
  %2103 = vst.msk [vmem:[#allocation4 + $0x20] sm:$0xff] %vm391, %v2101
  %v2104 = vsel %vm85, %v2096, %v2101
  %v2106 = vsel %vm255, %v2104, 0
  %2108 = vmatprep.subr.mxu0 %v1545
  %2109 = vmatpush1.msra.mxu0 %v1544
  %2110 = vmatprep.subr.mxu0 %v1547
  %2111 = vmatpush1.msra.mxu0 %v1546
  %2112 = vmatprep.subr.mxu0 %v1549
  %2113 = vmatpush1.msra.mxu0 %v1548
  %2114 = vmatprep.subr.mxu0 %v1551
  %2115 = vmatpush1.msra.mxu0 %v1550
  %2116 = vmatprep.subr.mxu0 %v1553
  %2117 = vmatpush1.msra.mxu0 %v1552
  %2118 = vmatprep.subr.mxu0 %v1555
  %2119 = vmatpush1.msra.mxu0 %v1554
  %2120 = vmatprep.subr.mxu0 %v1557
  %2121 = vmatpush1.msra.mxu0 %v1556
  %2122 = vmatprep.subr.mxu0 %v1559
  %2123 = vmatpush1.msra.mxu0 %v1558
  %2124 = vmatprep.subr.mxu0 0.0
  %2125 = vmatpush1.msra.mxu0 0.0
  %2126 = vmatprep.subr.mxu0 0.0
  %2127 = vmatpush1.msra.mxu0 0.0
  %2128 = vmatprep.subr.mxu0 0.0
  %2129 = vmatpush1.msra.mxu0 0.0
  %2130 = vmatprep.subr.mxu0 0.0
  %2131 = vmatpush1.msra.mxu0 0.0
  %2132 = vmatprep.subr.mxu0 0.0
  %2133 = vmatpush1.msra.mxu0 0.0
  %2134 = vmatprep.subr.mxu0 0.0
  %2135 = vmatpush1.msra.mxu0 0.0
  %2136 = vmatprep.subr.mxu0 0.0
  %2137 = vmatpush1.msra.mxu0 0.0
  %2138 = vmatprep.subr.mxu0 0.0
  %2139 = vmatpush1.msra.mxu0 0.0
  %2140 = vmatprep.subr.mxu0 0.0
  %2141 = vmatpush1.msra.mxu0 0.0
  %2142 = vmatprep.subr.mxu0 0.0
  %2143 = vmatpush1.msra.mxu0 0.0
  %2144 = vmatprep.subr.mxu0 0.0
  %2145 = vmatpush1.msra.mxu0 0.0
  %2146 = vmatprep.subr.mxu0 0.0
  %2147 = vmatpush1.msra.mxu0 0.0
  %2148 = vmatprep.subr.mxu0 0.0
  %2149 = vmatpush1.msra.mxu0 0.0
  %2150 = vmatprep.subr.mxu0 0.0
  %2151 = vmatpush1.msra.mxu0 0.0
  %2152 = vmatprep.subr.mxu0 0.0
  %2153 = vmatpush1.msra.mxu0 0.0
  %2154 = vmatprep.subr.mxu0 0.0
  %2155 = vmatpush1.msra.mxu0 0.0
  %2156 = vmatprep.subr.mxu0 0.0
  %2157 = vmatpush1.msra.mxu0 0.0
  %2158 = vmatprep.subr.mxu0 0.0
  %2159 = vmatpush1.msra.mxu0 0.0
  %2160 = vmatprep.subr.mxu0 0.0
  %2161 = vmatpush1.msra.mxu0 0.0
  %2162 = vmatprep.subr.mxu0 0.0
  %2163 = vmatpush1.msra.mxu0 0.0
  %2164 = vmatprep.subr.mxu0 0.0
  %2165 = vmatpush1.msra.mxu0 0.0
  %2166 = vmatprep.subr.mxu0 0.0
  %2167 = vmatpush1.msra.mxu0 0.0
  %2168 = vmatprep.subr.mxu0 0.0
  %2169 = vmatpush1.msra.mxu0 0.0
  %2170 = vmatprep.subr.mxu0 0.0
  %2171 = vmatpush1.msra.mxu0 0.0
  %2172 = vmatprep.mubr.f32.mxu0 0.0
  %2173 = vmatmul.mubr.f32.gmra.mrb[0].mxu0 %v2106
  %v2174 = vpop.f32.mrb[0].mxu0
  %v2175 = vadd.f32 0.0, %v2174
  %v2176 = vpop.f32.mrb[0].mxu0
  %v2177 = vadd.f32 0.0, %v2176
  %2178 = vdwg.mxu0
  %v2179 = vld [vmem:[#allocation2 + $0x40] sm:$0xff]
  %v2180 = vadd.f32 %v2175, %v2179
  %v2181 = vld [vmem:[#allocation2 + $0x38] sm:$0xff]
  %v2182 = vadd.f32 %v2177, %v2181
  %v2183 = vxor.u32 %v2180, 2147483648
  %v2184 = vmul.f32 %v2183, 1.442695
  %v2185 = vpow.pop %v2184
  %v2186 = vadd.f32 %v2185, 1.0
  %v2187 = vrcp.pop %v2186
  %v2188 = vmul.f32 1.0, %v2187
  %v2189 = vxor.u32 %v2182, 2147483648
  %v2190 = vmul.f32 %v2189, 1.442695
  %v2191 = vpow.pop %v2190
  %v2192 = vadd.f32 %v2191, 1.0
  %v2193 = vrcp.pop %v2192
  %v2194 = vmul.f32 1.0, %v2193
  %v2195 = vmul.f32 %v2188, %v2069
  %v2196 = vtanh.pop %v2180
  %2198 = vrot.lane.b32.xlu0 %v2196, 32
  %v2199 = vpop.permute.xlu0 %2198
  %v2201 = vmul.f32 %v2188, %v2199
  %2203 = vrot.lane.b32.xlu0 %v2201, 32
  %v2204 = vpop.permute.xlu0 %2203
  %v2206 = vadd.f32 %v2195, %v2204
  %v2207 = vmul.f32 %v2194, %v2081
  %v2208 = vtanh.pop %v2182
  %2210 = vrot.lane.b32.xlu0 %v2208, 32
  %v2211 = vpop.permute.xlu0 %2210
  %v2213 = vmul.f32 %v2194, %v2211
  %2215 = vrot.lane.b32.xlu0 %v2213, 32
  %v2216 = vpop.permute.xlu0 %2215
  %v2218 = vadd.f32 %v2207, %v2216
  %v2219 = vtanh.pop %v2206
  %2221 = vrot.lane.b32.xlu0 %v2219, 32
  %v2222 = vpop.permute.xlu0 %2221
  %v2224 = vmul.f32 %v2188, %v2222
  %v2225 = vtanh.pop %v2218
  %2227 = vrot.lane.b32.xlu0 %v2225, 32
  %v2228 = vpop.permute.xlu0 %2227
  %v2230 = vmul.f32 %v2194, %v2228
  %2232 = vrot.lane.b32.xlu0 %v2224, 64
  %v2233 = vpop.permute.xlu0 %2232
  %2235 = vst.msk [vmem:[#allocation4 + $0x20] sm:$0xff] %vm85, %v2233
  %2237 = vrot.lane.b32.xlu0 %v2230, 96
  %v2238 = vpop.permute.xlu0 %2237
  %2240 = vst.msk [vmem:[#allocation4 + $0x18] sm:$0xff] %vm391, %v2238
  %v2241 = vsel %vm85, %v2233, %v2238
  %v2243 = vsel %vm255, %v2241, 0
  %2245 = vmatprep.subr.mxu0 %v1545
  %2246 = vmatpush1.msra.mxu0 %v1544
  %2247 = vmatprep.subr.mxu0 %v1547
  %2248 = vmatpush1.msra.mxu0 %v1546
  %2249 = vmatprep.subr.mxu0 %v1549
  %2250 = vmatpush1.msra.mxu0 %v1548
  %2251 = vmatprep.subr.mxu0 %v1551
  %2252 = vmatpush1.msra.mxu0 %v1550
  %2253 = vmatprep.subr.mxu0 %v1553
  %2254 = vmatpush1.msra.mxu0 %v1552
  %2255 = vmatprep.subr.mxu0 %v1555
  %2256 = vmatpush1.msra.mxu0 %v1554
  %2257 = vmatprep.subr.mxu0 %v1557
  %2258 = vmatpush1.msra.mxu0 %v1556
  %2259 = vmatprep.subr.mxu0 %v1559
  %2260 = vmatpush1.msra.mxu0 %v1558
  %2261 = vmatprep.subr.mxu0 0.0
  %2262 = vmatpush1.msra.mxu0 0.0
  %2263 = vmatprep.subr.mxu0 0.0
  %2264 = vmatpush1.msra.mxu0 0.0
  %2265 = vmatprep.subr.mxu0 0.0
  %2266 = vmatpush1.msra.mxu0 0.0
  %2267 = vmatprep.subr.mxu0 0.0
  %2268 = vmatpush1.msra.mxu0 0.0
  %2269 = vmatprep.subr.mxu0 0.0
  %2270 = vmatpush1.msra.mxu0 0.0
  %2271 = vmatprep.subr.mxu0 0.0
  %2272 = vmatpush1.msra.mxu0 0.0
  %2273 = vmatprep.subr.mxu0 0.0
  %2274 = vmatpush1.msra.mxu0 0.0
  %2275 = vmatprep.subr.mxu0 0.0
  %2276 = vmatpush1.msra.mxu0 0.0
  %2277 = vmatprep.subr.mxu0 0.0
  %2278 = vmatpush1.msra.mxu0 0.0
  %2279 = vmatprep.subr.mxu0 0.0
  %2280 = vmatpush1.msra.mxu0 0.0
  %2281 = vmatprep.subr.mxu0 0.0
  %2282 = vmatpush1.msra.mxu0 0.0
  %2283 = vmatprep.subr.mxu0 0.0
  %2284 = vmatpush1.msra.mxu0 0.0
  %2285 = vmatprep.subr.mxu0 0.0
  %2286 = vmatpush1.msra.mxu0 0.0
  %2287 = vmatprep.subr.mxu0 0.0
  %2288 = vmatpush1.msra.mxu0 0.0
  %2289 = vmatprep.subr.mxu0 0.0
  %2290 = vmatpush1.msra.mxu0 0.0
  %2291 = vmatprep.subr.mxu0 0.0
  %2292 = vmatpush1.msra.mxu0 0.0
  %2293 = vmatprep.subr.mxu0 0.0
  %2294 = vmatpush1.msra.mxu0 0.0
  %2295 = vmatprep.subr.mxu0 0.0
  %2296 = vmatpush1.msra.mxu0 0.0
  %2297 = vmatprep.subr.mxu0 0.0
  %2298 = vmatpush1.msra.mxu0 0.0
  %2299 = vmatprep.subr.mxu0 0.0
  %2300 = vmatpush1.msra.mxu0 0.0
  %2301 = vmatprep.subr.mxu0 0.0
  %2302 = vmatpush1.msra.mxu0 0.0
  %2303 = vmatprep.subr.mxu0 0.0
  %2304 = vmatpush1.msra.mxu0 0.0
  %2305 = vmatprep.subr.mxu0 0.0
  %2306 = vmatpush1.msra.mxu0 0.0
  %2307 = vmatprep.subr.mxu0 0.0
  %2308 = vmatpush1.msra.mxu0 0.0
  %2309 = vmatprep.mubr.f32.mxu0 0.0
  %2310 = vmatmul.mubr.f32.gmra.mrb[0].mxu0 %v2243
  %v2311 = vpop.f32.mrb[0].mxu0
  %v2312 = vadd.f32 0.0, %v2311
  %v2313 = vpop.f32.mrb[0].mxu0
  %v2314 = vadd.f32 0.0, %v2313
  %2315 = vdwg.mxu0
  %v2316 = vld [vmem:[#allocation2 + $0x50] sm:$0xff]
  %v2317 = vadd.f32 %v2312, %v2316
  %v2318 = vld [vmem:[#allocation2 + $0x28] sm:$0xff]
  %v2319 = vadd.f32 %v2314, %v2318
  %v2320 = vxor.u32 %v2317, 2147483648
  %v2321 = vmul.f32 %v2320, 1.442695
  %v2322 = vpow.pop %v2321
  %v2323 = vadd.f32 %v2322, 1.0
  %v2324 = vrcp.pop %v2323
  %v2325 = vmul.f32 1.0, %v2324
  %v2326 = vxor.u32 %v2319, 2147483648
  %v2327 = vmul.f32 %v2326, 1.442695
  %v2328 = vpow.pop %v2327
  %v2329 = vadd.f32 %v2328, 1.0
  %v2330 = vrcp.pop %v2329
  %v2331 = vmul.f32 1.0, %v2330
  %v2332 = vmul.f32 %v2325, %v2206
  %v2333 = vtanh.pop %v2317
  %2335 = vrot.lane.b32.xlu0 %v2333, 32
  %v2336 = vpop.permute.xlu0 %2335
  %v2338 = vmul.f32 %v2325, %v2336
  %2340 = vrot.lane.b32.xlu0 %v2338, 32
  %v2341 = vpop.permute.xlu0 %2340
  %v2343 = vadd.f32 %v2332, %v2341
  %v2344 = vmul.f32 %v2331, %v2218
  %v2345 = vtanh.pop %v2319
  %2347 = vrot.lane.b32.xlu0 %v2345, 32
  %v2348 = vpop.permute.xlu0 %2347
  %v2350 = vmul.f32 %v2331, %v2348
  %2352 = vrot.lane.b32.xlu0 %v2350, 32
  %v2353 = vpop.permute.xlu0 %2352
  %v2355 = vadd.f32 %v2344, %v2353
  %v2356 = vtanh.pop %v2343
  %2358 = vrot.lane.b32.xlu0 %v2356, 32
  %v2359 = vpop.permute.xlu0 %2358
  %v2361 = vmul.f32 %v2325, %v2359
  %v2362 = vtanh.pop %v2355
  %2364 = vrot.lane.b32.xlu0 %v2362, 32
  %v2365 = vpop.permute.xlu0 %2364
  %v2367 = vmul.f32 %v2331, %v2365
  %2369 = vrot.lane.b32.xlu0 %v2361, 64
  %v2370 = vpop.permute.xlu0 %2369
  %2372 = vst.msk [vmem:[#allocation4 + $0x28] sm:$0xff] %vm85, %v2370
  %2374 = vrot.lane.b32.xlu0 %v2367, 96
  %v2375 = vpop.permute.xlu0 %2374
  %2377 = vst.msk [vmem:[#allocation4 + $0x10] sm:$0xff] %vm391, %v2375
  %v2378 = vsel %vm85, %v2370, %v2375
  %v2380 = vsel %vm255, %v2378, 0
  %2382 = vmatprep.subr.mxu0 %v1545
  %2383 = vmatpush1.msra.mxu0 %v1544
  %2384 = vmatprep.subr.mxu0 %v1547
  %2385 = vmatpush1.msra.mxu0 %v1546
  %2386 = vmatprep.subr.mxu0 %v1549
  %2387 = vmatpush1.msra.mxu0 %v1548
  %2388 = vmatprep.subr.mxu0 %v1551
  %2389 = vmatpush1.msra.mxu0 %v1550
  %2390 = vmatprep.subr.mxu0 %v1553
  %2391 = vmatpush1.msra.mxu0 %v1552
  %2392 = vmatprep.subr.mxu0 %v1555
  %2393 = vmatpush1.msra.mxu0 %v1554
  %2394 = vmatprep.subr.mxu0 %v1557
  %2395 = vmatpush1.msra.mxu0 %v1556
  %2396 = vmatprep.subr.mxu0 %v1559
  %2397 = vmatpush1.msra.mxu0 %v1558
  %2398 = vmatprep.subr.mxu0 0.0
  %2399 = vmatpush1.msra.mxu0 0.0
  %2400 = vmatprep.subr.mxu0 0.0
  %2401 = vmatpush1.msra.mxu0 0.0
  %2402 = vmatprep.subr.mxu0 0.0
  %2403 = vmatpush1.msra.mxu0 0.0
  %2404 = vmatprep.subr.mxu0 0.0
  %2405 = vmatpush1.msra.mxu0 0.0
  %2406 = vmatprep.subr.mxu0 0.0
  %2407 = vmatpush1.msra.mxu0 0.0
  %2408 = vmatprep.subr.mxu0 0.0
  %2409 = vmatpush1.msra.mxu0 0.0
  %2410 = vmatprep.subr.mxu0 0.0
  %2411 = vmatpush1.msra.mxu0 0.0
  %2412 = vmatprep.subr.mxu0 0.0
  %2413 = vmatpush1.msra.mxu0 0.0
  %2414 = vmatprep.subr.mxu0 0.0
  %2415 = vmatpush1.msra.mxu0 0.0
  %2416 = vmatprep.subr.mxu0 0.0
  %2417 = vmatpush1.msra.mxu0 0.0
  %2418 = vmatprep.subr.mxu0 0.0
  %2419 = vmatpush1.msra.mxu0 0.0
  %2420 = vmatprep.subr.mxu0 0.0
  %2421 = vmatpush1.msra.mxu0 0.0
  %2422 = vmatprep.subr.mxu0 0.0
  %2423 = vmatpush1.msra.mxu0 0.0
  %2424 = vmatprep.subr.mxu0 0.0
  %2425 = vmatpush1.msra.mxu0 0.0
  %2426 = vmatprep.subr.mxu0 0.0
  %2427 = vmatpush1.msra.mxu0 0.0
  %2428 = vmatprep.subr.mxu0 0.0
  %2429 = vmatpush1.msra.mxu0 0.0
  %2430 = vmatprep.subr.mxu0 0.0
  %2431 = vmatpush1.msra.mxu0 0.0
  %2432 = vmatprep.subr.mxu0 0.0
  %2433 = vmatpush1.msra.mxu0 0.0
  %2434 = vmatprep.subr.mxu0 0.0
  %2435 = vmatpush1.msra.mxu0 0.0
  %2436 = vmatprep.subr.mxu0 0.0
  %2437 = vmatpush1.msra.mxu0 0.0
  %2438 = vmatprep.subr.mxu0 0.0
  %2439 = vmatpush1.msra.mxu0 0.0
  %2440 = vmatprep.subr.mxu0 0.0
  %2441 = vmatpush1.msra.mxu0 0.0
  %2442 = vmatprep.subr.mxu0 0.0
  %2443 = vmatpush1.msra.mxu0 0.0
  %2444 = vmatprep.subr.mxu0 0.0
  %2445 = vmatpush1.msra.mxu0 0.0
  %2446 = vmatprep.mubr.f32.mxu0 0.0
  %2447 = vmatmul.mubr.f32.gmra.mrb[0].mxu0 %v2380
  %v2448 = vpop.f32.mrb[0].mxu0
  %v2449 = vadd.f32 0.0, %v2448
  %v2450 = vpop.f32.mrb[0].mxu0
  %v2451 = vadd.f32 0.0, %v2450
  %2452 = vdwg.mxu0
  %v2453 = vld [vmem:[#allocation2 + $0x60] sm:$0xff]
  %v2454 = vadd.f32 %v2449, %v2453
  %v2455 = vld [vmem:[#allocation2 + $0x18] sm:$0xff]
  %v2456 = vadd.f32 %v2451, %v2455
  %v2457 = vxor.u32 %v2454, 2147483648
  %v2458 = vmul.f32 %v2457, 1.442695
  %v2459 = vpow.pop %v2458
  %v2460 = vadd.f32 %v2459, 1.0
  %v2461 = vrcp.pop %v2460
  %v2462 = vmul.f32 1.0, %v2461
  %v2463 = vxor.u32 %v2456, 2147483648
  %v2464 = vmul.f32 %v2463, 1.442695
  %v2465 = vpow.pop %v2464
  %v2466 = vadd.f32 %v2465, 1.0
  %v2467 = vrcp.pop %v2466
  %v2468 = vmul.f32 1.0, %v2467
  %v2469 = vmul.f32 %v2462, %v2343
  %v2470 = vtanh.pop %v2454
  %2472 = vrot.lane.b32.xlu0 %v2470, 32
  %v2473 = vpop.permute.xlu0 %2472
  %v2475 = vmul.f32 %v2462, %v2473
  %2477 = vrot.lane.b32.xlu0 %v2475, 32
  %v2478 = vpop.permute.xlu0 %2477
  %v2480 = vadd.f32 %v2469, %v2478
  %v2481 = vmul.f32 %v2468, %v2355
  %v2482 = vtanh.pop %v2456
  %2484 = vrot.lane.b32.xlu0 %v2482, 32
  %v2485 = vpop.permute.xlu0 %2484
  %v2487 = vmul.f32 %v2468, %v2485
  %2489 = vrot.lane.b32.xlu0 %v2487, 32
  %v2490 = vpop.permute.xlu0 %2489
  %v2492 = vadd.f32 %v2481, %v2490
  %v2493 = vtanh.pop %v2480
  %2495 = vrot.lane.b32.xlu0 %v2493, 32
  %v2496 = vpop.permute.xlu0 %2495
  %v2498 = vmul.f32 %v2462, %v2496
  %v2499 = vtanh.pop %v2492
  %2501 = vrot.lane.b32.xlu0 %v2499, 32
  %v2502 = vpop.permute.xlu0 %2501
  %v2504 = vmul.f32 %v2468, %v2502
  %2506 = vrot.lane.b32.xlu0 %v2498, 64
  %v2507 = vpop.permute.xlu0 %2506
  %2509 = vst.msk [vmem:[#allocation4 + $0x30] sm:$0xff] %vm85, %v2507
  %2511 = vrot.lane.b32.xlu0 %v2504, 96
  %v2512 = vpop.permute.xlu0 %2511
  %2514 = vst.msk [vmem:[#allocation4 + $0x8] sm:$0xff] %vm391, %v2512
  %v2515 = vsel %vm85, %v2507, %v2512
  %v2517 = vsel %vm255, %v2515, 0
  %2519 = vmatprep.subr.mxu0 %v1545
  %2520 = vmatpush1.msra.mxu0 %v1544
  %2521 = vmatprep.subr.mxu0 %v1547
  %2522 = vmatpush1.msra.mxu0 %v1546
  %2523 = vmatprep.subr.mxu0 %v1549
  %2524 = vmatpush1.msra.mxu0 %v1548
  %2525 = vmatprep.subr.mxu0 %v1551
  %2526 = vmatpush1.msra.mxu0 %v1550
  %2527 = vmatprep.subr.mxu0 %v1553
  %2528 = vmatpush1.msra.mxu0 %v1552
  %2529 = vmatprep.subr.mxu0 %v1555
  %2530 = vmatpush1.msra.mxu0 %v1554
  %2531 = vmatprep.subr.mxu0 %v1557
  %2532 = vmatpush1.msra.mxu0 %v1556
  %2533 = vmatprep.subr.mxu0 %v1559
  %2534 = vmatpush1.msra.mxu0 %v1558
  %2535 = vmatprep.subr.mxu0 0.0
  %2536 = vmatpush1.msra.mxu0 0.0
  %2537 = vmatprep.subr.mxu0 0.0
  %2538 = vmatpush1.msra.mxu0 0.0
  %2539 = vmatprep.subr.mxu0 0.0
  %2540 = vmatpush1.msra.mxu0 0.0
  %2541 = vmatprep.subr.mxu0 0.0
  %2542 = vmatpush1.msra.mxu0 0.0
  %2543 = vmatprep.subr.mxu0 0.0
  %2544 = vmatpush1.msra.mxu0 0.0
  %2545 = vmatprep.subr.mxu0 0.0
  %2546 = vmatpush1.msra.mxu0 0.0
  %2547 = vmatprep.subr.mxu0 0.0
  %2548 = vmatpush1.msra.mxu0 0.0
  %2549 = vmatprep.subr.mxu0 0.0
  %2550 = vmatpush1.msra.mxu0 0.0
  %2551 = vmatprep.subr.mxu0 0.0
  %2552 = vmatpush1.msra.mxu0 0.0
  %2553 = vmatprep.subr.mxu0 0.0
  %2554 = vmatpush1.msra.mxu0 0.0
  %2555 = vmatprep.subr.mxu0 0.0
  %2556 = vmatpush1.msra.mxu0 0.0
  %2557 = vmatprep.subr.mxu0 0.0
  %2558 = vmatpush1.msra.mxu0 0.0
  %2559 = vmatprep.subr.mxu0 0.0
  %2560 = vmatpush1.msra.mxu0 0.0
  %2561 = vmatprep.subr.mxu0 0.0
  %2562 = vmatpush1.msra.mxu0 0.0
  %2563 = vmatprep.subr.mxu0 0.0
  %2564 = vmatpush1.msra.mxu0 0.0
  %2565 = vmatprep.subr.mxu0 0.0
  %2566 = vmatpush1.msra.mxu0 0.0
  %2567 = vmatprep.subr.mxu0 0.0
  %2568 = vmatpush1.msra.mxu0 0.0
  %2569 = vmatprep.subr.mxu0 0.0
  %2570 = vmatpush1.msra.mxu0 0.0
  %2571 = vmatprep.subr.mxu0 0.0
  %2572 = vmatpush1.msra.mxu0 0.0
  %2573 = vmatprep.subr.mxu0 0.0
  %2574 = vmatpush1.msra.mxu0 0.0
  %2575 = vmatprep.subr.mxu0 0.0
  %2576 = vmatpush1.msra.mxu0 0.0
  %2577 = vmatprep.subr.mxu0 0.0
  %2578 = vmatpush1.msra.mxu0 0.0
  %2579 = vmatprep.subr.mxu0 0.0
  %2580 = vmatpush1.msra.mxu0 0.0
  %2581 = vmatprep.subr.mxu0 0.0
  %2582 = vmatpush1.msra.mxu0 0.0
  %2583 = vmatprep.mubr.f32.mxu0 0.0
  %2584 = vmatmul.mubr.f32.gmra.mrb[0].mxu0 %v2517
  %v2585 = vpop.f32.mrb[0].mxu0
  %v2586 = vadd.f32 0.0, %v2585
  %v2587 = vpop.f32.mrb[0].mxu0
  %v2588 = vadd.f32 0.0, %v2587
  %2589 = vdwg.mxu0
  %v2590 = vld [vmem:[#allocation2 + $0x70] sm:$0xff]
  %v2591 = vadd.f32 %v2586, %v2590
  %v2592 = vld [vmem:[#allocation2 + $0x8] sm:$0xff]
  %v2593 = vadd.f32 %v2588, %v2592
  %v2594 = vxor.u32 %v2591, 2147483648
  %v2595 = vmul.f32 %v2594, 1.442695
  %v2596 = vpow.pop %v2595
  %v2597 = vadd.f32 %v2596, 1.0
  %v2598 = vrcp.pop %v2597
  %v2599 = vmul.f32 1.0, %v2598
  %v2600 = vxor.u32 %v2593, 2147483648
  %v2601 = vmul.f32 %v2600, 1.442695
  %v2602 = vpow.pop %v2601
  %v2603 = vadd.f32 %v2602, 1.0
  %v2604 = vrcp.pop %v2603
  %v2605 = vmul.f32 1.0, %v2604
  %v2606 = vmul.f32 %v2599, %v2480
  %v2607 = vtanh.pop %v2591
  %2609 = vrot.lane.b32.xlu0 %v2607, 32
  %v2610 = vpop.permute.xlu0 %2609
  %v2612 = vmul.f32 %v2599, %v2610
  %2614 = vrot.lane.b32.xlu0 %v2612, 32
  %v2615 = vpop.permute.xlu0 %2614
  %v2617 = vadd.f32 %v2606, %v2615
  %v2618 = vmul.f32 %v2605, %v2492
  %v2619 = vtanh.pop %v2593
  %2621 = vrot.lane.b32.xlu0 %v2619, 32
  %v2622 = vpop.permute.xlu0 %2621
  %v2624 = vmul.f32 %v2605, %v2622
  %2626 = vrot.lane.b32.xlu0 %v2624, 32
  %v2627 = vpop.permute.xlu0 %2626
  %v2629 = vadd.f32 %v2618, %v2627
  %v2630 = vtanh.pop %v2617
  %2632 = vrot.lane.b32.xlu0 %v2630, 32
  %v2633 = vpop.permute.xlu0 %2632
  %v2635 = vmul.f32 %v2599, %v2633
  %v2636 = vtanh.pop %v2629
  %2638 = vrot.lane.b32.xlu0 %v2636, 32
  %v2639 = vpop.permute.xlu0 %2638
  %v2641 = vmul.f32 %v2605, %v2639
  %2643 = vrot.lane.b32.xlu0 %v2635, 64
  %v2644 = vpop.permute.xlu0 %2643
  %2646 = vst.msk [vmem:[#allocation4 + $0x38] sm:$0xff] %vm85, %v2644
  %2648 = vrot.lane.b32.xlu0 %v2641, 96
  %v2649 = vpop.permute.xlu0 %2648
  %2651 = vst.msk [vmem:[#allocation4] sm:$0xff] %vm391, %v2649
  %v2652 = vld [vmem:[#allocation4] sm:$0xff]
  %v2653 = vld [vmem:[#allocation4 + $0x8] sm:$0xff]
  %v2654 = vld [vmem:[#allocation4 + $0x10] sm:$0xff]
  %v2655 = vld [vmem:[#allocation4 + $0x18] sm:$0xff]
  %v2656 = vld [vmem:[#allocation4 + $0x20] sm:$0xff]
  %v2657 = vld [vmem:[#allocation4 + $0x28] sm:$0xff]
  %v2658 = vld [vmem:[#allocation4 + $0x30] sm:$0xff]
  %v2659 = vld [vmem:[#allocation4 + $0x38] sm:$0xff]
  %v2660 = vld [vmem:[%s1] sm:$0xff]
  %v2661 = vld [vmem:[%s1 + $0x8] sm:$0xff]
  %v2662 = vld [vmem:[%s1 + $0x10] sm:$0xff]
  %v2663 = vld [vmem:[%s1 + $0x18] sm:$0xff]
  %v2664 = vld [vmem:[%s1 + $0x20] sm:$0xff]
  %v2665 = vld [vmem:[%s1 + $0x28] sm:$0xff]
  %v2666 = vld [vmem:[%s1 + $0x30] sm:$0xff]
  %v2667 = vld [vmem:[%s1 + $0x38] sm:$0xff]
  %2669 = vset.pattern.permute.xlu0 0
  %2670 = vperm.xlu0 %2669, %v2660
  %v2671 = vpop.permute.xlu0 %2670
  %2674 = vset.pattern.permute.xlu0 0
  %2675 = vperm.xlu0 %2674, %v2661
  %v2676 = vpop.permute.xlu0 %2675
  %2679 = vset.pattern.permute.xlu0 0
  %2680 = vperm.xlu0 %2679, %v2662
  %v2681 = vpop.permute.xlu0 %2680
  %2684 = vset.pattern.permute.xlu0 0
  %2685 = vperm.xlu0 %2684, %v2663
  %v2686 = vpop.permute.xlu0 %2685
  %2689 = vset.pattern.permute.xlu0 0
  %2690 = vperm.xlu0 %2689, %v2664
  %v2691 = vpop.permute.xlu0 %2690
  %2694 = vset.pattern.permute.xlu0 0
  %2695 = vperm.xlu0 %2694, %v2665
  %v2696 = vpop.permute.xlu0 %2695
  %2699 = vset.pattern.permute.xlu0 0
  %2700 = vperm.xlu0 %2699, %v2666
  %v2701 = vpop.permute.xlu0 %2700
  %2704 = vset.pattern.permute.xlu0 0
  %2705 = vperm.xlu0 %2704, %v2667
  %v2706 = vpop.permute.xlu0 %2705
  %v2708 = vmul.f32 %v2652, %v2671
  %v2709 = vmul.f32 %v2653, %v2676
  %v2710 = vmul.f32 %v2654, %v2681
  %v2711 = vmul.f32 %v2655, %v2686
  %v2712 = vmul.f32 %v2656, %v2691
  %v2713 = vmul.f32 %v2657, %v2696
  %v2714 = vmul.f32 %v2658, %v2701
  %v2715 = vmul.f32 %v2659, %v2706
  %v2716 = vpack.c.bf16 %v2709, %v2708
  %v2717 = vpack.c.bf16 %v2711, %v2710
  %v2718 = vpack.c.bf16 %v2713, %v2712
  %v2719 = vpack.c.bf16 %v2715, %v2714
  %v2720 = vld [vmem:[%s5] sm:$0xf]
  %v2721 = vld [vmem:[%s5 + $0x4] sm:$0xf]
  %v2722 = vld [vmem:[%s5 + $0x8] sm:$0xf]
  %v2723 = vld [vmem:[%s5 + $0xc] sm:$0xf]
  %v2724 = vld [vmem:[%s5 + $0x10] sm:$0xf]
  %v2725 = vld [vmem:[%s5 + $0x14] sm:$0xf]
  %v2726 = vld [vmem:[%s5 + $0x18] sm:$0xf]
  %v2727 = vld [vmem:[%s5 + $0x1c] sm:$0xf]
  %v2728 = vld [vmem:[%s16 + $0x2] ss:$0 sm:$0xff]
  %v2737 = vunpack.c.l.b16 %v2720
  %v2738 = vunpack.c.l.b16 %v2721
  %v2739 = vunpack.c.l.b16 %v2722
  %v2740 = vunpack.c.l.b16 %v2723
  %v2741 = vunpack.c.l.b16 %v2724
  %v2742 = vunpack.c.l.b16 %v2725
  %v2743 = vunpack.c.l.b16 %v2726
  %v2744 = vunpack.c.l.b16 %v2727
  %v2745 = vpack.c.b16 %v2738, %v2737
  %v2746 = vpack.c.b16 %v2740, %v2739
  %v2747 = vpack.c.b16 %v2742, %v2741
  %v2748 = vpack.c.b16 %v2744, %v2743
  %v2754 = vsel %vm255, %v2716, 0
  %v2757 = vsel %vm255, %v2717, 0
  %v2760 = vsel %vm255, %v2718, 0
  %v2763 = vsel %vm255, %v2719, 0
  %2765 = vmatprep.subr.bf16.mxu0 0
  %2766 = vmatpush1.bf16.msra.mxu0 %v2745
  %2767 = vmatprep.subr.bf16.mxu0 0
  %2768 = vmatpush1.bf16.msra.mxu0 %v2746
  %2769 = vmatprep.subr.bf16.mxu0 0
  %2770 = vmatpush1.bf16.msra.mxu0 %v2747
  %2771 = vmatprep.subr.bf16.mxu0 0
  %2772 = vmatpush1.bf16.msra.mxu0 %v2748
  %2773 = vmatprep.subr.bf16.mxu0 0
  %2774 = vmatpush1.bf16.msra.mxu0 0
  %2775 = vmatprep.subr.bf16.mxu0 0
  %2776 = vmatpush1.bf16.msra.mxu0 0
  %2777 = vmatprep.subr.bf16.mxu0 0
  %2778 = vmatpush1.bf16.msra.mxu0 0
  %2779 = vmatprep.subr.bf16.mxu0 0
  %2780 = vmatpush1.bf16.msra.mxu0 0
  %2781 = vmatprep.subr.bf16.mxu0 0
  %2782 = vmatpush1.bf16.msra.mxu0 0
  %2783 = vmatprep.subr.bf16.mxu0 0
  %2784 = vmatpush1.bf16.msra.mxu0 0
  %2785 = vmatprep.subr.bf16.mxu0 0
  %2786 = vmatpush1.bf16.msra.mxu0 0
  %2787 = vmatprep.subr.bf16.mxu0 0
  %2788 = vmatpush1.bf16.msra.mxu0 0
  %2789 = vmatprep.subr.bf16.mxu0 0
  %2790 = vmatpush1.bf16.msra.mxu0 0
  %2791 = vmatprep.subr.bf16.mxu0 0
  %2792 = vmatpush1.bf16.msra.mxu0 0
  %2793 = vmatprep.subr.bf16.mxu0 0
  %2794 = vmatpush1.bf16.msra.mxu0 0
  %2795 = vmatprep.subr.bf16.mxu0 0
  %2796 = vmatpush1.bf16.msra.mxu0 0
  %2797 = vmatprep.mubr.bf16.mxu0 0
  %2798 = vmatmul.mubr.bf16.gmra.mrb[0].mxu0 %v2754
  %v2799 = vpop.f32.mrb[0].mxu0
  %v2800 = vadd.f32 %v2728, %v2799
  %v2801 = vpop.f32.mrb[0].mxu0
  %v2802 = vpop.f32.mrb[0].mxu0
  %v2803 = vadd.f32 %v2728, %v2802
  %v2804 = vpop.f32.mrb[0].mxu0
  %2805 = vmatprep.mubr.bf16.mxu0 0
  %2806 = vmatmul.mubr.bf16.gmra.mrb[0].mxu0 %v2757
  %v2807 = vpop.f32.mrb[0].mxu0
  %v2808 = vadd.f32 %v2728, %v2807
  %v2809 = vpop.f32.mrb[0].mxu0
  %v2810 = vpop.f32.mrb[0].mxu0
  %v2811 = vadd.f32 %v2728, %v2810
  %v2812 = vpop.f32.mrb[0].mxu0
  %2813 = vmatprep.mubr.bf16.mxu0 0
  %2814 = vmatmul.mubr.bf16.gmra.mrb[0].mxu0 %v2760
  %v2815 = vpop.f32.mrb[0].mxu0
  %v2816 = vadd.f32 %v2728, %v2815
  %v2817 = vpop.f32.mrb[0].mxu0
  %v2818 = vpop.f32.mrb[0].mxu0
  %v2819 = vadd.f32 %v2728, %v2818
  %v2820 = vpop.f32.mrb[0].mxu0
  %2821 = vmatprep.mubr.bf16.mxu0 0
  %2822 = vmatmul.mubr.bf16.gmra.mrb[0].mxu0 %v2763
  %v2823 = vpop.f32.mrb[0].mxu0
  %v2824 = vadd.f32 %v2728, %v2823
  %v2825 = vpop.f32.mrb[0].mxu0
  %v2826 = vpop.f32.mrb[0].mxu0
  %v2827 = vadd.f32 %v2728, %v2826
  %v2828 = vpop.f32.mrb[0].mxu0
  %2829 = vdwg.mxu0
  %v2830 = vtanh.pop %v2800
  %v2831 = vtanh.pop %v2803
  %v2832 = vtanh.pop %v2808
  %v2833 = vtanh.pop %v2811
  %v2834 = vtanh.pop %v2816
  %v2835 = vtanh.pop %v2819
  %v2836 = vtanh.pop %v2824
  %v2837 = vtanh.pop %v2827
  %v2838 = vld [vmem:[%s16 + $0x3] ss:$0 sm:$0xff]
  %v2839 = vmul.f32 %v2830, %v2838
  %v2840 = vmul.f32 %v2831, %v2838
  %v2841 = vmul.f32 %v2832, %v2838
  %v2842 = vmul.f32 %v2833, %v2838
  %v2843 = vmul.f32 %v2834, %v2838
  %v2844 = vmul.f32 %v2835, %v2838
  %v2845 = vmul.f32 %v2836, %v2838
  %v2846 = vmul.f32 %v2837, %v2838
  %v2847 = vsel %vm85, %v2839, 0.0
  %2848 = vadd.xlane.f32.xlu0 %v2847
  %v2849 = vpop.xlane.xlu0 %2848
  %v2850 = vsel %vm85, %v2840, 0.0
  %2851 = vadd.xlane.f32.xlu0 %v2850
  %v2852 = vpop.xlane.xlu0 %2851
  %v2853 = vsel %vm85, %v2841, 0.0
  %2854 = vadd.xlane.f32.xlu0 %v2853
  %v2855 = vpop.xlane.xlu0 %2854
  %v2856 = vsel %vm85, %v2842, 0.0
  %2857 = vadd.xlane.f32.xlu0 %v2856
  %v2858 = vpop.xlane.xlu0 %2857
  %v2859 = vsel %vm85, %v2843, 0.0
  %2860 = vadd.xlane.f32.xlu0 %v2859
  %v2861 = vpop.xlane.xlu0 %2860
  %v2862 = vsel %vm85, %v2844, 0.0
  %2863 = vadd.xlane.f32.xlu0 %v2862
  %v2864 = vpop.xlane.xlu0 %2863
  %v2865 = vsel %vm85, %v2845, 0.0
  %2866 = vadd.xlane.f32.xlu0 %v2865
  %v2867 = vpop.xlane.xlu0 %2866
  %v2868 = vsel %vm85, %v2846, 0.0
  %2869 = vadd.xlane.f32.xlu0 %v2868
  %v2870 = vpop.xlane.xlu0 %2869
  %2879 = vrot.lane.b32.xlu0 %v2839, 96
  %v2880 = vpop.permute.xlu0 %2879
  %2881 = vrot.lane.b32.xlu0 %v2840, 96
  %v2882 = vpop.permute.xlu0 %2881
  %2883 = vrot.lane.b32.xlu0 %v2841, 96
  %v2884 = vpop.permute.xlu0 %2883
  %2885 = vrot.lane.b32.xlu0 %v2842, 96
  %v2886 = vpop.permute.xlu0 %2885
  %2887 = vrot.lane.b32.xlu0 %v2843, 96
  %v2888 = vpop.permute.xlu0 %2887
  %2889 = vrot.lane.b32.xlu0 %v2844, 96
  %v2890 = vpop.permute.xlu0 %2889
  %2891 = vrot.lane.b32.xlu0 %v2845, 96
  %v2892 = vpop.permute.xlu0 %2891
  %2893 = vrot.lane.b32.xlu0 %v2846, 96
  %v2894 = vpop.permute.xlu0 %2893
  %v2903 = vsel %vm85, %v2880, 0.0
  %2904 = vadd.xlane.f32.xlu0 %v2903
  %v2905 = vpop.xlane.xlu0 %2904
  %v2906 = vsel %vm85, %v2882, 0.0
  %2907 = vadd.xlane.f32.xlu0 %v2906
  %v2908 = vpop.xlane.xlu0 %2907
  %v2909 = vsel %vm85, %v2884, 0.0
  %2910 = vadd.xlane.f32.xlu0 %v2909
  %v2911 = vpop.xlane.xlu0 %2910
  %v2912 = vsel %vm85, %v2886, 0.0
  %2913 = vadd.xlane.f32.xlu0 %v2912
  %v2914 = vpop.xlane.xlu0 %2913
  %v2915 = vsel %vm85, %v2888, 0.0
  %2916 = vadd.xlane.f32.xlu0 %v2915
  %v2917 = vpop.xlane.xlu0 %2916
  %v2918 = vsel %vm85, %v2890, 0.0
  %2919 = vadd.xlane.f32.xlu0 %v2918
  %v2920 = vpop.xlane.xlu0 %2919
  %v2921 = vsel %vm85, %v2892, 0.0
  %2922 = vadd.xlane.f32.xlu0 %v2921
  %v2923 = vpop.xlane.xlu0 %2922
  %v2924 = vsel %vm85, %v2894, 0.0
  %2925 = vadd.xlane.f32.xlu0 %v2924
  %v2926 = vpop.xlane.xlu0 %2925
  %2927 = vrot.lane.b32.xlu0 %v2839, 64
  %v2928 = vpop.permute.xlu0 %2927
  %2929 = vrot.lane.b32.xlu0 %v2840, 64
  %v2930 = vpop.permute.xlu0 %2929
  %2931 = vrot.lane.b32.xlu0 %v2841, 64
  %v2932 = vpop.permute.xlu0 %2931
  %2933 = vrot.lane.b32.xlu0 %v2842, 64
  %v2934 = vpop.permute.xlu0 %2933
  %2935 = vrot.lane.b32.xlu0 %v2843, 64
  %v2936 = vpop.permute.xlu0 %2935
  %2937 = vrot.lane.b32.xlu0 %v2844, 64
  %v2938 = vpop.permute.xlu0 %2937
  %2939 = vrot.lane.b32.xlu0 %v2845, 64
  %v2940 = vpop.permute.xlu0 %2939
  %2941 = vrot.lane.b32.xlu0 %v2846, 64
  %v2942 = vpop.permute.xlu0 %2941
  %v2951 = vsel %vm85, %v2928, 0.0
  %2952 = vadd.xlane.f32.xlu0 %v2951
  %v2953 = vpop.xlane.xlu0 %2952
  %v2954 = vsel %vm85, %v2930, 0.0
  %2955 = vadd.xlane.f32.xlu0 %v2954
  %v2956 = vpop.xlane.xlu0 %2955
  %v2957 = vsel %vm85, %v2932, 0.0
  %2958 = vadd.xlane.f32.xlu0 %v2957
  %v2959 = vpop.xlane.xlu0 %2958
  %v2960 = vsel %vm85, %v2934, 0.0
  %2961 = vadd.xlane.f32.xlu0 %v2960
  %v2962 = vpop.xlane.xlu0 %2961
  %v2963 = vsel %vm85, %v2936, 0.0
  %2964 = vadd.xlane.f32.xlu0 %v2963
  %v2965 = vpop.xlane.xlu0 %2964
  %v2966 = vsel %vm85, %v2938, 0.0
  %2967 = vadd.xlane.f32.xlu0 %v2966
  %v2968 = vpop.xlane.xlu0 %2967
  %v2969 = vsel %vm85, %v2940, 0.0
  %2970 = vadd.xlane.f32.xlu0 %v2969
  %v2971 = vpop.xlane.xlu0 %2970
  %v2972 = vsel %vm85, %v2942, 0.0
  %2973 = vadd.xlane.f32.xlu0 %v2972
  %v2974 = vpop.xlane.xlu0 %2973
  %vm2975 = vcmask 7168
  %v2976 = vsel %vm2975, %v2849, %v2905
  %v2977 = vsel %vm2975, %v2852, %v2908
  %v2978 = vsel %vm2975, %v2855, %v2911
  %v2979 = vsel %vm2975, %v2858, %v2914
  %v2980 = vsel %vm2975, %v2861, %v2917
  %v2981 = vsel %vm2975, %v2864, %v2920
  %v2982 = vsel %vm2975, %v2867, %v2923
  %v2983 = vsel %vm2975, %v2870, %v2926
  %vm2984 = vcmask 15360
  %v2985 = vsel %vm2984, %v2976, %v2953
  %v2986 = vsel %vm2984, %v2977, %v2956
  %v2987 = vsel %vm2984, %v2978, %v2959
  %v2988 = vsel %vm2984, %v2979, %v2962
  %v2989 = vsel %vm2984, %v2980, %v2965
  %v2990 = vsel %vm2984, %v2981, %v2968
  %v2991 = vsel %vm2984, %v2982, %v2971
  %v2992 = vsel %vm2984, %v2983, %v2974
  %vm2993 = vcmask 23552
  %v2994 = vsel %vm2993, %v2985, -inf
  %v2995 = vsel %vm2993, %v2986, -inf
  %v2996 = vsel %vm2993, %v2987, -inf
  %v2997 = vsel %vm2993, %v2988, -inf
  %v2998 = vsel %vm2993, %v2989, -inf
  %v2999 = vmax.f32 %v2994, %v2998
  %v3000 = vsel %vm2993, %v2990, -inf
  %v3001 = vmax.f32 %v2995, %v3000
  %v3002 = vsel %vm2993, %v2991, -inf
  %v3003 = vmax.f32 %v2996, %v3002
  %v3004 = vsel %vm2993, %v2992, -inf
  %v3005 = vmax.f32 %v2997, %v3004
  %v3006 = vmax.f32 %v2999, %v3001
  %v3007 = vmax.f32 %v3003, %v3005
  %v3008 = vmax.f32 %v3006, %v3007
  %v3009 = vsub.f32 %v2985, %v3008
  %v3010 = vsub.f32 %v2986, %v3008
  %v3011 = vsub.f32 %v2987, %v3008
  %v3012 = vsub.f32 %v2988, %v3008
  %v3013 = vsub.f32 %v2989, %v3008
  %v3014 = vsub.f32 %v2990, %v3008
  %v3015 = vsub.f32 %v2991, %v3008
  %v3016 = vsub.f32 %v2992, %v3008
  %v3017 = vmul.f32 %v3009, 1.442695
  %v3018 = vpow.pop %v3017
  %v3019 = vmul.f32 %v3010, 1.442695
  %v3020 = vpow.pop %v3019
  %v3021 = vmul.f32 %v3011, 1.442695
  %v3022 = vpow.pop %v3021
  %v3023 = vmul.f32 %v3012, 1.442695
  %v3024 = vpow.pop %v3023
  %v3025 = vmul.f32 %v3013, 1.442695
  %v3026 = vpow.pop %v3025
  %v3027 = vmul.f32 %v3014, 1.442695
  %v3028 = vpow.pop %v3027
  %v3029 = vmul.f32 %v3015, 1.442695
  %v3030 = vpow.pop %v3029
  %v3031 = vmul.f32 %v3016, 1.442695
  %v3032 = vpow.pop %v3031
  %v3033 = vsel %vm2993, %v3018, 0.0
  %v3034 = vsel %vm2993, %v3020, 0.0
  %v3035 = vadd.f32 %v3033, %v3034
  %v3036 = vsel %vm2993, %v3022, 0.0
  %v3037 = vadd.f32 %v3035, %v3036
  %v3038 = vsel %vm2993, %v3024, 0.0
  %v3039 = vadd.f32 %v3037, %v3038
  %v3040 = vsel %vm2993, %v3026, 0.0
  %v3041 = vadd.f32 %v3039, %v3040
  %v3042 = vsel %vm2993, %v3028, 0.0
  %v3043 = vadd.f32 %v3041, %v3042
  %v3044 = vsel %vm2993, %v3030, 0.0
  %v3045 = vadd.f32 %v3043, %v3044
  %v3046 = vsel %vm2993, %v3032, 0.0
  %v3047 = vadd.f32 %v3045, %v3046
  %v3048 = vrcp.pop %v3047
  %v3049 = vmul.f32 %v3018, %v3048
  %v3050 = vmul.f32 %v3020, %v3048
  %v3051 = vmul.f32 %v3022, %v3048
  %v3052 = vmul.f32 %v3024, %v3048
  %v3053 = vmul.f32 %v3026, %v3048
  %v3054 = vmul.f32 %v3028, %v3048
  %v3055 = vmul.f32 %v3030, %v3048
  %v3056 = vmul.f32 %v3032, %v3048
  %3058 = vset.pattern.permute.xlu0 0
  %3059 = vperm.xlu0 %3058, %v3049
  %v3060 = vpop.permute.xlu0 %3059
  %3063 = vset.pattern.permute.xlu0 0
  %3064 = vperm.xlu0 %3063, %v3050
  %v3065 = vpop.permute.xlu0 %3064
  %3068 = vset.pattern.permute.xlu0 0
  %3069 = vperm.xlu0 %3068, %v3051
  %v3070 = vpop.permute.xlu0 %3069
  %3073 = vset.pattern.permute.xlu0 0
  %3074 = vperm.xlu0 %3073, %v3052
  %v3075 = vpop.permute.xlu0 %3074
  %3078 = vset.pattern.permute.xlu0 0
  %3079 = vperm.xlu0 %3078, %v3053
  %v3080 = vpop.permute.xlu0 %3079
  %3083 = vset.pattern.permute.xlu0 0
  %3084 = vperm.xlu0 %3083, %v3054
  %v3085 = vpop.permute.xlu0 %3084
  %3088 = vset.pattern.permute.xlu0 0
  %3089 = vperm.xlu0 %3088, %v3055
  %v3090 = vpop.permute.xlu0 %3089
  %3093 = vset.pattern.permute.xlu0 0
  %3094 = vperm.xlu0 %3093, %v3056
  %v3095 = vpop.permute.xlu0 %3094
  %v3097 = vmul.f32 %v2708, %v3060
  %v3098 = vmul.f32 %v2709, %v3065
  %v3099 = vmul.f32 %v2710, %v3070
  %v3100 = vmul.f32 %v2711, %v3075
  %v3101 = vmul.f32 %v2712, %v3080
  %v3102 = vmul.f32 %v2713, %v3085
  %v3103 = vmul.f32 %v2714, %v3090
  %v3104 = vmul.f32 %v2715, %v3095
  %v3105 = vsel %vm255, %v3097, 0.0
  %v3106 = vsel %vm255, %v3098, 0.0
  %v3107 = vadd.f32 %v3105, %v3106
  %v3108 = vsel %vm255, %v3099, 0.0
  %v3109 = vadd.f32 %v3107, %v3108
  %v3110 = vsel %vm255, %v3100, 0.0
  %v3111 = vadd.f32 %v3109, %v3110
  %v3112 = vsel %vm255, %v3101, 0.0
  %v3113 = vadd.f32 %v3111, %v3112
  %v3114 = vsel %vm255, %v3102, 0.0
  %v3115 = vadd.f32 %v3113, %v3114
  %v3116 = vsel %vm255, %v3103, 0.0
  %v3117 = vadd.f32 %v3115, %v3116
  %v3118 = vsel %vm255, %v3104, 0.0
  %v3119 = vadd.f32 %v3117, %v3118
  %3120 = vset.pattern.permute.xlu0 1
  %3121 = vperm.xlu0 %3120, %v3049
  %v3122 = vpop.permute.xlu0 %3121
  %3124 = vset.pattern.permute.xlu0 1
  %3125 = vperm.xlu0 %3124, %v3050
  %v3126 = vpop.permute.xlu0 %3125
  %3128 = vset.pattern.permute.xlu0 1
  %3129 = vperm.xlu0 %3128, %v3051
  %v3130 = vpop.permute.xlu0 %3129
  %3132 = vset.pattern.permute.xlu0 1
  %3133 = vperm.xlu0 %3132, %v3052
  %v3134 = vpop.permute.xlu0 %3133
  %3136 = vset.pattern.permute.xlu0 1
  %3137 = vperm.xlu0 %3136, %v3053
  %v3138 = vpop.permute.xlu0 %3137
  %3140 = vset.pattern.permute.xlu0 1
  %3141 = vperm.xlu0 %3140, %v3054
  %v3142 = vpop.permute.xlu0 %3141
  %3144 = vset.pattern.permute.xlu0 1
  %3145 = vperm.xlu0 %3144, %v3055
  %v3146 = vpop.permute.xlu0 %3145
  %3148 = vset.pattern.permute.xlu0 1
  %3149 = vperm.xlu0 %3148, %v3056
  %v3150 = vpop.permute.xlu0 %3149
  %v3152 = vmul.f32 %v2708, %v3122
  %v3153 = vmul.f32 %v2709, %v3126
  %v3154 = vmul.f32 %v2710, %v3130
  %v3155 = vmul.f32 %v2711, %v3134
  %v3156 = vmul.f32 %v2712, %v3138
  %v3157 = vmul.f32 %v2713, %v3142
  %v3158 = vmul.f32 %v2714, %v3146
  %v3159 = vmul.f32 %v2715, %v3150
  %v3160 = vsel %vm255, %v3152, 0.0
  %v3161 = vsel %vm255, %v3153, 0.0
  %v3162 = vadd.f32 %v3160, %v3161
  %v3163 = vsel %vm255, %v3154, 0.0
  %v3164 = vadd.f32 %v3162, %v3163
  %v3165 = vsel %vm255, %v3155, 0.0
  %v3166 = vadd.f32 %v3164, %v3165
  %v3167 = vsel %vm255, %v3156, 0.0
  %v3168 = vadd.f32 %v3166, %v3167
  %v3169 = vsel %vm255, %v3157, 0.0
  %v3170 = vadd.f32 %v3168, %v3169
  %v3171 = vsel %vm255, %v3158, 0.0
  %v3172 = vadd.f32 %v3170, %v3171
  %v3173 = vsel %vm255, %v3159, 0.0
  %v3174 = vadd.f32 %v3172, %v3173
  %3175 = vset.pattern.permute.xlu0 2
  %3176 = vperm.xlu0 %3175, %v3049
  %v3177 = vpop.permute.xlu0 %3176
  %3179 = vset.pattern.permute.xlu0 2
  %3180 = vperm.xlu0 %3179, %v3050
  %v3181 = vpop.permute.xlu0 %3180
  %3183 = vset.pattern.permute.xlu0 2
  %3184 = vperm.xlu0 %3183, %v3051
  %v3185 = vpop.permute.xlu0 %3184
  %3187 = vset.pattern.permute.xlu0 2
  %3188 = vperm.xlu0 %3187, %v3052
  %v3189 = vpop.permute.xlu0 %3188
  %3191 = vset.pattern.permute.xlu0 2
  %3192 = vperm.xlu0 %3191, %v3053
  %v3193 = vpop.permute.xlu0 %3192
  %3195 = vset.pattern.permute.xlu0 2
  %3196 = vperm.xlu0 %3195, %v3054
  %v3197 = vpop.permute.xlu0 %3196
  %3199 = vset.pattern.permute.xlu0 2
  %3200 = vperm.xlu0 %3199, %v3055
  %v3201 = vpop.permute.xlu0 %3200
  %3203 = vset.pattern.permute.xlu0 2
  %3204 = vperm.xlu0 %3203, %v3056
  %v3205 = vpop.permute.xlu0 %3204
  %v3207 = vmul.f32 %v2708, %v3177
  %v3208 = vmul.f32 %v2709, %v3181
  %v3209 = vmul.f32 %v2710, %v3185
  %v3210 = vmul.f32 %v2711, %v3189
  %v3211 = vmul.f32 %v2712, %v3193
  %v3212 = vmul.f32 %v2713, %v3197
  %v3213 = vmul.f32 %v2714, %v3201
  %v3214 = vmul.f32 %v2715, %v3205
  %v3215 = vsel %vm255, %v3207, 0.0
  %v3216 = vsel %vm255, %v3208, 0.0
  %v3217 = vadd.f32 %v3215, %v3216
  %v3218 = vsel %vm255, %v3209, 0.0
  %v3219 = vadd.f32 %v3217, %v3218
  %v3220 = vsel %vm255, %v3210, 0.0
  %v3221 = vadd.f32 %v3219, %v3220
  %v3222 = vsel %vm255, %v3211, 0.0
  %v3223 = vadd.f32 %v3221, %v3222
  %v3224 = vsel %vm255, %v3212, 0.0
  %v3225 = vadd.f32 %v3223, %v3224
  %v3226 = vsel %vm255, %v3213, 0.0
  %v3227 = vadd.f32 %v3225, %v3226
  %v3228 = vsel %vm255, %v3214, 0.0
  %v3229 = vadd.f32 %v3227, %v3228
  %3231 = vrot.lane.b32.xlu0 %v3174, 64
  %v3232 = vpop.permute.xlu0 %3231
  %v3234 = vsel %vm255, %v3119, %v3232
  %v3235 = vld [vmem:[%s2] sm:$0xff]
  %v3236 = vpack.c.bf16 %v3235, %v3235
  %v3237 = vld [vmem:[%s6] sm:$0xf]
  %v3238 = vld [vmem:[%s6 + $0x4] sm:$0xf]
  %v3239 = vld [vmem:[%s16 + $0x4] ss:$0 sm:$0xff]
  %v3242 = vunpack.c.l.b16 %v3237
  %v3243 = vunpack.c.l.b16 %v3238
  %v3244 = vpack.c.b16 %v3243, %v3242
  %vm3246 = vcmask 130048
  %v3248 = vsel %vm3246, %v3236, 0
  %3250 = vmatprep.subr.bf16.mxu0 0
  %3251 = vmatpush1.bf16.msra.mxu0 %v3244
  %3252 = vmatprep.subr.bf16.mxu0 0
  %3253 = vmatpush1.bf16.msra.mxu0 0
  %3254 = vmatprep.subr.bf16.mxu0 0
  %3255 = vmatpush1.bf16.msra.mxu0 0
  %3256 = vmatprep.subr.bf16.mxu0 0
  %3257 = vmatpush1.bf16.msra.mxu0 0
  %3258 = vmatprep.subr.bf16.mxu0 0
  %3259 = vmatpush1.bf16.msra.mxu0 0
  %3260 = vmatprep.subr.bf16.mxu0 0
  %3261 = vmatpush1.bf16.msra.mxu0 0
  %3262 = vmatprep.subr.bf16.mxu0 0
  %3263 = vmatpush1.bf16.msra.mxu0 0
  %3264 = vmatprep.subr.bf16.mxu0 0
  %3265 = vmatpush1.bf16.msra.mxu0 0
  %3266 = vmatprep.subr.bf16.mxu0 0
  %3267 = vmatpush1.bf16.msra.mxu0 0
  %3268 = vmatprep.subr.bf16.mxu0 0
  %3269 = vmatpush1.bf16.msra.mxu0 0
  %3270 = vmatprep.subr.bf16.mxu0 0
  %3271 = vmatpush1.bf16.msra.mxu0 0
  %3272 = vmatprep.subr.bf16.mxu0 0
  %3273 = vmatpush1.bf16.msra.mxu0 0
  %3274 = vmatprep.subr.bf16.mxu0 0
  %3275 = vmatpush1.bf16.msra.mxu0 0
  %3276 = vmatprep.subr.bf16.mxu0 0
  %3277 = vmatpush1.bf16.msra.mxu0 0
  %3278 = vmatprep.subr.bf16.mxu0 0
  %3279 = vmatpush1.bf16.msra.mxu0 0
  %3280 = vmatprep.subr.bf16.mxu0 0
  %3281 = vmatpush1.bf16.msra.mxu0 0
  %3282 = vmatprep.mubr.bf16.mxu0 0
  %3283 = vmatmul.mubr.bf16.gmra.mrb[0].mxu0 %v3248
  %v3284 = vpop.f32.mrb[0].mxu0
  %v3285 = vadd.f32 %v3239, %v3284
  %v3286 = vpop.f32.mrb[0].mxu0
  %v3287 = vpop.f32.mrb[0].mxu0
  %v3288 = vpop.f32.mrb[0].mxu0
  %3289 = vdwg.mxu0
  %v3290 = vmax.f32 %v3285, 0.0
  %v3291 = vpack.c.bf16 %v3290, %v3290
  %v3292 = vld [vmem:[%s7] sm:$0xf]
  %v3293 = vld [vmem:[%s7 + $0x4] sm:$0xf]
  %v3294 = vld [vmem:[%s7 + $0x8] sm:$0xf]
  %v3295 = vld [vmem:[%s7 + $0xc] sm:$0xf]
  %v3296 = vld [vmem:[%s7 + $0x10] sm:$0xf]
  %v3297 = vld [vmem:[%s7 + $0x14] sm:$0xf]
  %v3298 = vld [vmem:[%s7 + $0x18] sm:$0xf]
  %v3299 = vld [vmem:[%s7 + $0x1c] sm:$0xf]
  %v3300 = vld [vmem:[%s7 + $0x20] sm:$0xf]
  %v3301 = vld [vmem:[%s7 + $0x24] sm:$0xf]
  %v3302 = vld [vmem:[%s7 + $0x28] sm:$0xf]
  %v3303 = vld [vmem:[%s7 + $0x2c] sm:$0xf]
  %v3304 = vld [vmem:[%s7 + $0x30] sm:$0xf]
  %v3305 = vld [vmem:[%s7 + $0x34] sm:$0xf]
  %v3306 = vld [vmem:[%s7 + $0x38] sm:$0xf]
  %v3307 = vld [vmem:[%s7 + $0x3c] sm:$0xf]
  %v3308 = vld [vmem:[%s16 + $0x5] ss:$0 sm:$0xff]
  %v3325 = vunpack.c.l.b16 %v3292
  %v3326 = vunpack.c.l.b16 %v3293
  %v3327 = vunpack.c.l.b16 %v3294
  %v3328 = vunpack.c.l.b16 %v3295
  %v3329 = vunpack.c.l.b16 %v3296
  %v3330 = vunpack.c.l.b16 %v3297
  %v3331 = vunpack.c.l.b16 %v3298
  %v3332 = vunpack.c.l.b16 %v3299
  %v3333 = vunpack.c.l.b16 %v3300
  %v3334 = vunpack.c.l.b16 %v3301
  %v3335 = vunpack.c.l.b16 %v3302
  %v3336 = vunpack.c.l.b16 %v3303
  %v3337 = vunpack.c.l.b16 %v3304
  %v3338 = vunpack.c.l.b16 %v3305
  %v3339 = vunpack.c.l.b16 %v3306
  %v3340 = vunpack.c.l.b16 %v3307
  %v3341 = vpack.c.b16 %v3326, %v3325
  %v3342 = vpack.c.b16 %v3328, %v3327
  %v3343 = vpack.c.b16 %v3330, %v3329
  %v3344 = vpack.c.b16 %v3332, %v3331
  %v3345 = vpack.c.b16 %v3334, %v3333
  %v3346 = vpack.c.b16 %v3336, %v3335
  %v3347 = vpack.c.b16 %v3338, %v3337
  %v3348 = vpack.c.b16 %v3340, %v3339
  %3357 = vmatprep.subr.bf16.mxu0 0
  %3358 = vmatpush1.bf16.msra.mxu0 %v3341
  %3359 = vmatprep.subr.bf16.mxu0 0
  %3360 = vmatpush1.bf16.msra.mxu0 %v3342
  %3361 = vmatprep.subr.bf16.mxu0 0
  %3362 = vmatpush1.bf16.msra.mxu0 %v3343
  %3363 = vmatprep.subr.bf16.mxu0 0
  %3364 = vmatpush1.bf16.msra.mxu0 %v3344
  %3365 = vmatprep.subr.bf16.mxu0 0
  %3366 = vmatpush1.bf16.msra.mxu0 %v3345
  %3367 = vmatprep.subr.bf16.mxu0 0
  %3368 = vmatpush1.bf16.msra.mxu0 %v3346
  %3369 = vmatprep.subr.bf16.mxu0 0
  %3370 = vmatpush1.bf16.msra.mxu0 %v3347
  %3371 = vmatprep.subr.bf16.mxu0 0
  %3372 = vmatpush1.bf16.msra.mxu0 %v3348
  %3373 = vmatprep.subr.bf16.mxu0 0
  %3374 = vmatpush1.bf16.msra.mxu0 0
  %3375 = vmatprep.subr.bf16.mxu0 0
  %3376 = vmatpush1.bf16.msra.mxu0 0
  %3377 = vmatprep.subr.bf16.mxu0 0
  %3378 = vmatpush1.bf16.msra.mxu0 0
  %3379 = vmatprep.subr.bf16.mxu0 0
  %3380 = vmatpush1.bf16.msra.mxu0 0
  %3381 = vmatprep.subr.bf16.mxu0 0
  %3382 = vmatpush1.bf16.msra.mxu0 0
  %3383 = vmatprep.subr.bf16.mxu0 0
  %3384 = vmatpush1.bf16.msra.mxu0 0
  %3385 = vmatprep.subr.bf16.mxu0 0
  %3386 = vmatpush1.bf16.msra.mxu0 0
  %3387 = vmatprep.subr.bf16.mxu0 0
  %3388 = vmatpush1.bf16.msra.mxu0 0
  %3389 = vmatprep.mubr.bf16.mxu0 0
  %3390 = vmatmul.mubr.bf16.gmra.mrb[0].mxu0 %v3291
  %v3391 = vpop.f32.mrb[0].mxu0
  %v3392 = vadd.f32 %v3308, %v3391
  %v3393 = vpop.f32.mrb[0].mxu0
  %v3394 = vpop.f32.mrb[0].mxu0
  %v3395 = vpop.f32.mrb[0].mxu0
  %3396 = vdwg.mxu0
  %v3397 = vmax.f32 %v3392, 0.0
  %v3398 = vpack.c.bf16 %v3397, %v3397
  %v3399 = vld [vmem:[%s8] sm:$0xf]
  %v3400 = vld [vmem:[%s8 + $0x4] sm:$0xf]
  %v3401 = vld [vmem:[%s8 + $0x8] sm:$0xf]
  %v3402 = vld [vmem:[%s8 + $0xc] sm:$0xf]
  %v3403 = vld [vmem:[%s8 + $0x10] sm:$0xf]
  %v3404 = vld [vmem:[%s8 + $0x14] sm:$0xf]
  %v3405 = vld [vmem:[%s8 + $0x18] sm:$0xf]
  %v3406 = vld [vmem:[%s8 + $0x1c] sm:$0xf]
  %v3407 = vld [vmem:[%s8 + $0x20] sm:$0xf]
  %v3408 = vld [vmem:[%s8 + $0x24] sm:$0xf]
  %v3409 = vld [vmem:[%s8 + $0x28] sm:$0xf]
  %v3410 = vld [vmem:[%s8 + $0x2c] sm:$0xf]
  %v3411 = vld [vmem:[%s16 + $0x6] ss:$0 sm:$0xff]
  %v3424 = vunpack.c.l.b16 %v3399
  %v3425 = vunpack.c.l.b16 %v3400
  %v3426 = vunpack.c.l.b16 %v3401
  %v3427 = vunpack.c.l.b16 %v3402
  %v3428 = vunpack.c.l.b16 %v3403
  %v3429 = vunpack.c.l.b16 %v3404
  %v3430 = vunpack.c.l.b16 %v3405
  %v3431 = vunpack.c.l.b16 %v3406
  %v3432 = vunpack.c.l.b16 %v3407
  %v3433 = vunpack.c.l.b16 %v3408
  %v3434 = vunpack.c.l.b16 %v3409
  %v3435 = vunpack.c.l.b16 %v3410
  %v3436 = vpack.c.b16 %v3425, %v3424
  %v3437 = vpack.c.b16 %v3427, %v3426
  %v3438 = vpack.c.b16 %v3429, %v3428
  %v3439 = vpack.c.b16 %v3431, %v3430
  %v3440 = vpack.c.b16 %v3433, %v3432
  %v3441 = vpack.c.b16 %v3435, %v3434
  %vm3448 = vcmask 785408
  %v3450 = vsel %vm3448, %v3398, 0
  %3452 = vmatprep.subr.bf16.mxu0 0
  %3453 = vmatpush1.bf16.msra.mxu0 %v3436
  %3454 = vmatprep.subr.bf16.mxu0 0
  %3455 = vmatpush1.bf16.msra.mxu0 %v3437
  %3456 = vmatprep.subr.bf16.mxu0 0
  %3457 = vmatpush1.bf16.msra.mxu0 %v3438
  %3458 = vmatprep.subr.bf16.mxu0 0
  %3459 = vmatpush1.bf16.msra.mxu0 %v3439
  %3460 = vmatprep.subr.bf16.mxu0 0
  %3461 = vmatpush1.bf16.msra.mxu0 %v3440
  %3462 = vmatprep.subr.bf16.mxu0 0
  %3463 = vmatpush1.bf16.msra.mxu0 %v3441
  %3464 = vmatprep.subr.bf16.mxu0 0
  %3465 = vmatpush1.bf16.msra.mxu0 0
  %3466 = vmatprep.subr.bf16.mxu0 0
  %3467 = vmatpush1.bf16.msra.mxu0 0
  %3468 = vmatprep.subr.bf16.mxu0 0
  %3469 = vmatpush1.bf16.msra.mxu0 0
  %3470 = vmatprep.subr.bf16.mxu0 0
  %3471 = vmatpush1.bf16.msra.mxu0 0
  %3472 = vmatprep.subr.bf16.mxu0 0
  %3473 = vmatpush1.bf16.msra.mxu0 0
  %3474 = vmatprep.subr.bf16.mxu0 0
  %3475 = vmatpush1.bf16.msra.mxu0 0
  %3476 = vmatprep.subr.bf16.mxu0 0
  %3477 = vmatpush1.bf16.msra.mxu0 0
  %3478 = vmatprep.subr.bf16.mxu0 0
  %3479 = vmatpush1.bf16.msra.mxu0 0
  %3480 = vmatprep.subr.bf16.mxu0 0
  %3481 = vmatpush1.bf16.msra.mxu0 0
  %3482 = vmatprep.subr.bf16.mxu0 0
  %3483 = vmatpush1.bf16.msra.mxu0 0
  %3484 = vmatprep.mubr.bf16.mxu0 0
  %3485 = vmatmul.mubr.bf16.gmra.mrb[0].mxu0 %v3450
  %v3486 = vpop.f32.mrb[0].mxu0
  %v3487 = vadd.f32 %v3411, %v3486
  %v3488 = vpop.f32.mrb[0].mxu0
  %v3489 = vpop.f32.mrb[0].mxu0
  %v3490 = vpop.f32.mrb[0].mxu0
  %3491 = vdwg.mxu0
  %v3492 = vmax.f32 %v3487, 0.0
  %v3493 = vpack.c.bf16 %v3492, %v3492
  %v3494 = vld [vmem:[%s9] sm:$0xf]
  %v3495 = vld [vmem:[%s9 + $0x4] sm:$0xf]
  %v3496 = vld [vmem:[%s9 + $0x8] sm:$0xf]
  %v3497 = vld [vmem:[%s9 + $0xc] sm:$0xf]
  %v3498 = vld [vmem:[%s9 + $0x10] sm:$0xf]
  %v3499 = vld [vmem:[%s9 + $0x14] sm:$0xf]
  %v3500 = vld [vmem:[%s9 + $0x18] sm:$0xf]
  %v3501 = vld [vmem:[%s9 + $0x1c] sm:$0xf]
  %v3502 = vld [vmem:[%s16 + $0x7] ss:$0 sm:$0xff]
  %v3511 = vunpack.c.l.b16 %v3494
  %v3512 = vunpack.c.l.b16 %v3495
  %v3513 = vunpack.c.l.b16 %v3496
  %v3514 = vunpack.c.l.b16 %v3497
  %v3515 = vunpack.c.l.b16 %v3498
  %v3516 = vunpack.c.l.b16 %v3499
  %v3517 = vunpack.c.l.b16 %v3500
  %v3518 = vunpack.c.l.b16 %v3501
  %v3519 = vpack.c.b16 %v3512, %v3511
  %v3520 = vpack.c.b16 %v3514, %v3513
  %v3521 = vpack.c.b16 %v3516, %v3515
  %v3522 = vpack.c.b16 %v3518, %v3517
  %v3528 = vsel %vm255, %v3493, 0
  %3530 = vmatprep.subr.bf16.mxu0 0
  %3531 = vmatpush1.bf16.msra.mxu0 %v3519
  %3532 = vmatprep.subr.bf16.mxu0 0
  %3533 = vmatpush1.bf16.msra.mxu0 %v3520
  %3534 = vmatprep.subr.bf16.mxu0 0
  %3535 = vmatpush1.bf16.msra.mxu0 %v3521
  %3536 = vmatprep.subr.bf16.mxu0 0
  %3537 = vmatpush1.bf16.msra.mxu0 %v3522
  %3538 = vmatprep.subr.bf16.mxu0 0
  %3539 = vmatpush1.bf16.msra.mxu0 0
  %3540 = vmatprep.subr.bf16.mxu0 0
  %3541 = vmatpush1.bf16.msra.mxu0 0
  %3542 = vmatprep.subr.bf16.mxu0 0
  %3543 = vmatpush1.bf16.msra.mxu0 0
  %3544 = vmatprep.subr.bf16.mxu0 0
  %3545 = vmatpush1.bf16.msra.mxu0 0
  %3546 = vmatprep.subr.bf16.mxu0 0
  %3547 = vmatpush1.bf16.msra.mxu0 0
  %3548 = vmatprep.subr.bf16.mxu0 0
  %3549 = vmatpush1.bf16.msra.mxu0 0
  %3550 = vmatprep.subr.bf16.mxu0 0
  %3551 = vmatpush1.bf16.msra.mxu0 0
  %3552 = vmatprep.subr.bf16.mxu0 0
  %3553 = vmatpush1.bf16.msra.mxu0 0
  %3554 = vmatprep.subr.bf16.mxu0 0
  %3555 = vmatpush1.bf16.msra.mxu0 0
  %3556 = vmatprep.subr.bf16.mxu0 0
  %3557 = vmatpush1.bf16.msra.mxu0 0
  %3558 = vmatprep.subr.bf16.mxu0 0
  %3559 = vmatpush1.bf16.msra.mxu0 0
  %3560 = vmatprep.subr.bf16.mxu0 0
  %3561 = vmatpush1.bf16.msra.mxu0 0
  %3562 = vmatprep.mubr.bf16.mxu0 0
  %3563 = vmatmul.mubr.bf16.gmra.mrb[0].mxu0 %v3528
  %v3564 = vpop.f32.mrb[0].mxu0
  %v3565 = vadd.f32 %v3502, %v3564
  %v3566 = vpop.f32.mrb[0].mxu0
  %v3567 = vpop.f32.mrb[0].mxu0
  %v3568 = vpop.f32.mrb[0].mxu0
  %3569 = vdwg.mxu0
  %v3570 = vmax.f32 %v3565, 0.0
  %3572 = vrot.lane.b32.xlu0 %v3570, 64
  %v3573 = vpop.permute.xlu0 %3572
  %v3575 = vsel %vm255, %v3229, %v3573
  %v3576 = vpack.c.bf16 %v3234, %v3234
  %v3577 = vpack.c.bf16 %v3575, %v3575
  %v3578 = vld [vmem:[%s10] sm:$0xff]
  %v3579 = vld [vmem:[%s10 + $0x8] sm:$0xf]
  %v3580 = vld [vmem:[%s10 + $0xc] sm:$0xff]
  %v3581 = vld [vmem:[%s10 + $0x14] sm:$0xf]
  %v3582 = vld [vmem:[%s10 + $0x18] sm:$0xff]
  %v3583 = vld [vmem:[%s10 + $0x20] sm:$0xf]
  %v3584 = vld [vmem:[%s10 + $0x24] sm:$0xff]
  %v3585 = vld [vmem:[%s10 + $0x2c] sm:$0xf]
  %v3586 = vld [vmem:[%s10 + $0x30] sm:$0xff]
  %v3587 = vld [vmem:[%s10 + $0x38] sm:$0xf]
  %v3588 = vld [vmem:[%s10 + $0x3c] sm:$0xff]
  %v3589 = vld [vmem:[%s10 + $0x44] sm:$0xf]
  %v3590 = vld [vmem:[%s10 + $0x48] sm:$0xff]
  %v3591 = vld [vmem:[%s10 + $0x50] sm:$0xf]
  %v3592 = vld [vmem:[%s10 + $0x54] sm:$0xff]
  %v3593 = vld [vmem:[%s10 + $0x5c] sm:$0xf]
  %v3594 = vld [vmem:[%s10 + $0x60] sm:$0xff]
  %v3595 = vld [vmem:[%s10 + $0x68] sm:$0xf]
  %v3596 = vld [vmem:[%s10 + $0x6c] sm:$0xff]
  %v3597 = vld [vmem:[%s10 + $0x74] sm:$0xf]
  %v3598 = vld [vmem:[%s10 + $0x78] sm:$0xff]
  %v3599 = vld [vmem:[%s10 + $0x80] sm:$0xf]
  %v3600 = vld [vmem:[%s10 + $0x84] sm:$0xff]
  %v3601 = vld [vmem:[%s10 + $0x8c] sm:$0xf]
  %v3602 = vld [vmem:[%s10 + $0x90] sm:$0xff]
  %v3603 = vld [vmem:[%s10 + $0x98] sm:$0xf]
  %v3604 = vld [vmem:[%s10 + $0x9c] sm:$0xff]
  %v3605 = vld [vmem:[%s10 + $0xa4] sm:$0xf]
  %v3606 = vld [vmem:[%s10 + $0xa8] sm:$0xff]
  %v3607 = vld [vmem:[%s10 + $0xb0] sm:$0xf]
  %v3608 = vld [vmem:[%s10 + $0xb4] sm:$0xff]
  %v3609 = vld [vmem:[%s10 + $0xbc] sm:$0xf]
  %v3610 = vld [vmem:[%s10 + $0xc0] sm:$0xff]
  %v3611 = vld [vmem:[%s10 + $0xc8] sm:$0xf]
  %v3612 = vld [vmem:[%s10 + $0xcc] sm:$0xff]
  %v3613 = vld [vmem:[%s10 + $0xd4] sm:$0xf]
  %v3614 = vld [vmem:[%s10 + $0xd8] sm:$0xff]
  %v3615 = vld [vmem:[%s10 + $0xe0] sm:$0xf]
  %v3616 = vld [vmem:[%s10 + $0xe4] sm:$0xff]
  %v3617 = vld [vmem:[%s10 + $0xec] sm:$0xf]
  %v3618 = vld [vmem:[%s10 + $0xf0] sm:$0xff]
  %v3619 = vld [vmem:[%s10 + $0xf8] sm:$0xf]
  %v3620 = vld [vmem:[%s10 + $0xfc] sm:$0xff]
  %v3621 = vld [vmem:[%s10 + $0x104] sm:$0xf]
  %v3622 = vld [vmem:[%s10 + $0x108] sm:$0xff]
  %v3623 = vld [vmem:[%s10 + $0x110] sm:$0xf]
  %v3624 = vld [vmem:[%s10 + $0x114] sm:$0xff]
  %v3625 = vld [vmem:[%s10 + $0x11c] sm:$0xf]
  %v3626 = vld [vmem:[%s10 + $0x120] sm:$0xff]
  %v3627 = vld [vmem:[%s10 + $0x128] sm:$0xf]
  %v3628 = vld [vmem:[%s10 + $0x12c] sm:$0xff]
  %v3629 = vld [vmem:[%s10 + $0x134] sm:$0xf]
  %v3630 = vld [vmem:[%s10 + $0x138] sm:$0xff]
  %v3631 = vld [vmem:[%s10 + $0x140] sm:$0xf]
  %v3632 = vld [vmem:[%s10 + $0x144] sm:$0xff]
  %v3633 = vld [vmem:[%s10 + $0x14c] sm:$0xf]
  %v3634 = vld [vmem:[%s10 + $0x150] sm:$0xff]
  %v3635 = vld [vmem:[%s10 + $0x158] sm:$0xf]
  %v3636 = vld [vmem:[%s10 + $0x15c] sm:$0xff]
  %v3637 = vld [vmem:[%s10 + $0x164] sm:$0xf]
  %s3638 = scalar_lea.vmem %s16, 24
  %v3639 = vld [vmem:[%s3638] ss:$8 sm:$0x7]
  %v3641 = vlaneseq
  %v3642 = vshrl.u32 %v3641, 7
  %v3643 = vsub.s32 0, %v3642
  %v3644 = vrot.slane %v3639, %v3643
  %v3645 = vlaneseq
  %v3646 = vshrl.u32 %v3645, 7
  %v3647 = vsub.s32 1, %v3646
  %v3648 = vrot.slane %v3639, %v3647
  %v3649 = vlaneseq
  %v3650 = vshrl.u32 %v3649, 7
  %v3651 = vsub.s32 2, %v3650
  %v3652 = vrot.slane %v3639, %v3651
  %v3716 = vunpack.c.l.b16 %v3578
  %v3717 = vunpack.c.h.b16 %v3578
  %v3718 = vunpack.c.l.b16 %v3579
  %v3719 = vunpack.c.l.b16 %v3580
  %v3720 = vunpack.c.h.b16 %v3580
  %v3721 = vunpack.c.l.b16 %v3581
  %v3722 = vunpack.c.l.b16 %v3582
  %v3723 = vunpack.c.h.b16 %v3582
  %v3724 = vunpack.c.l.b16 %v3583
  %v3725 = vunpack.c.l.b16 %v3584
  %v3726 = vunpack.c.h.b16 %v3584
  %v3727 = vunpack.c.l.b16 %v3585
  %v3728 = vunpack.c.l.b16 %v3586
  %v3729 = vunpack.c.h.b16 %v3586
  %v3730 = vunpack.c.l.b16 %v3587
  %v3731 = vunpack.c.l.b16 %v3588
  %v3732 = vunpack.c.h.b16 %v3588
  %v3733 = vunpack.c.l.b16 %v3589
  %v3734 = vunpack.c.l.b16 %v3590
  %v3735 = vunpack.c.h.b16 %v3590
  %v3736 = vunpack.c.l.b16 %v3591
  %v3737 = vunpack.c.l.b16 %v3592
  %v3738 = vunpack.c.h.b16 %v3592
  %v3739 = vunpack.c.l.b16 %v3593
  %v3740 = vunpack.c.l.b16 %v3594
  %v3741 = vunpack.c.h.b16 %v3594
  %v3742 = vunpack.c.l.b16 %v3595
  %v3743 = vunpack.c.l.b16 %v3596
  %v3744 = vunpack.c.h.b16 %v3596
  %v3745 = vunpack.c.l.b16 %v3597
  %v3746 = vunpack.c.l.b16 %v3598
  %v3747 = vunpack.c.h.b16 %v3598
  %v3748 = vunpack.c.l.b16 %v3599
  %v3749 = vunpack.c.l.b16 %v3600
  %v3750 = vunpack.c.h.b16 %v3600
  %v3751 = vunpack.c.l.b16 %v3601
  %v3752 = vunpack.c.l.b16 %v3602
  %v3753 = vunpack.c.h.b16 %v3602
  %v3754 = vunpack.c.l.b16 %v3603
  %v3755 = vunpack.c.l.b16 %v3604
  %v3756 = vunpack.c.h.b16 %v3604
  %v3757 = vunpack.c.l.b16 %v3605
  %v3758 = vunpack.c.l.b16 %v3606
  %v3759 = vunpack.c.h.b16 %v3606
  %v3760 = vunpack.c.l.b16 %v3607
  %v3761 = vunpack.c.l.b16 %v3608
  %v3762 = vunpack.c.h.b16 %v3608
  %v3763 = vunpack.c.l.b16 %v3609
  %v3764 = vunpack.c.l.b16 %v3610
  %v3765 = vunpack.c.h.b16 %v3610
  %v3766 = vunpack.c.l.b16 %v3611
  %v3767 = vunpack.c.l.b16 %v3612
  %v3768 = vunpack.c.h.b16 %v3612
  %v3769 = vunpack.c.l.b16 %v3613
  %v3770 = vunpack.c.l.b16 %v3614
  %v3771 = vunpack.c.h.b16 %v3614
  %v3772 = vunpack.c.l.b16 %v3615
  %v3773 = vunpack.c.l.b16 %v3616
  %v3774 = vunpack.c.h.b16 %v3616
  %v3775 = vunpack.c.l.b16 %v3617
  %v3776 = vunpack.c.l.b16 %v3618
  %v3777 = vunpack.c.h.b16 %v3618
  %v3778 = vunpack.c.l.b16 %v3619
  %v3779 = vunpack.c.l.b16 %v3620
  %v3780 = vunpack.c.h.b16 %v3620
  %v3781 = vunpack.c.l.b16 %v3621
  %v3782 = vunpack.c.l.b16 %v3622
  %v3783 = vunpack.c.h.b16 %v3622
  %v3784 = vunpack.c.l.b16 %v3623
  %v3785 = vunpack.c.l.b16 %v3624
  %v3786 = vunpack.c.h.b16 %v3624
  %v3787 = vunpack.c.l.b16 %v3625
  %v3788 = vunpack.c.l.b16 %v3626
  %v3789 = vunpack.c.h.b16 %v3626
  %v3790 = vunpack.c.l.b16 %v3627
  %v3791 = vunpack.c.l.b16 %v3628
  %v3792 = vunpack.c.h.b16 %v3628
  %v3793 = vunpack.c.l.b16 %v3629
  %v3794 = vunpack.c.l.b16 %v3630
  %v3795 = vunpack.c.h.b16 %v3630
  %v3796 = vunpack.c.l.b16 %v3631
  %v3797 = vunpack.c.l.b16 %v3632
  %v3798 = vunpack.c.h.b16 %v3632
  %v3799 = vunpack.c.l.b16 %v3633
  %v3800 = vunpack.c.l.b16 %v3634
  %v3801 = vunpack.c.h.b16 %v3634
  %v3802 = vunpack.c.l.b16 %v3635
  %v3803 = vunpack.c.l.b16 %v3636
  %v3804 = vunpack.c.h.b16 %v3636
  %v3805 = vunpack.c.l.b16 %v3637
  %v3806 = vpack.c.b16 %v3719, %v3716
  %v3807 = vpack.c.b16 %v3720, %v3717
  %v3808 = vpack.c.b16 %v3721, %v3718
  %v3809 = vpack.c.b16 %v3725, %v3722
  %v3810 = vpack.c.b16 %v3726, %v3723
  %v3811 = vpack.c.b16 %v3727, %v3724
  %v3812 = vpack.c.b16 %v3731, %v3728
  %v3813 = vpack.c.b16 %v3732, %v3729
  %v3814 = vpack.c.b16 %v3733, %v3730
  %v3815 = vpack.c.b16 %v3737, %v3734
  %v3816 = vpack.c.b16 %v3738, %v3735
  %v3817 = vpack.c.b16 %v3739, %v3736
  %v3818 = vpack.c.b16 %v3743, %v3740
  %v3819 = vpack.c.b16 %v3744, %v3741
  %v3820 = vpack.c.b16 %v3745, %v3742
  %v3821 = vpack.c.b16 %v3749, %v3746
  %v3822 = vpack.c.b16 %v3750, %v3747
  %v3823 = vpack.c.b16 %v3751, %v3748
  %v3824 = vpack.c.b16 %v3755, %v3752
  %v3825 = vpack.c.b16 %v3756, %v3753
  %v3826 = vpack.c.b16 %v3757, %v3754
  %v3827 = vpack.c.b16 %v3761, %v3758
  %v3828 = vpack.c.b16 %v3762, %v3759
  %v3829 = vpack.c.b16 %v3763, %v3760
  %v3830 = vpack.c.b16 %v3767, %v3764
  %v3831 = vpack.c.b16 %v3768, %v3765
  %v3832 = vpack.c.b16 %v3769, %v3766
  %v3833 = vpack.c.b16 %v3773, %v3770
  %v3834 = vpack.c.b16 %v3774, %v3771
  %v3835 = vpack.c.b16 %v3775, %v3772
  %v3836 = vpack.c.b16 %v3779, %v3776
  %v3837 = vpack.c.b16 %v3780, %v3777
  %v3838 = vpack.c.b16 %v3781, %v3778
  %v3839 = vpack.c.b16 %v3785, %v3782
  %v3840 = vpack.c.b16 %v3786, %v3783
  %v3841 = vpack.c.b16 %v3787, %v3784
  %v3842 = vpack.c.b16 %v3791, %v3788
  %v3843 = vpack.c.b16 %v3792, %v3789
  %v3844 = vpack.c.b16 %v3793, %v3790
  %v3845 = vpack.c.b16 %v3797, %v3794
  %v3846 = vpack.c.b16 %v3798, %v3795
  %v3847 = vpack.c.b16 %v3799, %v3796
  %v3848 = vpack.c.b16 %v3803, %v3800
  %v3849 = vpack.c.b16 %v3804, %v3801
  %v3850 = vpack.c.b16 %v3805, %v3802
  %vm3896 = vcmask 916480
  %v3898 = vsel %vm3896, %v3577, 0
  %3900 = vmatprep.subr.bf16.mxu0 %v3807
  %3901 = vmatpush1.bf16.msra.mxu0 %v3806
  %3902 = vmatprep.subr.bf16.mxu0 %v3810
  %3903 = vmatpush1.bf16.msra.mxu0 %v3809
  %3904 = vmatprep.subr.bf16.mxu0 %v3813
  %3905 = vmatpush1.bf16.msra.mxu0 %v3812
  %3906 = vmatprep.subr.bf16.mxu0 %v3816
  %3907 = vmatpush1.bf16.msra.mxu0 %v3815
  %3908 = vmatprep.subr.bf16.mxu0 %v3819
  %3909 = vmatpush1.bf16.msra.mxu0 %v3818
  %3910 = vmatprep.subr.bf16.mxu0 %v3822
  %3911 = vmatpush1.bf16.msra.mxu0 %v3821
  %3912 = vmatprep.subr.bf16.mxu0 %v3825
  %3913 = vmatpush1.bf16.msra.mxu0 %v3824
  %3914 = vmatprep.subr.bf16.mxu0 %v3828
  %3915 = vmatpush1.bf16.msra.mxu0 %v3827
  %3916 = vmatprep.subr.bf16.mxu0 %v3831
  %3917 = vmatpush1.bf16.msra.mxu0 %v3830
  %3918 = vmatprep.subr.bf16.mxu0 %v3834
  %3919 = vmatpush1.bf16.msra.mxu0 %v3833
  %3920 = vmatprep.subr.bf16.mxu0 %v3837
  %3921 = vmatpush1.bf16.msra.mxu0 %v3836
  %3922 = vmatprep.subr.bf16.mxu0 %v3840
  %3923 = vmatpush1.bf16.msra.mxu0 %v3839
  %3924 = vmatprep.subr.bf16.mxu0 %v3843
  %3925 = vmatpush1.bf16.msra.mxu0 %v3842
  %3926 = vmatprep.subr.bf16.mxu0 %v3846
  %3927 = vmatpush1.bf16.msra.mxu0 %v3845
  %3928 = vmatprep.subr.bf16.mxu0 %v3849
  %3929 = vmatpush1.bf16.msra.mxu0 %v3848
  %3930 = vmatprep.subr.bf16.mxu0 0
  %3931 = vmatpush1.bf16.msra.mxu0 0
  %3932 = vmatprep.mubr.bf16.mxu0 %v3898
  %3933 = vmatmul.mubr.bf16.gmra.mrb[0].mxu0 %v3576
  %v3934 = vpop.f32.mrb[0].mxu0
  %v3935 = vadd.f32 %v3644, %v3934
  %v3936 = vpop.f32.mrb[0].mxu0
  %v3937 = vadd.f32 %v3648, %v3936
  %v3938 = vpop.f32.mrb[0].mxu0
  %v3939 = vpop.f32.mrb[0].mxu0
  %3940 = vdwg.mxu0
  %3941 = vmatprep.subr.bf16.mxu0 0
  %3942 = vmatpush1.bf16.msra.mxu0 %v3808
  %3943 = vmatprep.subr.bf16.mxu0 0
  %3944 = vmatpush1.bf16.msra.mxu0 %v3811
  %3945 = vmatprep.subr.bf16.mxu0 0
  %3946 = vmatpush1.bf16.msra.mxu0 %v3814
  %3947 = vmatprep.subr.bf16.mxu0 0
  %3948 = vmatpush1.bf16.msra.mxu0 %v3817
  %3949 = vmatprep.subr.bf16.mxu0 0
  %3950 = vmatpush1.bf16.msra.mxu0 %v3820
  %3951 = vmatprep.subr.bf16.mxu0 0
  %3952 = vmatpush1.bf16.msra.mxu0 %v3823
  %3953 = vmatprep.subr.bf16.mxu0 0
  %3954 = vmatpush1.bf16.msra.mxu0 %v3826
  %3955 = vmatprep.subr.bf16.mxu0 0
  %3956 = vmatpush1.bf16.msra.mxu0 %v3829
  %3957 = vmatprep.subr.bf16.mxu0 0
  %3958 = vmatpush1.bf16.msra.mxu0 %v3832
  %3959 = vmatprep.subr.bf16.mxu0 0
  %3960 = vmatpush1.bf16.msra.mxu0 %v3835
  %3961 = vmatprep.subr.bf16.mxu0 0
  %3962 = vmatpush1.bf16.msra.mxu0 %v3838
  %3963 = vmatprep.subr.bf16.mxu0 0
  %3964 = vmatpush1.bf16.msra.mxu0 %v3841
  %3965 = vmatprep.subr.bf16.mxu0 0
  %3966 = vmatpush1.bf16.msra.mxu0 %v3844
  %3967 = vmatprep.subr.bf16.mxu0 0
  %3968 = vmatpush1.bf16.msra.mxu0 %v3847
  %3969 = vmatprep.subr.bf16.mxu0 0
  %3970 = vmatpush1.bf16.msra.mxu0 %v3850
  %3971 = vmatprep.subr.bf16.mxu0 0
  %3972 = vmatpush1.bf16.msra.mxu0 0
  %3973 = vmatprep.mubr.bf16.mxu0 %v3898
  %3974 = vmatmul.mubr.bf16.gmra.mrb[0].mxu0 %v3576
  %v3975 = vpop.f32.mrb[0].mxu0
  %v3976 = vadd.f32 %v3652, %v3975
  %v3977 = vpop.f32.mrb[0].mxu0
  %v3978 = vpop.f32.mrb[0].mxu0
  %v3979 = vpop.f32.mrb[0].mxu0
  %3980 = vdwg.mxu0
  %v3981 = vmax.f32 %v3935, 0.0
  %v3982 = vmax.f32 %v3937, 0.0
  %v3983 = vmax.f32 %v3976, 0.0
  %v3984 = vpack.c.bf16 %v3981, %v3981
  %v3985 = vpack.c.bf16 %v3982, %v3982
  %v3986 = vpack.c.bf16 %v3983, %v3983
  %v3987 = vld [vmem:[%s11] sm:$0xff]
  %v3988 = vld [vmem:[%s11 + $0x8] sm:$0xff]
  %v3989 = vld [vmem:[%s11 + $0x10] sm:$0xff]
  %v3990 = vld [vmem:[%s11 + $0x18] sm:$0xff]
  %v3991 = vld [vmem:[%s11 + $0x20] sm:$0xff]
  %v3992 = vld [vmem:[%s11 + $0x28] sm:$0xff]
  %v3993 = vld [vmem:[%s11 + $0x30] sm:$0xff]
  %v3994 = vld [vmem:[%s11 + $0x38] sm:$0xff]
  %v3995 = vld [vmem:[%s11 + $0x40] sm:$0xff]
  %v3996 = vld [vmem:[%s11 + $0x48] sm:$0xff]
  %v3997 = vld [vmem:[%s11 + $0x50] sm:$0xff]
  %v3998 = vld [vmem:[%s11 + $0x58] sm:$0xff]
  %v3999 = vld [vmem:[%s11 + $0x60] sm:$0xff]
  %v4000 = vld [vmem:[%s11 + $0x68] sm:$0xff]
  %v4001 = vld [vmem:[%s11 + $0x70] sm:$0xff]
  %v4002 = vld [vmem:[%s11 + $0x78] sm:$0xff]
  %v4003 = vld [vmem:[%s11 + $0x80] sm:$0xff]
  %v4004 = vld [vmem:[%s11 + $0x88] sm:$0xff]
  %v4005 = vld [vmem:[%s11 + $0x90] sm:$0xff]
  %v4006 = vld [vmem:[%s11 + $0x98] sm:$0xff]
  %v4007 = vld [vmem:[%s11 + $0xa0] sm:$0xff]
  %v4008 = vld [vmem:[%s11 + $0xa8] sm:$0xff]
  %v4009 = vld [vmem:[%s11 + $0xb0] sm:$0xff]
  %v4010 = vld [vmem:[%s11 + $0xb8] sm:$0xff]
  %v4011 = vld [vmem:[%s11 + $0xc0] sm:$0xff]
  %v4012 = vld [vmem:[%s11 + $0xc8] sm:$0xff]
  %v4013 = vld [vmem:[%s11 + $0xd0] sm:$0xff]
  %v4014 = vld [vmem:[%s11 + $0xd8] sm:$0xff]
  %v4015 = vld [vmem:[%s11 + $0xe0] sm:$0xff]
  %v4016 = vld [vmem:[%s11 + $0xe8] sm:$0xff]
  %v4017 = vld [vmem:[%s11 + $0xf0] sm:$0xff]
  %v4018 = vld [vmem:[%s11 + $0xf8] sm:$0xff]
  %v4019 = vld [vmem:[%s11 + $0x100] sm:$0xff]
  %v4020 = vld [vmem:[%s11 + $0x108] sm:$0xff]
  %v4021 = vld [vmem:[%s11 + $0x110] sm:$0xff]
  %v4022 = vld [vmem:[%s11 + $0x118] sm:$0xff]
  %v4023 = vld [vmem:[%s11 + $0x120] sm:$0xff]
  %v4024 = vld [vmem:[%s11 + $0x128] sm:$0xff]
  %v4025 = vld [vmem:[%s11 + $0x130] sm:$0xff]
  %v4026 = vld [vmem:[%s11 + $0x138] sm:$0xff]
  %v4027 = vld [vmem:[%s11 + $0x140] sm:$0xff]
  %v4028 = vld [vmem:[%s11 + $0x148] sm:$0xff]
  %v4029 = vld [vmem:[%s11 + $0x150] sm:$0xff]
  %v4030 = vld [vmem:[%s11 + $0x158] sm:$0xff]
  %v4031 = vld [vmem:[%s11 + $0x160] sm:$0xff]
  %v4032 = vld [vmem:[%s11 + $0x168] sm:$0xff]
  %v4033 = vld [vmem:[%s11 + $0x170] sm:$0xff]
  %v4034 = vld [vmem:[%s11 + $0x178] sm:$0xff]
  %s4035 = scalar_lea.vmem %s16, 25
  %v4036 = vld [vmem:[%s4035] ss:$8 sm:$0x3]
  %v4038 = vlaneseq
  %v4039 = vshrl.u32 %v4038, 7
  %v4040 = vsub.s32 0, %v4039
  %v4041 = vrot.slane %v4036, %v4040
  %v4042 = vlaneseq
  %v4043 = vshrl.u32 %v4042, 7
  %v4044 = vsub.s32 1, %v4043
  %v4045 = vrot.slane %v4036, %v4044
  %v4096 = vunpack.c.l.b16 %v3987
  %v4097 = vunpack.c.h.b16 %v3987
  %v4098 = vunpack.c.l.b16 %v3988
  %v4099 = vunpack.c.h.b16 %v3988
  %v4100 = vunpack.c.l.b16 %v3989
  %v4101 = vunpack.c.h.b16 %v3989
  %v4102 = vunpack.c.l.b16 %v3990
  %v4103 = vunpack.c.h.b16 %v3990
  %v4104 = vunpack.c.l.b16 %v3991
  %v4105 = vunpack.c.h.b16 %v3991
  %v4106 = vunpack.c.l.b16 %v3992
  %v4107 = vunpack.c.h.b16 %v3992
  %v4108 = vunpack.c.l.b16 %v3993
  %v4109 = vunpack.c.h.b16 %v3993
  %v4110 = vunpack.c.l.b16 %v3994
  %v4111 = vunpack.c.h.b16 %v3994
  %v4112 = vunpack.c.l.b16 %v3995
  %v4113 = vunpack.c.h.b16 %v3995
  %v4114 = vunpack.c.l.b16 %v3996
  %v4115 = vunpack.c.h.b16 %v3996
  %v4116 = vunpack.c.l.b16 %v3997
  %v4117 = vunpack.c.h.b16 %v3997
  %v4118 = vunpack.c.l.b16 %v3998
  %v4119 = vunpack.c.h.b16 %v3998
  %v4120 = vunpack.c.l.b16 %v3999
  %v4121 = vunpack.c.h.b16 %v3999
  %v4122 = vunpack.c.l.b16 %v4000
  %v4123 = vunpack.c.h.b16 %v4000
  %v4124 = vunpack.c.l.b16 %v4001
  %v4125 = vunpack.c.h.b16 %v4001
  %v4126 = vunpack.c.l.b16 %v4002
  %v4127 = vunpack.c.h.b16 %v4002
  %v4128 = vunpack.c.l.b16 %v4003
  %v4129 = vunpack.c.h.b16 %v4003
  %v4130 = vunpack.c.l.b16 %v4004
  %v4131 = vunpack.c.h.b16 %v4004
  %v4132 = vunpack.c.l.b16 %v4005
  %v4133 = vunpack.c.h.b16 %v4005
  %v4134 = vunpack.c.l.b16 %v4006
  %v4135 = vunpack.c.h.b16 %v4006
  %v4136 = vunpack.c.l.b16 %v4007
  %v4137 = vunpack.c.h.b16 %v4007
  %v4138 = vunpack.c.l.b16 %v4008
  %v4139 = vunpack.c.h.b16 %v4008
  %v4140 = vunpack.c.l.b16 %v4009
  %v4141 = vunpack.c.h.b16 %v4009
  %v4142 = vunpack.c.l.b16 %v4010
  %v4143 = vunpack.c.h.b16 %v4010
  %v4144 = vunpack.c.l.b16 %v4011
  %v4145 = vunpack.c.h.b16 %v4011
  %v4146 = vunpack.c.l.b16 %v4012
  %v4147 = vunpack.c.h.b16 %v4012
  %v4148 = vunpack.c.l.b16 %v4013
  %v4149 = vunpack.c.h.b16 %v4013
  %v4150 = vunpack.c.l.b16 %v4014
  %v4151 = vunpack.c.h.b16 %v4014
  %v4152 = vunpack.c.l.b16 %v4015
  %v4153 = vunpack.c.h.b16 %v4015
  %v4154 = vunpack.c.l.b16 %v4016
  %v4155 = vunpack.c.h.b16 %v4016
  %v4156 = vunpack.c.l.b16 %v4017
  %v4157 = vunpack.c.h.b16 %v4017
  %v4158 = vunpack.c.l.b16 %v4018
  %v4159 = vunpack.c.h.b16 %v4018
  %v4160 = vunpack.c.l.b16 %v4019
  %v4161 = vunpack.c.h.b16 %v4019
  %v4162 = vunpack.c.l.b16 %v4020
  %v4163 = vunpack.c.h.b16 %v4020
  %v4164 = vunpack.c.l.b16 %v4021
  %v4165 = vunpack.c.h.b16 %v4021
  %v4166 = vunpack.c.l.b16 %v4022
  %v4167 = vunpack.c.h.b16 %v4022
  %v4168 = vunpack.c.l.b16 %v4023
  %v4169 = vunpack.c.h.b16 %v4023
  %v4170 = vunpack.c.l.b16 %v4024
  %v4171 = vunpack.c.h.b16 %v4024
  %v4172 = vunpack.c.l.b16 %v4025
  %v4173 = vunpack.c.h.b16 %v4025
  %v4174 = vunpack.c.l.b16 %v4026
  %v4175 = vunpack.c.h.b16 %v4026
  %v4176 = vunpack.c.l.b16 %v4027
  %v4177 = vunpack.c.h.b16 %v4027
  %v4178 = vunpack.c.l.b16 %v4028
  %v4179 = vunpack.c.h.b16 %v4028
  %v4180 = vunpack.c.l.b16 %v4029
  %v4181 = vunpack.c.h.b16 %v4029
  %v4182 = vunpack.c.l.b16 %v4030
  %v4183 = vunpack.c.h.b16 %v4030
  %v4184 = vunpack.c.l.b16 %v4031
  %v4185 = vunpack.c.h.b16 %v4031
  %v4186 = vunpack.c.l.b16 %v4032
  %v4187 = vunpack.c.h.b16 %v4032
  %v4188 = vunpack.c.l.b16 %v4033
  %v4189 = vunpack.c.h.b16 %v4033
  %v4190 = vunpack.c.l.b16 %v4034
  %v4191 = vunpack.c.h.b16 %v4034
  %v4192 = vpack.c.b16 %v4098, %v4096
  %v4193 = vpack.c.b16 %v4099, %v4097
  %v4194 = vpack.c.b16 %v4102, %v4100
  %v4195 = vpack.c.b16 %v4103, %v4101
  %v4196 = vpack.c.b16 %v4106, %v4104
  %v4197 = vpack.c.b16 %v4107, %v4105
  %v4198 = vpack.c.b16 %v4110, %v4108
  %v4199 = vpack.c.b16 %v4111, %v4109
  %v4200 = vpack.c.b16 %v4114, %v4112
  %v4201 = vpack.c.b16 %v4115, %v4113
  %v4202 = vpack.c.b16 %v4118, %v4116
  %v4203 = vpack.c.b16 %v4119, %v4117
  %v4204 = vpack.c.b16 %v4122, %v4120
  %v4205 = vpack.c.b16 %v4123, %v4121
  %v4206 = vpack.c.b16 %v4126, %v4124
  %v4207 = vpack.c.b16 %v4127, %v4125
  %v4208 = vpack.c.b16 %v4130, %v4128
  %v4209 = vpack.c.b16 %v4131, %v4129
  %v4210 = vpack.c.b16 %v4134, %v4132
  %v4211 = vpack.c.b16 %v4135, %v4133
  %v4212 = vpack.c.b16 %v4138, %v4136
  %v4213 = vpack.c.b16 %v4139, %v4137
  %v4214 = vpack.c.b16 %v4142, %v4140
  %v4215 = vpack.c.b16 %v4143, %v4141
  %v4216 = vpack.c.b16 %v4146, %v4144
  %v4217 = vpack.c.b16 %v4147, %v4145
  %v4218 = vpack.c.b16 %v4150, %v4148
  %v4219 = vpack.c.b16 %v4151, %v4149
  %v4220 = vpack.c.b16 %v4154, %v4152
  %v4221 = vpack.c.b16 %v4155, %v4153
  %v4222 = vpack.c.b16 %v4158, %v4156
  %v4223 = vpack.c.b16 %v4159, %v4157
  %v4224 = vpack.c.b16 %v4162, %v4160
  %v4225 = vpack.c.b16 %v4163, %v4161
  %v4226 = vpack.c.b16 %v4166, %v4164
  %v4227 = vpack.c.b16 %v4167, %v4165
  %v4228 = vpack.c.b16 %v4170, %v4168
  %v4229 = vpack.c.b16 %v4171, %v4169
  %v4230 = vpack.c.b16 %v4174, %v4172
  %v4231 = vpack.c.b16 %v4175, %v4173
  %v4232 = vpack.c.b16 %v4178, %v4176
  %v4233 = vpack.c.b16 %v4179, %v4177
  %v4234 = vpack.c.b16 %v4182, %v4180
  %v4235 = vpack.c.b16 %v4183, %v4181
  %v4236 = vpack.c.b16 %v4186, %v4184
  %v4237 = vpack.c.b16 %v4187, %v4185
  %v4238 = vpack.c.b16 %v4190, %v4188
  %v4239 = vpack.c.b16 %v4191, %v4189
  %4288 = vmatprep.subr.bf16.mxu0 %v4193
  %4289 = vmatpush1.bf16.msra.mxu0 %v4192
  %4290 = vmatprep.subr.bf16.mxu0 %v4195
  %4291 = vmatpush1.bf16.msra.mxu0 %v4194
  %4292 = vmatprep.subr.bf16.mxu0 %v4197
  %4293 = vmatpush1.bf16.msra.mxu0 %v4196
  %4294 = vmatprep.subr.bf16.mxu0 %v4199
  %4295 = vmatpush1.bf16.msra.mxu0 %v4198
  %4296 = vmatprep.subr.bf16.mxu0 %v4201
  %4297 = vmatpush1.bf16.msra.mxu0 %v4200
  %4298 = vmatprep.subr.bf16.mxu0 %v4203
  %4299 = vmatpush1.bf16.msra.mxu0 %v4202
  %4300 = vmatprep.subr.bf16.mxu0 %v4205
  %4301 = vmatpush1.bf16.msra.mxu0 %v4204
  %4302 = vmatprep.subr.bf16.mxu0 %v4207
  %4303 = vmatpush1.bf16.msra.mxu0 %v4206
  %4304 = vmatprep.subr.bf16.mxu0 %v4209
  %4305 = vmatpush1.bf16.msra.mxu0 %v4208
  %4306 = vmatprep.subr.bf16.mxu0 %v4211
  %4307 = vmatpush1.bf16.msra.mxu0 %v4210
  %4308 = vmatprep.subr.bf16.mxu0 %v4213
  %4309 = vmatpush1.bf16.msra.mxu0 %v4212
  %4310 = vmatprep.subr.bf16.mxu0 %v4215
  %4311 = vmatpush1.bf16.msra.mxu0 %v4214
  %4312 = vmatprep.subr.bf16.mxu0 %v4217
  %4313 = vmatpush1.bf16.msra.mxu0 %v4216
  %4314 = vmatprep.subr.bf16.mxu0 %v4219
  %4315 = vmatpush1.bf16.msra.mxu0 %v4218
  %4316 = vmatprep.subr.bf16.mxu0 %v4221
  %4317 = vmatpush1.bf16.msra.mxu0 %v4220
  %4318 = vmatprep.subr.bf16.mxu0 %v4223
  %4319 = vmatpush1.bf16.msra.mxu0 %v4222
  %4320 = vmatprep.mubr.bf16.mxu0 %v3985
  %4321 = vmatmul.mubr.bf16.gmra.mrb[0].mxu0 %v3984
  %v4322 = vpop.f32.mrb[0].mxu0
  %v4323 = vadd.f32 %v4041, %v4322
  %v4324 = vpop.f32.mrb[0].mxu0
  %v4325 = vadd.f32 %v4045, %v4324
  %v4326 = vpop.f32.mrb[0].mxu0
  %v4327 = vpop.f32.mrb[0].mxu0
  %4328 = vdwg.mxu0
  %4329 = vmatprep.subr.bf16.mxu0 %v4225
  %4330 = vmatpush1.bf16.msra.mxu0 %v4224
  %4331 = vmatprep.subr.bf16.mxu0 %v4227
  %4332 = vmatpush1.bf16.msra.mxu0 %v4226
  %4333 = vmatprep.subr.bf16.mxu0 %v4229
  %4334 = vmatpush1.bf16.msra.mxu0 %v4228
  %4335 = vmatprep.subr.bf16.mxu0 %v4231
  %4336 = vmatpush1.bf16.msra.mxu0 %v4230
  %4337 = vmatprep.subr.bf16.mxu0 %v4233
  %4338 = vmatpush1.bf16.msra.mxu0 %v4232
  %4339 = vmatprep.subr.bf16.mxu0 %v4235
  %4340 = vmatpush1.bf16.msra.mxu0 %v4234
  %4341 = vmatprep.subr.bf16.mxu0 %v4237
  %4342 = vmatpush1.bf16.msra.mxu0 %v4236
  %4343 = vmatprep.subr.bf16.mxu0 %v4239
  %4344 = vmatpush1.bf16.msra.mxu0 %v4238
  %4345 = vmatprep.subr.bf16.mxu0 0
  %4346 = vmatpush1.bf16.msra.mxu0 0
  %4347 = vmatprep.subr.bf16.mxu0 0
  %4348 = vmatpush1.bf16.msra.mxu0 0
  %4349 = vmatprep.subr.bf16.mxu0 0
  %4350 = vmatpush1.bf16.msra.mxu0 0
  %4351 = vmatprep.subr.bf16.mxu0 0
  %4352 = vmatpush1.bf16.msra.mxu0 0
  %4353 = vmatprep.subr.bf16.mxu0 0
  %4354 = vmatpush1.bf16.msra.mxu0 0
  %4355 = vmatprep.subr.bf16.mxu0 0
  %4356 = vmatpush1.bf16.msra.mxu0 0
  %4357 = vmatprep.subr.bf16.mxu0 0
  %4358 = vmatpush1.bf16.msra.mxu0 0
  %4359 = vmatprep.subr.bf16.mxu0 0
  %4360 = vmatpush1.bf16.msra.mxu0 0
  %4361 = vmatprep.mubr.bf16.mxu0 0
  %4362 = vmatmul.mubr.bf16.gmra.mrb[0].mxu0 %v3986
  %v4363 = vpop.f32.mrb[0].mxu0
  %v4364 = vadd.f32 %v4323, %v4363
  %v4365 = vpop.f32.mrb[0].mxu0
  %v4366 = vadd.f32 %v4325, %v4365
  %v4367 = vpop.f32.mrb[0].mxu0
  %v4368 = vpop.f32.mrb[0].mxu0
  %4369 = vdwg.mxu0
  %v4370 = vmax.f32 %v4364, 0.0
  %v4371 = vmax.f32 %v4366, 0.0
  %v4372 = vpack.c.bf16 %v4370, %v4370
  %v4373 = vpack.c.bf16 %v4371, %v4371
  %v4374 = vld [vmem:[%s12] sm:$0xf]
  %v4375 = vld [vmem:[%s12 + $0x4] sm:$0xf]
  %v4376 = vld [vmem:[%s12 + $0x8] sm:$0xf]
  %v4377 = vld [vmem:[%s12 + $0xc] sm:$0xf]
  %v4378 = vld [vmem:[%s12 + $0x10] sm:$0xf]
  %v4379 = vld [vmem:[%s12 + $0x14] sm:$0xf]
  %v4380 = vld [vmem:[%s12 + $0x18] sm:$0xf]
  %v4381 = vld [vmem:[%s12 + $0x1c] sm:$0xf]
  %v4382 = vld [vmem:[%s12 + $0x20] sm:$0xf]
  %v4383 = vld [vmem:[%s12 + $0x24] sm:$0xf]
  %v4384 = vld [vmem:[%s12 + $0x28] sm:$0xf]
  %v4385 = vld [vmem:[%s12 + $0x2c] sm:$0xf]
  %v4386 = vld [vmem:[%s12 + $0x30] sm:$0xf]
  %v4387 = vld [vmem:[%s12 + $0x34] sm:$0xf]
  %v4388 = vld [vmem:[%s12 + $0x38] sm:$0xf]
  %v4389 = vld [vmem:[%s12 + $0x3c] sm:$0xf]
  %v4390 = vld [vmem:[%s12 + $0x40] sm:$0xf]
  %v4391 = vld [vmem:[%s12 + $0x44] sm:$0xf]
  %v4392 = vld [vmem:[%s12 + $0x48] sm:$0xf]
  %v4393 = vld [vmem:[%s12 + $0x4c] sm:$0xf]
  %v4394 = vld [vmem:[%s12 + $0x50] sm:$0xf]
  %v4395 = vld [vmem:[%s12 + $0x54] sm:$0xf]
  %v4396 = vld [vmem:[%s12 + $0x58] sm:$0xf]
  %v4397 = vld [vmem:[%s12 + $0x5c] sm:$0xf]
  %v4398 = vld [vmem:[%s12 + $0x60] sm:$0xf]
  %v4399 = vld [vmem:[%s12 + $0x64] sm:$0xf]
  %v4400 = vld [vmem:[%s12 + $0x68] sm:$0xf]
  %v4401 = vld [vmem:[%s12 + $0x6c] sm:$0xf]
  %v4402 = vld [vmem:[%s12 + $0x70] sm:$0xf]
  %v4403 = vld [vmem:[%s12 + $0x74] sm:$0xf]
  %v4404 = vld [vmem:[%s12 + $0x78] sm:$0xf]
  %v4405 = vld [vmem:[%s12 + $0x7c] sm:$0xf]
  %v4406 = vld [vmem:[%s16 + $0x1a] ss:$0 sm:$0xff]
  %v4439 = vunpack.c.l.b16 %v4374
  %v4440 = vunpack.c.l.b16 %v4375
  %v4441 = vunpack.c.l.b16 %v4376
  %v4442 = vunpack.c.l.b16 %v4377
  %v4443 = vunpack.c.l.b16 %v4378
  %v4444 = vunpack.c.l.b16 %v4379
  %v4445 = vunpack.c.l.b16 %v4380
  %v4446 = vunpack.c.l.b16 %v4381
  %v4447 = vunpack.c.l.b16 %v4382
  %v4448 = vunpack.c.l.b16 %v4383
  %v4449 = vunpack.c.l.b16 %v4384
  %v4450 = vunpack.c.l.b16 %v4385
  %v4451 = vunpack.c.l.b16 %v4386
  %v4452 = vunpack.c.l.b16 %v4387
  %v4453 = vunpack.c.l.b16 %v4388
  %v4454 = vunpack.c.l.b16 %v4389
  %v4455 = vunpack.c.l.b16 %v4390
  %v4456 = vunpack.c.l.b16 %v4391
  %v4457 = vunpack.c.l.b16 %v4392
  %v4458 = vunpack.c.l.b16 %v4393
  %v4459 = vunpack.c.l.b16 %v4394
  %v4460 = vunpack.c.l.b16 %v4395
  %v4461 = vunpack.c.l.b16 %v4396
  %v4462 = vunpack.c.l.b16 %v4397
  %v4463 = vunpack.c.l.b16 %v4398
  %v4464 = vunpack.c.l.b16 %v4399
  %v4465 = vunpack.c.l.b16 %v4400
  %v4466 = vunpack.c.l.b16 %v4401
  %v4467 = vunpack.c.l.b16 %v4402
  %v4468 = vunpack.c.l.b16 %v4403
  %v4469 = vunpack.c.l.b16 %v4404
  %v4470 = vunpack.c.l.b16 %v4405
  %v4471 = vpack.c.b16 %v4440, %v4439
  %v4472 = vpack.c.b16 %v4442, %v4441
  %v4473 = vpack.c.b16 %v4444, %v4443
  %v4474 = vpack.c.b16 %v4446, %v4445
  %v4475 = vpack.c.b16 %v4448, %v4447
  %v4476 = vpack.c.b16 %v4450, %v4449
  %v4477 = vpack.c.b16 %v4452, %v4451
  %v4478 = vpack.c.b16 %v4454, %v4453
  %v4479 = vpack.c.b16 %v4456, %v4455
  %v4480 = vpack.c.b16 %v4458, %v4457
  %v4481 = vpack.c.b16 %v4460, %v4459
  %v4482 = vpack.c.b16 %v4462, %v4461
  %v4483 = vpack.c.b16 %v4464, %v4463
  %v4484 = vpack.c.b16 %v4466, %v4465
  %v4485 = vpack.c.b16 %v4468, %v4467
  %v4486 = vpack.c.b16 %v4470, %v4469
  %4503 = vmatprep.subr.bf16.mxu0 0
  %4504 = vmatpush1.bf16.msra.mxu0 %v4471
  %4505 = vmatprep.subr.bf16.mxu0 0
  %4506 = vmatpush1.bf16.msra.mxu0 %v4472
  %4507 = vmatprep.subr.bf16.mxu0 0
  %4508 = vmatpush1.bf16.msra.mxu0 %v4473
  %4509 = vmatprep.subr.bf16.mxu0 0
  %4510 = vmatpush1.bf16.msra.mxu0 %v4474
  %4511 = vmatprep.subr.bf16.mxu0 0
  %4512 = vmatpush1.bf16.msra.mxu0 %v4475
  %4513 = vmatprep.subr.bf16.mxu0 0
  %4514 = vmatpush1.bf16.msra.mxu0 %v4476
  %4515 = vmatprep.subr.bf16.mxu0 0
  %4516 = vmatpush1.bf16.msra.mxu0 %v4477
  %4517 = vmatprep.subr.bf16.mxu0 0
  %4518 = vmatpush1.bf16.msra.mxu0 %v4478
  %4519 = vmatprep.subr.bf16.mxu0 0
  %4520 = vmatpush1.bf16.msra.mxu0 %v4479
  %4521 = vmatprep.subr.bf16.mxu0 0
  %4522 = vmatpush1.bf16.msra.mxu0 %v4480
  %4523 = vmatprep.subr.bf16.mxu0 0
  %4524 = vmatpush1.bf16.msra.mxu0 %v4481
  %4525 = vmatprep.subr.bf16.mxu0 0
  %4526 = vmatpush1.bf16.msra.mxu0 %v4482
  %4527 = vmatprep.subr.bf16.mxu0 0
  %4528 = vmatpush1.bf16.msra.mxu0 %v4483
  %4529 = vmatprep.subr.bf16.mxu0 0
  %4530 = vmatpush1.bf16.msra.mxu0 %v4484
  %4531 = vmatprep.subr.bf16.mxu0 0
  %4532 = vmatpush1.bf16.msra.mxu0 %v4485
  %4533 = vmatprep.subr.bf16.mxu0 0
  %4534 = vmatpush1.bf16.msra.mxu0 %v4486
  %4535 = vmatprep.mubr.bf16.mxu0 %v4373
  %4536 = vmatmul.mubr.bf16.gmra.mrb[0].mxu0 %v4372
  %v4537 = vpop.f32.mrb[0].mxu0
  %v4538 = vadd.f32 %v4406, %v4537
  %v4539 = vpop.f32.mrb[0].mxu0
  %v4540 = vpop.f32.mrb[0].mxu0
  %v4541 = vpop.f32.mrb[0].mxu0
  %4542 = vdwg.mxu0
  %v4543 = vmax.f32 %v4538, 0.0
  %v4544 = vpack.c.bf16 %v4543, %v4543
  %v4545 = vld [vmem:[%s13] sm:$0xff]
  %v4546 = vld [vmem:[%s13 + $0x8] sm:$0xff]
  %v4547 = vld [vmem:[%s13 + $0x10] sm:$0xff]
  %v4548 = vld [vmem:[%s13 + $0x18] sm:$0xff]
  %v4549 = vld [vmem:[%s13 + $0x20] sm:$0xff]
  %v4550 = vld [vmem:[%s13 + $0x28] sm:$0xff]
  %v4551 = vld [vmem:[%s13 + $0x30] sm:$0xff]
  %v4552 = vld [vmem:[%s13 + $0x38] sm:$0xff]
  %v4553 = vld [vmem:[%s13 + $0x40] sm:$0xff]
  %v4554 = vld [vmem:[%s13 + $0x48] sm:$0xff]
  %v4555 = vld [vmem:[%s13 + $0x50] sm:$0xff]
  %v4556 = vld [vmem:[%s13 + $0x58] sm:$0xff]
  %v4557 = vld [vmem:[%s13 + $0x60] sm:$0xff]
  %v4558 = vld [vmem:[%s13 + $0x68] sm:$0xff]
  %v4559 = vld [vmem:[%s13 + $0x70] sm:$0xff]
  %v4560 = vld [vmem:[%s13 + $0x78] sm:$0xff]
  %s4561 = scalar_lea.vmem %s16, 27
  %v4562 = vld [vmem:[%s4561] ss:$8 sm:$0x3]
  %v4564 = vlaneseq
  %v4565 = vshrl.u32 %v4564, 7
  %v4566 = vsub.s32 0, %v4565
  %v4567 = vrot.slane %v4562, %v4566
  %v4568 = vlaneseq
  %v4569 = vshrl.u32 %v4568, 7
  %v4570 = vsub.s32 1, %v4569
  %v4571 = vrot.slane %v4562, %v4570
  %v4590 = vunpack.c.l.b16 %v4545
  %v4591 = vunpack.c.h.b16 %v4545
  %v4592 = vunpack.c.l.b16 %v4546
  %v4593 = vunpack.c.h.b16 %v4546
  %v4594 = vunpack.c.l.b16 %v4547
  %v4595 = vunpack.c.h.b16 %v4547
  %v4596 = vunpack.c.l.b16 %v4548
  %v4597 = vunpack.c.h.b16 %v4548
  %v4598 = vunpack.c.l.b16 %v4549
  %v4599 = vunpack.c.h.b16 %v4549
  %v4600 = vunpack.c.l.b16 %v4550
  %v4601 = vunpack.c.h.b16 %v4550
  %v4602 = vunpack.c.l.b16 %v4551
  %v4603 = vunpack.c.h.b16 %v4551
  %v4604 = vunpack.c.l.b16 %v4552
  %v4605 = vunpack.c.h.b16 %v4552
  %v4606 = vunpack.c.l.b16 %v4553
  %v4607 = vunpack.c.h.b16 %v4553
  %v4608 = vunpack.c.l.b16 %v4554
  %v4609 = vunpack.c.h.b16 %v4554
  %v4610 = vunpack.c.l.b16 %v4555
  %v4611 = vunpack.c.h.b16 %v4555
  %v4612 = vunpack.c.l.b16 %v4556
  %v4613 = vunpack.c.h.b16 %v4556
  %v4614 = vunpack.c.l.b16 %v4557
  %v4615 = vunpack.c.h.b16 %v4557
  %v4616 = vunpack.c.l.b16 %v4558
  %v4617 = vunpack.c.h.b16 %v4558
  %v4618 = vunpack.c.l.b16 %v4559
  %v4619 = vunpack.c.h.b16 %v4559
  %v4620 = vunpack.c.l.b16 %v4560
  %v4621 = vunpack.c.h.b16 %v4560
  %v4622 = vpack.c.b16 %v4592, %v4590
  %v4623 = vpack.c.b16 %v4593, %v4591
  %v4624 = vpack.c.b16 %v4596, %v4594
  %v4625 = vpack.c.b16 %v4597, %v4595
  %v4626 = vpack.c.b16 %v4600, %v4598
  %v4627 = vpack.c.b16 %v4601, %v4599
  %v4628 = vpack.c.b16 %v4604, %v4602
  %v4629 = vpack.c.b16 %v4605, %v4603
  %v4630 = vpack.c.b16 %v4608, %v4606
  %v4631 = vpack.c.b16 %v4609, %v4607
  %v4632 = vpack.c.b16 %v4612, %v4610
  %v4633 = vpack.c.b16 %v4613, %v4611
  %v4634 = vpack.c.b16 %v4616, %v4614
  %v4635 = vpack.c.b16 %v4617, %v4615
  %v4636 = vpack.c.b16 %v4620, %v4618
  %v4637 = vpack.c.b16 %v4621, %v4619
  %4654 = vmatprep.subr.bf16.mxu0 %v4623
  %4655 = vmatpush1.bf16.msra.mxu0 %v4622
  %4656 = vmatprep.subr.bf16.mxu0 %v4625
  %4657 = vmatpush1.bf16.msra.mxu0 %v4624
  %4658 = vmatprep.subr.bf16.mxu0 %v4627
  %4659 = vmatpush1.bf16.msra.mxu0 %v4626
  %4660 = vmatprep.subr.bf16.mxu0 %v4629
  %4661 = vmatpush1.bf16.msra.mxu0 %v4628
  %4662 = vmatprep.subr.bf16.mxu0 %v4631
  %4663 = vmatpush1.bf16.msra.mxu0 %v4630
  %4664 = vmatprep.subr.bf16.mxu0 %v4633
  %4665 = vmatpush1.bf16.msra.mxu0 %v4632
  %4666 = vmatprep.subr.bf16.mxu0 %v4635
  %4667 = vmatpush1.bf16.msra.mxu0 %v4634
  %4668 = vmatprep.subr.bf16.mxu0 %v4637
  %4669 = vmatpush1.bf16.msra.mxu0 %v4636
  %4670 = vmatprep.subr.bf16.mxu0 0
  %4671 = vmatpush1.bf16.msra.mxu0 0
  %4672 = vmatprep.subr.bf16.mxu0 0
  %4673 = vmatpush1.bf16.msra.mxu0 0
  %4674 = vmatprep.subr.bf16.mxu0 0
  %4675 = vmatpush1.bf16.msra.mxu0 0
  %4676 = vmatprep.subr.bf16.mxu0 0
  %4677 = vmatpush1.bf16.msra.mxu0 0
  %4678 = vmatprep.subr.bf16.mxu0 0
  %4679 = vmatpush1.bf16.msra.mxu0 0
  %4680 = vmatprep.subr.bf16.mxu0 0
  %4681 = vmatpush1.bf16.msra.mxu0 0
  %4682 = vmatprep.subr.bf16.mxu0 0
  %4683 = vmatpush1.bf16.msra.mxu0 0
  %4684 = vmatprep.subr.bf16.mxu0 0
  %4685 = vmatpush1.bf16.msra.mxu0 0
  %4686 = vmatprep.mubr.bf16.mxu0 0
  %4687 = vmatmul.mubr.bf16.gmra.mrb[0].mxu0 %v4544
  %v4688 = vpop.f32.mrb[0].mxu0
  %v4689 = vadd.f32 %v4567, %v4688
  %v4690 = vpop.f32.mrb[0].mxu0
  %v4691 = vadd.f32 %v4571, %v4690
  %v4692 = vpop.f32.mrb[0].mxu0
  %v4693 = vpop.f32.mrb[0].mxu0
  %4694 = vdwg.mxu0
  %v4695 = vmax.f32 %v4689, 0.0
  %v4696 = vmax.f32 %v4691, 0.0
  %v4697 = vpack.c.bf16 %v4695, %v4695
  %v4698 = vpack.c.bf16 %v4696, %v4696
  %v4699 = vld [vmem:[%s14] sm:$0xf]
  %v4700 = vld [vmem:[%s14 + $0x4] sm:$0xf]
  %v4701 = vld [vmem:[%s14 + $0x8] sm:$0xf]
  %v4702 = vld [vmem:[%s14 + $0xc] sm:$0xf]
  %v4703 = vld [vmem:[%s14 + $0x10] sm:$0xf]
  %v4704 = vld [vmem:[%s14 + $0x14] sm:$0xf]
  %v4705 = vld [vmem:[%s14 + $0x18] sm:$0xf]
  %v4706 = vld [vmem:[%s14 + $0x1c] sm:$0xf]
  %v4707 = vld [vmem:[%s14 + $0x20] sm:$0xf]
  %v4708 = vld [vmem:[%s14 + $0x24] sm:$0xf]
  %v4709 = vld [vmem:[%s14 + $0x28] sm:$0xf]
  %v4710 = vld [vmem:[%s14 + $0x2c] sm:$0xf]
  %v4711 = vld [vmem:[%s14 + $0x30] sm:$0xf]
  %v4712 = vld [vmem:[%s14 + $0x34] sm:$0xf]
  %v4713 = vld [vmem:[%s14 + $0x38] sm:$0xf]
  %v4714 = vld [vmem:[%s14 + $0x3c] sm:$0xf]
  %v4715 = vld [vmem:[%s14 + $0x40] sm:$0xf]
  %v4716 = vld [vmem:[%s14 + $0x44] sm:$0xf]
  %v4717 = vld [vmem:[%s14 + $0x48] sm:$0xf]
  %v4718 = vld [vmem:[%s14 + $0x4c] sm:$0xf]
  %v4719 = vld [vmem:[%s14 + $0x50] sm:$0xf]
  %v4720 = vld [vmem:[%s14 + $0x54] sm:$0xf]
  %v4721 = vld [vmem:[%s14 + $0x58] sm:$0xf]
  %v4722 = vld [vmem:[%s14 + $0x5c] sm:$0xf]
  %v4723 = vld [vmem:[%s14 + $0x60] sm:$0xf]
  %v4724 = vld [vmem:[%s14 + $0x64] sm:$0xf]
  %v4725 = vld [vmem:[%s14 + $0x68] sm:$0xf]
  %v4726 = vld [vmem:[%s14 + $0x6c] sm:$0xf]
  %v4727 = vld [vmem:[%s14 + $0x70] sm:$0xf]
  %v4728 = vld [vmem:[%s14 + $0x74] sm:$0xf]
  %v4729 = vld [vmem:[%s14 + $0x78] sm:$0xf]
  %v4730 = vld [vmem:[%s14 + $0x7c] sm:$0xf]
  %v4731 = vld [vmem:[%s16 + $0x1c] ss:$0 sm:$0xff]
  %v4764 = vunpack.c.l.b16 %v4699
  %v4765 = vunpack.c.l.b16 %v4700
  %v4766 = vunpack.c.l.b16 %v4701
  %v4767 = vunpack.c.l.b16 %v4702
  %v4768 = vunpack.c.l.b16 %v4703
  %v4769 = vunpack.c.l.b16 %v4704
  %v4770 = vunpack.c.l.b16 %v4705
  %v4771 = vunpack.c.l.b16 %v4706
  %v4772 = vunpack.c.l.b16 %v4707
  %v4773 = vunpack.c.l.b16 %v4708
  %v4774 = vunpack.c.l.b16 %v4709
  %v4775 = vunpack.c.l.b16 %v4710
  %v4776 = vunpack.c.l.b16 %v4711
  %v4777 = vunpack.c.l.b16 %v4712
  %v4778 = vunpack.c.l.b16 %v4713
  %v4779 = vunpack.c.l.b16 %v4714
  %v4780 = vunpack.c.l.b16 %v4715
  %v4781 = vunpack.c.l.b16 %v4716
  %v4782 = vunpack.c.l.b16 %v4717
  %v4783 = vunpack.c.l.b16 %v4718
  %v4784 = vunpack.c.l.b16 %v4719
  %v4785 = vunpack.c.l.b16 %v4720
  %v4786 = vunpack.c.l.b16 %v4721
  %v4787 = vunpack.c.l.b16 %v4722
  %v4788 = vunpack.c.l.b16 %v4723
  %v4789 = vunpack.c.l.b16 %v4724
  %v4790 = vunpack.c.l.b16 %v4725
  %v4791 = vunpack.c.l.b16 %v4726
  %v4792 = vunpack.c.l.b16 %v4727
  %v4793 = vunpack.c.l.b16 %v4728
  %v4794 = vunpack.c.l.b16 %v4729
  %v4795 = vunpack.c.l.b16 %v4730
  %v4796 = vpack.c.b16 %v4765, %v4764
  %v4797 = vpack.c.b16 %v4767, %v4766
  %v4798 = vpack.c.b16 %v4769, %v4768
  %v4799 = vpack.c.b16 %v4771, %v4770
  %v4800 = vpack.c.b16 %v4773, %v4772
  %v4801 = vpack.c.b16 %v4775, %v4774
  %v4802 = vpack.c.b16 %v4777, %v4776
  %v4803 = vpack.c.b16 %v4779, %v4778
  %v4804 = vpack.c.b16 %v4781, %v4780
  %v4805 = vpack.c.b16 %v4783, %v4782
  %v4806 = vpack.c.b16 %v4785, %v4784
  %v4807 = vpack.c.b16 %v4787, %v4786
  %v4808 = vpack.c.b16 %v4789, %v4788
  %v4809 = vpack.c.b16 %v4791, %v4790
  %v4810 = vpack.c.b16 %v4793, %v4792
  %v4811 = vpack.c.b16 %v4795, %v4794
  %4828 = vmatprep.subr.bf16.mxu0 0
  %4829 = vmatpush1.bf16.msra.mxu0 %v4796
  %4830 = vmatprep.subr.bf16.mxu0 0
  %4831 = vmatpush1.bf16.msra.mxu0 %v4797
  %4832 = vmatprep.subr.bf16.mxu0 0
  %4833 = vmatpush1.bf16.msra.mxu0 %v4798
  %4834 = vmatprep.subr.bf16.mxu0 0
  %4835 = vmatpush1.bf16.msra.mxu0 %v4799
  %4836 = vmatprep.subr.bf16.mxu0 0
  %4837 = vmatpush1.bf16.msra.mxu0 %v4800
  %4838 = vmatprep.subr.bf16.mxu0 0
  %4839 = vmatpush1.bf16.msra.mxu0 %v4801
  %4840 = vmatprep.subr.bf16.mxu0 0
  %4841 = vmatpush1.bf16.msra.mxu0 %v4802
  %4842 = vmatprep.subr.bf16.mxu0 0
  %4843 = vmatpush1.bf16.msra.mxu0 %v4803
  %4844 = vmatprep.subr.bf16.mxu0 0
  %4845 = vmatpush1.bf16.msra.mxu0 %v4804
  %4846 = vmatprep.subr.bf16.mxu0 0
  %4847 = vmatpush1.bf16.msra.mxu0 %v4805
  %4848 = vmatprep.subr.bf16.mxu0 0
  %4849 = vmatpush1.bf16.msra.mxu0 %v4806
  %4850 = vmatprep.subr.bf16.mxu0 0
  %4851 = vmatpush1.bf16.msra.mxu0 %v4807
  %4852 = vmatprep.subr.bf16.mxu0 0
  %4853 = vmatpush1.bf16.msra.mxu0 %v4808
  %4854 = vmatprep.subr.bf16.mxu0 0
  %4855 = vmatpush1.bf16.msra.mxu0 %v4809
  %4856 = vmatprep.subr.bf16.mxu0 0
  %4857 = vmatpush1.bf16.msra.mxu0 %v4810
  %4858 = vmatprep.subr.bf16.mxu0 0
  %4859 = vmatpush1.bf16.msra.mxu0 %v4811
  %4860 = vmatprep.mubr.bf16.mxu0 %v4698
  %4861 = vmatmul.mubr.bf16.gmra.mrb[0].mxu0 %v4697
  %v4862 = vpop.f32.mrb[0].mxu0
  %v4863 = vadd.f32 %v4731, %v4862
  %v4864 = vpop.f32.mrb[0].mxu0
  %v4865 = vpop.f32.mrb[0].mxu0
  %v4866 = vpop.f32.mrb[0].mxu0
  %4867 = vdwg.mxu0
  %v4868 = vmax.f32 %v4863, 0.0
  %v4869 = vpack.c.bf16 %v4868, %v4868
  %v4870 = vld [vmem:[%s15] sm:$0xf]
  %v4871 = vld [vmem:[%s15 + $0x4] sm:$0xf]
  %v4872 = vld [vmem:[%s15 + $0x8] sm:$0xf]
  %v4873 = vld [vmem:[%s15 + $0xc] sm:$0xf]
  %v4874 = vld [vmem:[%s15 + $0x10] sm:$0xf]
  %v4875 = vld [vmem:[%s15 + $0x14] sm:$0xf]
  %v4876 = vld [vmem:[%s15 + $0x18] sm:$0xf]
  %v4877 = vld [vmem:[%s15 + $0x1c] sm:$0xf]
  %v4878 = vld [vmem:[%s15 + $0x20] sm:$0xf]
  %v4879 = vld [vmem:[%s15 + $0x24] sm:$0xf]
  %v4880 = vld [vmem:[%s15 + $0x28] sm:$0xf]
  %v4881 = vld [vmem:[%s15 + $0x2c] sm:$0xf]
  %v4882 = vld [vmem:[%s15 + $0x30] sm:$0xf]
  %v4883 = vld [vmem:[%s15 + $0x34] sm:$0xf]
  %v4884 = vld [vmem:[%s15 + $0x38] sm:$0xf]
  %v4885 = vld [vmem:[%s15 + $0x3c] sm:$0xf]
  %v4886 = vld [vmem:[%s16 + $0x1d] ss:$0 sm:$0xff]
  %v4903 = vunpack.c.l.b16 %v4870
  %v4904 = vunpack.c.l.b16 %v4871
  %v4905 = vunpack.c.l.b16 %v4872
  %v4906 = vunpack.c.l.b16 %v4873
  %v4907 = vunpack.c.l.b16 %v4874
  %v4908 = vunpack.c.l.b16 %v4875
  %v4909 = vunpack.c.l.b16 %v4876
  %v4910 = vunpack.c.l.b16 %v4877
  %v4911 = vunpack.c.l.b16 %v4878
  %v4912 = vunpack.c.l.b16 %v4879
  %v4913 = vunpack.c.l.b16 %v4880
  %v4914 = vunpack.c.l.b16 %v4881
  %v4915 = vunpack.c.l.b16 %v4882
  %v4916 = vunpack.c.l.b16 %v4883
  %v4917 = vunpack.c.l.b16 %v4884
  %v4918 = vunpack.c.l.b16 %v4885
  %v4919 = vpack.c.b16 %v4904, %v4903
  %v4920 = vpack.c.b16 %v4906, %v4905
  %v4921 = vpack.c.b16 %v4908, %v4907
  %v4922 = vpack.c.b16 %v4910, %v4909
  %v4923 = vpack.c.b16 %v4912, %v4911
  %v4924 = vpack.c.b16 %v4914, %v4913
  %v4925 = vpack.c.b16 %v4916, %v4915
  %v4926 = vpack.c.b16 %v4918, %v4917
  %4935 = vmatprep.subr.bf16.mxu0 0
  %4936 = vmatpush1.bf16.msra.mxu0 %v4919
  %4937 = vmatprep.subr.bf16.mxu0 0
  %4938 = vmatpush1.bf16.msra.mxu0 %v4920
  %4939 = vmatprep.subr.bf16.mxu0 0
  %4940 = vmatpush1.bf16.msra.mxu0 %v4921
  %4941 = vmatprep.subr.bf16.mxu0 0
  %4942 = vmatpush1.bf16.msra.mxu0 %v4922
  %4943 = vmatprep.subr.bf16.mxu0 0
  %4944 = vmatpush1.bf16.msra.mxu0 %v4923
  %4945 = vmatprep.subr.bf16.mxu0 0
  %4946 = vmatpush1.bf16.msra.mxu0 %v4924
  %4947 = vmatprep.subr.bf16.mxu0 0
  %4948 = vmatpush1.bf16.msra.mxu0 %v4925
  %4949 = vmatprep.subr.bf16.mxu0 0
  %4950 = vmatpush1.bf16.msra.mxu0 %v4926
  %4951 = vmatprep.subr.bf16.mxu0 0
  %4952 = vmatpush1.bf16.msra.mxu0 0
  %4953 = vmatprep.subr.bf16.mxu0 0
  %4954 = vmatpush1.bf16.msra.mxu0 0
  %4955 = vmatprep.subr.bf16.mxu0 0
  %4956 = vmatpush1.bf16.msra.mxu0 0
  %4957 = vmatprep.subr.bf16.mxu0 0
  %4958 = vmatpush1.bf16.msra.mxu0 0
  %4959 = vmatprep.subr.bf16.mxu0 0
  %4960 = vmatpush1.bf16.msra.mxu0 0
  %4961 = vmatprep.subr.bf16.mxu0 0
  %4962 = vmatpush1.bf16.msra.mxu0 0
  %4963 = vmatprep.subr.bf16.mxu0 0
  %4964 = vmatpush1.bf16.msra.mxu0 0
  %4965 = vmatprep.subr.bf16.mxu0 0
  %4966 = vmatpush1.bf16.msra.mxu0 0
  %4967 = vmatprep.mubr.bf16.mxu0 0
  %4968 = vmatmul.mubr.bf16.gmra.mrb[0].mxu0 %v4869
  %v4969 = vpop.f32.mrb[0].mxu0
  %v4970 = vadd.f32 %v4886, %v4969
  %v4971 = vpop.f32.mrb[0].mxu0
  %v4972 = vpop.f32.mrb[0].mxu0
  %v4973 = vpop.f32.mrb[0].mxu0
  %4974 = vdwg.mxu0
  %vm4975 = vcmask 97280
  %4976 = vst.msk [vmem:[%s17] sm:$0xff] %vm4975, %v4970
  // Predicated region
  $region70: #{multitoxic_forward.1} parent=0 // pred_check
    _
  $region71: #{multitoxic_forward.1} parent=0 // pred_check_branch
    %4978 = sbr.rel (0) target = $region73
  $region72: #{multitoxic_forward.1} parent=0 // pred_region
    _
  $region73: #{multitoxic_forward.1} parent=0 // pred_fallthru
    _
  // Predicated region
  $region74: #{multitoxic_forward.1} parent=0 // pred_check
    _
  $region75: #{multitoxic_forward.1} parent=0 // pred_check_branch
    %4980 = sbr.rel (0) target = $region77
  $region76: #{multitoxic_forward.1} parent=0 // pred_region
    _
  $region77: #{multitoxic_forward.1} parent=0 // pred_fallthru
    _

</llo_original>
